<compile_context>
chip_gen: v7x
topology: tpu7x:2x2x1
jax: 0.10.0
libtpu: 0.0.40
codegen_flags: <defaults>
</compile_context>

<pallas_src>
import math
import jax
import jax.numpy as jnp
from jax import lax
from jax.experimental import pallas as pl
from jax.experimental.pallas import tpu as pltpu


def _softmax_last(x):
    """Softmax over the last axis with the EUP approx reciprocal."""
    m = jnp.max(x, axis=-1, keepdims=True)
    e = jnp.exp(x - m)
    return e * pl.reciprocal(jnp.sum(e, axis=-1, keepdims=True), approx=True)


def decoder_step_kernel(ids_ref, dec_ref, enc_ref, h0_ref, embed_hbm,
                        wihT_ref, whhT_ref, bih_ref, bhh_ref,
                        wgen_ref, bgen_ref,
                        out_ref,
                        h_scr, w_scr, embed_scr, onehot_scr, mask_scr,
                        encw_scr, dma_sem):
    j = pl.program_id(1)
    k = pl.program_id(2)
    V, H = embed_scr.shape

    # ---- once per batch chunk: load constants, init carried hidden ----
    @pl.when((j == 0) & (k == 0))
    def _init():
        cp = pltpu.make_async_copy(embed_hbm, embed_scr, dma_sem)
        cp.start()
        ids = ids_ref[...]                                            # (Bc, S)
        vocab_iota = lax.broadcasted_iota(jnp.int32, (1, 1, V), 2)
        onehot_scr[...] = (ids[:, :, None] == vocab_iota).astype(jnp.bfloat16)
        mask_scr[...] = jnp.where(ids[:, None, :] == 0, -10000.0, 0.0
                                  ).astype(jnp.float32)               # (Bc,1,S)
        wg_c = wgen_ref[...][:, 2 * H:]                               # (1, H)
        encw_scr[...] = jnp.sum(enc_ref[...] * wg_c[:, None, :],
                                axis=-1)[:, None, :]                  # (Bc,1,S)
        h_scr[...] = h0_ref[...]
        cp.wait()

    # At the start of each slot j the GRU input is decoder_inputs[:, j, :].
    @pl.when(k == 0)
    def _slot():
        w_scr[...] = dec_ref[0]

    # TODO(synk): nn.Dropout is identity in eval mode; training dropout not modeled.
    w = w_scr[...]                # (Bc, H)   pre-GRU input (also used by w_gen)
    h = h_scr[...]                # (Bc, H)

    # ---- single GRU step (PyTorch gate order: r, z, n) ----
    gx = jnp.dot(w, wihT_ref[...], preferred_element_type=jnp.float32) + bih_ref[...]
    gh = jnp.dot(h, whhT_ref[...], preferred_element_type=jnp.float32) + bhh_ref[...]
    r = jax.nn.sigmoid(gx[:, :H] + gh[:, :H])
    z = jax.nn.sigmoid(gx[:, H:2 * H] + gh[:, H:2 * H])
    n = jnp.tanh(gx[:, 2 * H:] + r * gh[:, 2 * H:])
    h_new = (1.0 - z) * n + z * h
    h_scr[...] = h_new

    enc = enc_ref[...]            # (Bc, S, H) resident (block index never changes)

    # ---- history attention: MXU batched matmul (q = 1) + additive pad mask ----
    attn_e = jnp.einsum('bqh,bsh->bqs', h_new[:, None, :], enc,
                        preferred_element_type=jnp.float32) + mask_scr[...]
    attn_history = _softmax_last(attn_e)                              # (Bc,1,S)

    # ---- vocab attention: contract the H axis of the (V,H) table directly ----
    attn_v = lax.dot_general(h_new.astype(jnp.bfloat16), embed_scr[...],
                             (((1,), (1,)), ((), ())),
                             preferred_element_type=jnp.float32)      # (Bc, V)
    attn_vocab = _softmax_last(attn_v)

    # ---- p_gen: fused lane-dense VPU multiply-add + one lane reduce;
    #      context term pre-contracted with w_gen[ctx] at init ----
    wg = wgen_ref[...]                                                # (1, 3H)
    wh_term = jnp.sum(w * wg[:, :H] + h_new * wg[:, H:2 * H],
                      axis=-1, keepdims=True)                         # (Bc, 1)
    ctx_term = jnp.sum(attn_history * encw_scr[...], axis=-1)         # (Bc, 1)
    p_gen = jax.nn.sigmoid(wh_term + ctx_term + bgen_ref[...])        # (Bc, 1)

    # ---- copy distribution: hoisted one-hot -> bf16 MXU batched matmul ----
    p_ctx3 = jnp.einsum('bqs,bsv->bqv', attn_history.astype(jnp.bfloat16),
                        onehot_scr[...], preferred_element_type=jnp.float32)
    p_ctx = jnp.sum(p_ctx3, axis=1)                                   # (Bc, V), squeeze q=1

    # ---- pointer-generator mixture ----
    p_final = p_gen * attn_vocab + (1.0 - p_gen) * p_ctx
    out_ref[0] = p_final

    # ---- greedy argmax feedback: w <- embed(argmax(p_final)) ----
    m = jnp.max(p_final, axis=-1, keepdims=True)
    iota_v = lax.broadcasted_iota(jnp.int32, p_final.shape, 1)
    w_idx = jnp.min(jnp.where(p_final == m, iota_v, V), axis=-1,
                    keepdims=True)                                    # first max (torch .max)
    onehot_w = (w_idx == lax.broadcasted_iota(jnp.int32, (1, V), 1)
                ).astype(jnp.bfloat16)                                # (Bc, V)
    w_scr[...] = jnp.dot(onehot_w, embed_scr[...],
                         preferred_element_type=jnp.float32)          # (Bc, H)
    # TODO(synk): teacher-forcing branch (teacher is not None) not implemented.


def _padded_bytes(shape, dtype):
    itemsize = jnp.dtype(dtype).itemsize
    s = list(shape)
    s[-1] = -(-s[-1] // 128) * 128
    if len(s) >= 2:
        sub = {4: 8, 2: 16, 1: 32}[itemsize]
        s[-2] = -(-s[-2] // sub) * sub
    n = 1
    for d in s:
        n *= d
    return n * itemsize


def decoder_forward(params, input_ids, decoder_inputs, encoder_output, hidden, max_value):
    B, S = input_ids.shape
    _, J, H = decoder_inputs.shape
    V = params["embed"].shape[0]
    K = int(max_value)

    # Pad the batch to a multiple of 8 so sublanes are dense and stores unmasked.
    Bp = -(-B // 8) * 8
    pad = Bp - B
    if pad:
        input_ids = jnp.pad(input_ids, ((0, pad), (0, 0)))            # pad rows = all pad_idx
        decoder_inputs = jnp.pad(decoder_inputs, ((0, pad), (0, 0), (0, 0)))
        encoder_output = jnp.pad(encoder_output, ((0, pad), (0, 0), (0, 0)))
        hidden = jnp.pad(hidden, ((0, 0), (0, pad), (0, 0)))

    # Leading "parallel" batch-chunk axis: lets a megacore part run one chunk
    # per TensorCore; chunks stay >= 8 rows so sublanes remain dense.
    nb = 2 if (Bp % 16 == 0) else 1
    bc = Bp // nb

    dec_jbh = jnp.transpose(decoder_inputs, (1, 0, 2))                # (J, Bp, H)
    h0 = hidden[0]                                                    # (Bp, H)
    embed_bf16 = params["embed"].astype(jnp.bfloat16)                 # single tied table

    H3 = 3 * H
    in_specs = [
        pl.BlockSpec((bc, S), lambda b, j, k: (b, 0)),                # input_ids
        pl.BlockSpec((1, bc, H), lambda b, j, k: (j, b, 0)),          # decoder_inputs (J,Bp,H)
        pl.BlockSpec((bc, S, H), lambda b, j, k: (b, 0, 0)),          # encoder_output
        pl.BlockSpec((bc, H), lambda b, j, k: (b, 0)),                # initial hidden
        pl.BlockSpec(memory_space=pl.ANY),                            # embed (bf16), DMA'd once
        pl.BlockSpec((H, H3), lambda b, j, k: (0, 0)),                # W_ih^T
        pl.BlockSpec((H, H3), lambda b, j, k: (0, 0)),                # W_hh^T
        pl.BlockSpec((1, H3), lambda b, j, k: (0, 0)),                # b_ih
        pl.BlockSpec((1, H3), lambda b, j, k: (0, 0)),                # b_hh
        pl.BlockSpec((1, H3), lambda b, j, k: (0, 0)),                # w_gen (lane-dense)
        pl.BlockSpec((1, 1), lambda b, j, k: (0, 0)),                 # b_gen
    ]
    out_specs = pl.BlockSpec((1, bc, V), lambda b, j, k: (j * K + k, b, 0))
    scratch_shapes = [
        pltpu.VMEM((bc, H), jnp.float32),        # carried hidden state
        pltpu.VMEM((bc, H), jnp.float32),        # carried GRU input (fed-back embedding)
        pltpu.VMEM((V, H), jnp.bfloat16),        # embedding table (single-buffered)
        pltpu.VMEM((bc, S, V), jnp.bfloat16),    # hoisted one-hot(input_ids)
        pltpu.VMEM((bc, 1, S), jnp.float32),     # additive pad mask
        pltpu.VMEM((bc, 1, S), jnp.float32),     # enc . w_gen[ctx] (hoisted context term)
        pltpu.SemaphoreType.DMA(()),             # embed DMA completion
    ]

    # Size scoped VMEM to the actual resident set: 2x for double-buffered
    # blocked operands + output block, 1x for scratch, plus headroom.
    est = 0
    for shp, dt in [((bc, S), jnp.int32), ((1, bc, H), jnp.float32),
                    ((bc, S, H), jnp.float32), ((bc, H), jnp.float32),
                    ((H, H3), jnp.float32), ((H, H3), jnp.float32),
                    ((1, H3), jnp.float32), ((1, H3), jnp.float32),
                    ((1, H3), jnp.float32), ((1, 1), jnp.float32),
                    ((1, bc, V), jnp.float32)]:
        est += 2 * _padded_bytes(shp, dt)
    for shp, dt in [((bc, H), jnp.float32), ((bc, H), jnp.float32),
                    ((V, H), jnp.bfloat16), ((bc, S, V), jnp.bfloat16),
                    ((bc, 1, S), jnp.float32), ((bc, 1, S), jnp.float32)]:
        est += _padded_bytes(shp, dt)
    vmem_limit = int(min(64 << 20, max(32 << 20, 2 * est + (2 << 20))))

    out_flat = pl.pallas_call(
        decoder_step_kernel,
        out_shape=jax.ShapeDtypeStruct((J * K, Bp, V), jnp.float32),
        grid_spec=pltpu.PrefetchScalarGridSpec(
            num_scalar_prefetch=0,
            grid=(nb, J, K),
            in_specs=in_specs,
            out_specs=out_specs,
            scratch_shapes=scratch_shapes),
        compiler_params=pltpu.CompilerParams(
            dimension_semantics=("parallel", "arbitrary", "arbitrary"),
            vmem_limit_bytes=vmem_limit),
    )(input_ids, dec_jbh, encoder_output, h0, embed_bf16,
      params["w_ih_T"], params["w_hh_T"], params["b_ih"], params["b_hh"],
      params["w_gen"], params["b_gen"])

    # TODO(synk): for production vocab sizes (~30k) the vocab axis should be
    # tiled with an online softmax instead of keeping the (V,H) table resident.

    out = out_flat.reshape(J, K, Bp, V)
    return jnp.transpose(out, (2, 0, 1, 3))[:B]                       # (B, J, K, V)


def reference_first_step(params, input_ids, decoder_inputs, encoder_output, hidden):
    """Pure-JAX f32 reference for the very first (j=0, k=0) step (no feedback)."""
    w = decoder_inputs[:, 0, :]
    h = hidden[0]
    H = h.shape[-1]
    V = params["embed"].shape[0]
    gx = w @ params["w_ih_T"] + params["b_ih"]
    gh = h @ params["w_hh_T"] + params["b_hh"]
    r = jax.nn.sigmoid(gx[:, :H] + gh[:, :H])
    z = jax.nn.sigmoid(gx[:, H:2 * H] + gh[:, H:2 * H])
    n = jnp.tanh(gx[:, 2 * H:] + r * gh[:, 2 * H:])
    h_new = (1.0 - z) * n + z * h
    mask = input_ids == 0
    attn_e = jnp.einsum("bsh,bh->bs", encoder_output, h_new)
    attn_e = jnp.where(mask, -10000.0, attn_e)
    attn_history = jax.nn.softmax(attn_e, -1)
    attn_vocab = jax.nn.softmax(h_new @ params["embed"].T, -1)
    context = jnp.einsum("bs,bsh->bh", attn_history, encoder_output)
    cat = jnp.concatenate([w, h_new, context], -1)
    p_gen = jax.nn.sigmoid(cat @ params["w_gen"].T + params["b_gen"])
    B = w.shape[0]
    p_ctx = jnp.zeros((B, V), jnp.float32).at[
        jnp.arange(B)[:, None], input_ids].add(attn_history)
    return p_gen * attn_vocab + (1.0 - p_gen) * p_ctx


if __name__ == "__main__":
    B, S, H, V, J, K = 2, 8, 32, 128, 2, 3
    key = jax.random.PRNGKey(0)
    ks = jax.random.split(key, 12)

    std = 0.02                       # config.initializer_range
    stdv = 1.0 / math.sqrt(H)        # default PyTorch GRU bias init
    bound = 1.0 / math.sqrt(3 * H)   # default nn.Linear init

    embed = (jax.random.normal(ks[0], (V, H)) * std).astype(jnp.float32)
    w_ih = (jax.random.normal(ks[1], (3 * H, H)) * std).astype(jnp.float32)
    w_hh = (jax.random.normal(ks[2], (3 * H, H)) * std).astype(jnp.float32)
    b_ih = jax.random.uniform(ks[3], (3 * H,), jnp.float32, -stdv, stdv)
    b_hh = jax.random.uniform(ks[4], (3 * H,), jnp.float32, -stdv, stdv)
    w_gen = jax.random.uniform(ks[5], (1, 3 * H), jnp.float32, -bound, bound)
    b_gen = jax.random.uniform(ks[6], (1,), jnp.float32, -bound, bound)

    params = dict(
        embed=embed,                          # single tied table (no embed_T copy)
        w_ih_T=jnp.transpose(w_ih),           # (H, 3H)
        w_hh_T=jnp.transpose(w_hh),           # (H, 3H)
        b_ih=b_ih.reshape(1, 3 * H),
        b_hh=b_hh.reshape(1, 3 * H),
        w_gen=w_gen,                          # (1, 3H), lane-dense
        b_gen=b_gen.reshape(1, 1),
    )

    input_ids = jax.random.randint(ks[7], (B, S), 1, V).astype(jnp.int32)
    input_ids = input_ids.at[:, S - 2:].set(0)   # pad tail (pad_idx = 0)
    decoder_inputs = jax.random.normal(ks[8], (B, J, H), jnp.float32)
    encoder_output = jax.random.normal(ks[9], (B, S, H), jnp.float32)
    hidden = jax.random.normal(ks[10], (1, B, H), jnp.float32)

    out = decoder_forward(params, input_ids, decoder_inputs, encoder_output, hidden, K)
    out = jax.block_until_ready(out)

    assert out.shape == (B, J, K, V), out.shape
    assert bool(jnp.all(jnp.isfinite(out)))
    # p_final is a convex mix of two (near-)probability distributions.
    assert bool(jnp.all(jnp.abs(jnp.sum(out, axis=-1) - 1.0) < 1e-2))
    # First decode step has no argmax feedback -> compare against pure-JAX f32 ref.
    ref0 = reference_first_step(params, input_ids, decoder_inputs, encoder_output, hidden)
    assert bool(jnp.allclose(out[:, 0, 0, :], ref0, atol=5e-3, rtol=1e-2))

    print("KERNEL_OK")
</pallas_src>

<mosaic_0001>
module attributes {stable_mosaic.version = 11 : i64} {
  func.func @decoder_step_kernel(%arg0: i32, %arg1: i32, %arg2: i32, %arg3: memref<8x8xi32, #tpu.memory_space<vmem>>, %arg4: memref<1x8x32xf32, #tpu.memory_space<vmem>>, %arg5: memref<8x8x32xf32, #tpu.memory_space<vmem>>, %arg6: memref<8x32xf32, #tpu.memory_space<vmem>>, %arg7: memref<128x32xbf16, #tpu.memory_space<any>>, %arg8: memref<32x96xf32, #tpu.memory_space<vmem>>, %arg9: memref<32x96xf32, #tpu.memory_space<vmem>>, %arg10: memref<1x96xf32, #tpu.memory_space<vmem>>, %arg11: memref<1x96xf32, #tpu.memory_space<vmem>>, %arg12: memref<1x96xf32, #tpu.memory_space<vmem>>, %arg13: memref<1x1xf32, #tpu.memory_space<vmem>>, %arg14: memref<1x8x128xf32, #tpu.memory_space<vmem>>, %arg15: memref<8x32xf32, #tpu.memory_space<vmem>>, %arg16: memref<8x32xf32, #tpu.memory_space<vmem>>, %arg17: memref<128x32xbf16, #tpu.memory_space<vmem>>, %arg18: memref<8x8x128xbf16, #tpu.memory_space<vmem>>, %arg19: memref<8x1x8xf32, #tpu.memory_space<vmem>>, %arg20: memref<8x1x8xf32, #tpu.memory_space<vmem>>, %arg21: memref<!tpu.dma_semaphore, #tpu.memory_space<semaphore_mem>>) attributes {dimension_semantics = [#tpu.dimension_semantics<parallel>, #tpu.dimension_semantics<arbitrary>, #tpu.dimension_semantics<arbitrary>], iteration_bounds = array<i64: 1, 2, 3>, scalar_prefetch = 0 : i64, scratch_operands = 7 : i64, tpu.core_type = #tpu.core_type<tc>, window_params = [{transform_indices = @transform_0, window_bounds = array<i64: 8, 8>}, {transform_indices = @transform_1, window_bounds = array<i64: 1, 8, 32>}, {transform_indices = @transform_2, window_bounds = array<i64: 8, 8, 32>}, {transform_indices = @transform_3, window_bounds = array<i64: 8, 32>}, {}, {pipeline_mode = #tpu.pipeline_mode<synchronous>, transform_indices = @transform_5, window_bounds = array<i64: 32, 96>}, {pipeline_mode = #tpu.pipeline_mode<synchronous>, transform_indices = @transform_6, window_bounds = array<i64: 32, 96>}, {pipeline_mode = #tpu.pipeline_mode<synchronous>, transform_indices = @transform_7, window_bounds = array<i64: 1, 96>}, {pipeline_mode = #tpu.pipeline_mode<synchronous>, transform_indices = @transform_8, window_bounds = array<i64: 1, 96>}, {pipeline_mode = #tpu.pipeline_mode<synchronous>, transform_indices = @transform_9, window_bounds = array<i64: 1, 96>}, {pipeline_mode = #tpu.pipeline_mode<synchronous>, transform_indices = @transform_10, window_bounds = array<i64: 1, 1>}, {transform_indices = @transform_11, window_bounds = array<i64: 1, 8, 128>}]} {
    %c0_i32 = arith.constant 0 : i32
    %0 = arith.cmpi eq, %arg1, %c0_i32 : i32
    %c0_i32_0 = arith.constant 0 : i32
    %1 = arith.cmpi eq, %arg2, %c0_i32_0 : i32
    %2 = arith.andi %0, %1 : i1
    %3 = arith.extui %2 : i1 to i32
    %c0_i32_1 = arith.constant 0 : i32
    %4 = arith.cmpi ne, %3, %c0_i32_1 : i32
    scf.if %4 {
      tpu.enqueue_dma source(%arg7 : memref<128x32xbf16, #tpu.memory_space<any>>) target(%arg17 : memref<128x32xbf16, #tpu.memory_space<vmem>>) target_semaphore(%arg21 : memref<!tpu.dma_semaphore, #tpu.memory_space<semaphore_mem>>)
      %c0_61 = arith.constant 0 : index
      %c0_62 = arith.constant 0 : index
      %130 = vector.load %arg3[%c0_61, %c0_62] : memref<8x8xi32, #tpu.memory_space<vmem>>, vector<8x8xi32>
      %131 = tpu.iota {dimensions = array<i32: 2>} : vector<1x1x128xi32>
      %132 = vector.shape_cast %130 : vector<8x8xi32> to vector<8x8x1xi32>
      %133 = vector.broadcast %132 : vector<8x8x1xi32> to vector<8x8x128xi32>
      %134 = vector.broadcast %131 : vector<1x1x128xi32> to vector<8x8x128xi32>
      %135 = arith.cmpi eq, %133, %134 : vector<8x8x128xi32>
      %136 = arith.extui %135 : vector<8x8x128xi1> to vector<8x8x128xi32>
      %137 = arith.sitofp %136 : vector<8x8x128xi32> to vector<8x8x128xf32>
      %138 = arith.truncf %137 : vector<8x8x128xf32> to vector<8x8x128xbf16>
      %c0_63 = arith.constant 0 : index
      %c0_64 = arith.constant 0 : index
      %c0_65 = arith.constant 0 : index
      %139 = vector.load %arg18[%c0_63, %c0_64, %c0_65] : memref<8x8x128xbf16, #tpu.memory_space<vmem>>, vector<8x8x128xbf16>
      tpu.vector_store %arg18[%c0_63, %c0_64, %c0_65], %138 {strides = array<i32>} : memref<8x8x128xbf16, #tpu.memory_space<vmem>>, vector<8x8x128xbf16>,
      %140 = vector.shape_cast %130 : vector<8x8xi32> to vector<8x1x8xi32>
      %c0_i32_66 = arith.constant 0 : i32
      %141 = vector.broadcast %c0_i32_66 : i32 to vector<8x1x8xi32>
      %142 = arith.cmpi eq, %140, %141 : vector<8x1x8xi32>
      %cst_67 = arith.constant -1.000000e+04 : f32
      %cst_68 = arith.constant 0.000000e+00 : f32
      %143 = vector.broadcast %cst_67 : f32 to vector<8x1x8xf32>
      %144 = vector.broadcast %cst_68 : f32 to vector<8x1x8xf32>
      %145 = arith.select %142, %143, %144 : vector<8x1x8xi1>, vector<8x1x8xf32>
      %c0_69 = arith.constant 0 : index
      %c0_70 = arith.constant 0 : index
      %c0_71 = arith.constant 0 : index
      %146 = vector.load %arg19[%c0_69, %c0_70, %c0_71] : memref<8x1x8xf32, #tpu.memory_space<vmem>>, vector<8x1x8xf32>
      tpu.vector_store %arg19[%c0_69, %c0_70, %c0_71], %145 {strides = array<i32>} : memref<8x1x8xf32, #tpu.memory_space<vmem>>, vector<8x1x8xf32>,
      %c0_72 = arith.constant 0 : index
      %c0_73 = arith.constant 0 : index
      %147 = vector.load %arg12[%c0_72, %c0_73] : memref<1x96xf32, #tpu.memory_space<vmem>>, vector<1x96xf32>
      %148 = vector.extract_strided_slice %147 {offsets = [0, 64], sizes = [1, 32], strides = [1, 1]} : vector<1x96xf32> to vector<1x32xf32>
      %c0_74 = arith.constant 0 : index
      %c0_75 = arith.constant 0 : index
      %c0_76 = arith.constant 0 : index
      %149 = vector.load %arg5[%c0_74, %c0_75, %c0_76] : memref<8x8x32xf32, #tpu.memory_space<vmem>>, vector<8x8x32xf32>
      %150 = vector.shape_cast %148 : vector<1x32xf32> to vector<1x1x32xf32>
      %151 = vector.broadcast %150 : vector<1x1x32xf32> to vector<8x8x32xf32>
      %152 = arith.mulf %149, %151 : vector<8x8x32xf32>
      %cst_77 = arith.constant dense<0.000000e+00> : vector<8x8xf32>
      %153 = vector.multi_reduction <add>, %152, %cst_77 [2] : vector<8x8x32xf32> to vector<8x8xf32>
      %154 = vector.shape_cast %153 : vector<8x8xf32> to vector<8x1x8xf32>
      %c0_78 = arith.constant 0 : index
      %c0_79 = arith.constant 0 : index
      %c0_80 = arith.constant 0 : index
      %155 = vector.load %arg20[%c0_78, %c0_79, %c0_80] : memref<8x1x8xf32, #tpu.memory_space<vmem>>, vector<8x1x8xf32>
      tpu.vector_store %arg20[%c0_78, %c0_79, %c0_80], %154 {strides = array<i32>} : memref<8x1x8xf32, #tpu.memory_space<vmem>>, vector<8x1x8xf32>,
      %c0_81 = arith.constant 0 : index
      %c0_82 = arith.constant 0 : index
      %156 = vector.load %arg6[%c0_81, %c0_82] : memref<8x32xf32, #tpu.memory_space<vmem>>, vector<8x32xf32>
      %c0_83 = arith.constant 0 : index
      %c0_84 = arith.constant 0 : index
      %157 = vector.load %arg15[%c0_83, %c0_84] : memref<8x32xf32, #tpu.memory_space<vmem>>, vector<8x32xf32>
      tpu.vector_store %arg15[%c0_83, %c0_84], %156 {strides = array<i32>} : memref<8x32xf32, #tpu.memory_space<vmem>>, vector<8x32xf32>,
      tpu.wait_dma2 semaphore(%arg21 : memref<!tpu.dma_semaphore, #tpu.memory_space<semaphore_mem>>) src(%arg7 : memref<128x32xbf16, #tpu.memory_space<any>>) dst(%arg17 : memref<128x32xbf16, #tpu.memory_space<vmem>>)
    } else {
    }
    %c0_i32_2 = arith.constant 0 : i32
    %5 = arith.cmpi eq, %arg2, %c0_i32_2 : i32
    %6 = arith.extui %5 : i1 to i32
    %c0_i32_3 = arith.constant 0 : i32
    %7 = arith.cmpi ne, %6, %c0_i32_3 : i32
    scf.if %7 {
      %c0_61 = arith.constant 0 : index
      %c0_62 = arith.constant 0 : index
      %c0_63 = arith.constant 0 : index
      %130 = vector.load %arg4[%c0_61, %c0_62, %c0_63] : memref<1x8x32xf32, #tpu.memory_space<vmem>>, vector<1x8x32xf32>
      %131 = vector.shape_cast %130 : vector<1x8x32xf32> to vector<8x32xf32>
      %c0_64 = arith.constant 0 : index
      %c0_65 = arith.constant 0 : index
      %132 = vector.load %arg16[%c0_64, %c0_65] : memref<8x32xf32, #tpu.memory_space<vmem>>, vector<8x32xf32>
      tpu.vector_store %arg16[%c0_64, %c0_65], %131 {strides = array<i32>} : memref<8x32xf32, #tpu.memory_space<vmem>>, vector<8x32xf32>,
    } else {
    }
    %c0 = arith.constant 0 : index
    %c0_4 = arith.constant 0 : index
    %8 = vector.load %arg16[%c0, %c0_4] : memref<8x32xf32, #tpu.memory_space<vmem>>, vector<8x32xf32>
    %c0_5 = arith.constant 0 : index
    %c0_6 = arith.constant 0 : index
    %9 = vector.load %arg15[%c0_5, %c0_6] : memref<8x32xf32, #tpu.memory_space<vmem>>, vector<8x32xf32>
    %c0_7 = arith.constant 0 : index
    %c0_8 = arith.constant 0 : index
    %10 = vector.load %arg8[%c0_7, %c0_8] : memref<32x96xf32, #tpu.memory_space<vmem>>, vector<32x96xf32>
    %cst = arith.constant dense<0.000000e+00> : vector<8x96xf32>
    %11 = tpu.matmul %8, %10, %cst {dimension_numbers = #tpu.dot_dimension_numbers<[1], [0], [0], [1], [0, 0, 1, 1], [], []>} : vector<8x32xf32>, vector<32x96xf32>, vector<8x96xf32> -> vector<8x96xf32>
    %c0_9 = arith.constant 0 : index
    %c0_10 = arith.constant 0 : index
    %12 = vector.load %arg10[%c0_9, %c0_10] : memref<1x96xf32, #tpu.memory_space<vmem>>, vector<1x96xf32>
    %13 = vector.broadcast %12 : vector<1x96xf32> to vector<8x96xf32>
    %14 = arith.addf %11, %13 : vector<8x96xf32>
    %c0_11 = arith.constant 0 : index
    %c0_12 = arith.constant 0 : index
    %15 = vector.load %arg9[%c0_11, %c0_12] : memref<32x96xf32, #tpu.memory_space<vmem>>, vector<32x96xf32>
    %cst_13 = arith.constant dense<0.000000e+00> : vector<8x96xf32>
    %16 = tpu.matmul %9, %15, %cst_13 {dimension_numbers = #tpu.dot_dimension_numbers<[1], [0], [0], [1], [0, 0, 1, 1], [], []>} : vector<8x32xf32>, vector<32x96xf32>, vector<8x96xf32> -> vector<8x96xf32>
    %c0_14 = arith.constant 0 : index
    %c0_15 = arith.constant 0 : index
    %17 = vector.load %arg11[%c0_14, %c0_15] : memref<1x96xf32, #tpu.memory_space<vmem>>, vector<1x96xf32>
    %18 = vector.broadcast %17 : vector<1x96xf32> to vector<8x96xf32>
    %19 = arith.addf %16, %18 : vector<8x96xf32>
    %20 = vector.extract_strided_slice %14 {offsets = [0, 0], sizes = [8, 32], strides = [1, 1]} : vector<8x96xf32> to vector<8x32xf32>
    %21 = vector.extract_strided_slice %19 {offsets = [0, 0], sizes = [8, 32], strides = [1, 1]} : vector<8x96xf32> to vector<8x32xf32>
    %22 = arith.addf %20, %21 : vector<8x32xf32>
    %23 = arith.negf %22 : vector<8x32xf32>
    %24 = math.exp %23 : vector<8x32xf32>
    %cst_16 = arith.constant 1.000000e+00 : f32
    %25 = vector.broadcast %cst_16 : f32 to vector<8x32xf32>
    %26 = arith.addf %25, %24 : vector<8x32xf32>
    %27 = arith.divf %25, %26 : vector<8x32xf32>
    %28 = vector.extract_strided_slice %14 {offsets = [0, 32], sizes = [8, 32], strides = [1, 1]} : vector<8x96xf32> to vector<8x32xf32>
    %29 = vector.extract_strided_slice %19 {offsets = [0, 32], sizes = [8, 32], strides = [1, 1]} : vector<8x96xf32> to vector<8x32xf32>
    %30 = arith.addf %28, %29 : vector<8x32xf32>
    %31 = arith.negf %30 : vector<8x32xf32>
    %32 = math.exp %31 : vector<8x32xf32>
    %cst_17 = arith.constant 1.000000e+00 : f32
    %33 = vector.broadcast %cst_17 : f32 to vector<8x32xf32>
    %34 = arith.addf %33, %32 : vector<8x32xf32>
    %35 = arith.divf %33, %34 : vector<8x32xf32>
    %36 = vector.extract_strided_slice %14 {offsets = [0, 64], sizes = [8, 32], strides = [1, 1]} : vector<8x96xf32> to vector<8x32xf32>
    %37 = vector.extract_strided_slice %19 {offsets = [0, 64], sizes = [8, 32], strides = [1, 1]} : vector<8x96xf32> to vector<8x32xf32>
    %38 = arith.mulf %27, %37 : vector<8x32xf32>
    %39 = arith.addf %36, %38 : vector<8x32xf32>
    %40 = math.tanh %39 : vector<8x32xf32>
    %cst_18 = arith.constant 1.000000e+00 : f32
    %41 = vector.broadcast %cst_18 : f32 to vector<8x32xf32>
    %42 = arith.subf %41, %35 : vector<8x32xf32>
    %43 = arith.mulf %42, %40 : vector<8x32xf32>
    %44 = arith.mulf %35, %9 : vector<8x32xf32>
    %45 = arith.addf %43, %44 : vector<8x32xf32>
    %c0_19 = arith.constant 0 : index
    %c0_20 = arith.constant 0 : index
    %46 = vector.load %arg15[%c0_19, %c0_20] : memref<8x32xf32, #tpu.memory_space<vmem>>, vector<8x32xf32>
    tpu.vector_store %arg15[%c0_19, %c0_20], %45 {strides = array<i32>} : memref<8x32xf32, #tpu.memory_space<vmem>>, vector<8x32xf32>,
    %c0_21 = arith.constant 0 : index
    %c0_22 = arith.constant 0 : index
    %c0_23 = arith.constant 0 : index
    %47 = vector.load %arg5[%c0_21, %c0_22, %c0_23] : memref<8x8x32xf32, #tpu.memory_space<vmem>>, vector<8x8x32xf32>
    %48 = vector.shape_cast %45 : vector<8x32xf32> to vector<8x1x32xf32>
    "tpu.trace_start"() <{level = 10 : i32, message = "bqh,bsh->bqs"}> : () -> ()
    %cst_24 = arith.constant dense<0.000000e+00> : vector<8x1x8xf32>
    %49 = tpu.matmul %48, %47, %cst_24 {dimension_numbers = #tpu.dot_dimension_numbers<[2], [2], [1], [1], [0, 0, 0, 1, 1, 1], [0], [0]>} : vector<8x1x32xf32>, vector<8x8x32xf32>, vector<8x1x8xf32> -> vector<8x1x8xf32>
    "tpu.trace_stop"() : () -> ()
    %c0_25 = arith.constant 0 : index
    %c0_26 = arith.constant 0 : index
    %c0_27 = arith.constant 0 : index
    %50 = vector.load %arg19[%c0_25, %c0_26, %c0_27] : memref<8x1x8xf32, #tpu.memory_space<vmem>>, vector<8x1x8xf32>
    %51 = arith.addf %49, %50 : vector<8x1x8xf32>
    %cst_28 = arith.constant dense<0xFF800000> : vector<8x1xf32>
    %52 = vector.multi_reduction <maximumf>, %51, %cst_28 [2] : vector<8x1x8xf32> to vector<8x1xf32>
    %53 = vector.shape_cast %52 : vector<8x1xf32> to vector<8x1x1xf32>
    %54 = vector.broadcast %53 : vector<8x1x1xf32> to vector<8x1x8xf32>
    %55 = arith.subf %51, %54 : vector<8x1x8xf32>
    %56 = math.exp %55 : vector<8x1x8xf32>
    %cst_29 = arith.constant dense<0.000000e+00> : vector<8x1xf32>
    %57 = vector.multi_reduction <add>, %56, %cst_29 [2] : vector<8x1x8xf32> to vector<8x1xf32>
    %58 = vector.shape_cast %57 : vector<8x1xf32> to vector<8x1x1xf32>
    %59 = tpu.reciprocal %58 {approx = true} : vector<8x1x1xf32> -> vector<8x1x1xf32>
    %60 = vector.broadcast %59 : vector<8x1x1xf32> to vector<8x1x8xf32>
    %61 = arith.mulf %56, %60 : vector<8x1x8xf32>
    %62 = arith.truncf %45 : vector<8x32xf32> to vector<8x32xbf16>
    %c0_30 = arith.constant 0 : index
    %c0_31 = arith.constant 0 : index
    %63 = vector.load %arg17[%c0_30, %c0_31] : memref<128x32xbf16, #tpu.memory_space<vmem>>, vector<128x32xbf16>
    %cst_32 = arith.constant dense<0.000000e+00> : vector<8x128xf32>
    %64 = tpu.matmul %62, %63, %cst_32 {dimension_numbers = #tpu.dot_dimension_numbers<[1], [1], [0], [0], [0, 0, 1, 0], [], []>} : vector<8x32xbf16>, vector<128x32xbf16>, vector<8x128xf32> -> vector<8x128xf32>
    %cst_33 = arith.constant dense<0xFF800000> : vector<8xf32>
    %65 = vector.multi_reduction <maximumf>, %64, %cst_33 [1] : vector<8x128xf32> to vector<8xf32>
    %66 = vector.shape_cast %65 : vector<8xf32> to vector<8x1xf32>
    %67 = vector.broadcast %66 : vector<8x1xf32> to vector<8x128xf32>
    %68 = arith.subf %64, %67 : vector<8x128xf32>
    %69 = math.exp %68 : vector<8x128xf32>
    %cst_34 = arith.constant dense<0.000000e+00> : vector<8xf32>
    %70 = vector.multi_reduction <add>, %69, %cst_34 [1] : vector<8x128xf32> to vector<8xf32>
    %71 = vector.shape_cast %70 : vector<8xf32> to vector<8x1xf32>
    %72 = tpu.reciprocal %71 {approx = true} : vector<8x1xf32> -> vector<8x1xf32>
    %73 = vector.broadcast %72 : vector<8x1xf32> to vector<8x128xf32>
    %74 = arith.mulf %69, %73 : vector<8x128xf32>
    %c0_35 = arith.constant 0 : index
    %c0_36 = arith.constant 0 : index
    %75 = vector.load %arg12[%c0_35, %c0_36] : memref<1x96xf32, #tpu.memory_space<vmem>>, vector<1x96xf32>
    %76 = vector.extract_strided_slice %75 {offsets = [0, 0], sizes = [1, 32], strides = [1, 1]} : vector<1x96xf32> to vector<1x32xf32>
    %77 = vector.broadcast %76 : vector<1x32xf32> to vector<8x32xf32>
    %78 = arith.mulf %8, %77 : vector<8x32xf32>
    %79 = vector.extract_strided_slice %75 {offsets = [0, 32], sizes = [1, 32], strides = [1, 1]} : vector<1x96xf32> to vector<1x32xf32>
    %80 = vector.broadcast %79 : vector<1x32xf32> to vector<8x32xf32>
    %81 = arith.mulf %45, %80 : vector<8x32xf32>
    %82 = arith.addf %78, %81 : vector<8x32xf32>
    %cst_37 = arith.constant dense<0.000000e+00> : vector<8xf32>
    %83 = vector.multi_reduction <add>, %82, %cst_37 [1] : vector<8x32xf32> to vector<8xf32>
    %84 = vector.shape_cast %83 : vector<8xf32> to vector<8x1xf32>
    %c0_38 = arith.constant 0 : index
    %c0_39 = arith.constant 0 : index
    %c0_40 = arith.constant 0 : index
    %85 = vector.load %arg20[%c0_38, %c0_39, %c0_40] : memref<8x1x8xf32, #tpu.memory_space<vmem>>, vector<8x1x8xf32>
    %86 = arith.mulf %61, %85 : vector<8x1x8xf32>
    %cst_41 = arith.constant dense<0.000000e+00> : vector<8x1xf32>
    %87 = vector.multi_reduction <add>, %86, %cst_41 [2] : vector<8x1x8xf32> to vector<8x1xf32>
    %88 = arith.addf %84, %87 : vector<8x1xf32>
    %c0_42 = arith.constant 0 : index
    %c0_43 = arith.constant 0 : index
    %89 = vector.load %arg13[%c0_42, %c0_43] : memref<1x1xf32, #tpu.memory_space<vmem>>, vector<1x1xf32>
    %90 = vector.broadcast %89 : vector<1x1xf32> to vector<8x1xf32>
    %91 = arith.addf %88, %90 : vector<8x1xf32>
    %92 = arith.negf %91 : vector<8x1xf32>
    %93 = math.exp %92 : vector<8x1xf32>
    %cst_44 = arith.constant 1.000000e+00 : f32
    %94 = vector.broadcast %cst_44 : f32 to vector<8x1xf32>
    %95 = arith.addf %94, %93 : vector<8x1xf32>
    %96 = arith.divf %94, %95 : vector<8x1xf32>
    %97 = arith.truncf %61 : vector<8x1x8xf32> to vector<8x1x8xbf16>
    %c0_45 = arith.constant 0 : index
    %c0_46 = arith.constant 0 : index
    %c0_47 = arith.constant 0 : index
    %98 = vector.load %arg18[%c0_45, %c0_46, %c0_47] : memref<8x8x128xbf16, #tpu.memory_space<vmem>>, vector<8x8x128xbf16>
    "tpu.trace_start"() <{level = 10 : i32, message = "bqs,bsv->bqv"}> : () -> ()
    %cst_48 = arith.constant dense<0.000000e+00> : vector<8x1x128xf32>
    %99 = tpu.matmul %97, %98, %cst_48 {dimension_numbers = #tpu.dot_dimension_numbers<[2], [1], [1], [2], [0, 0, 0, 1, 1, 2], [0], [0]>} : vector<8x1x8xbf16>, vector<8x8x128xbf16>, vector<8x1x128xf32> -> vector<8x1x128xf32>
    "tpu.trace_stop"() : () -> ()
    %cst_49 = arith.constant dense<0.000000e+00> : vector<8x128xf32>
    %100 = vector.multi_reduction <add>, %99, %cst_49 [1] : vector<8x1x128xf32> to vector<8x128xf32>
    %101 = vector.broadcast %96 : vector<8x1xf32> to vector<8x128xf32>
    %102 = arith.mulf %101, %74 : vector<8x128xf32>
    %cst_50 = arith.constant 1.000000e+00 : f32
    %103 = vector.broadcast %cst_50 : f32 to vector<8x1xf32>
    %104 = arith.subf %103, %96 : vector<8x1xf32>
    %105 = vector.broadcast %104 : vector<8x1xf32> to vector<8x128xf32>
    %106 = arith.mulf %105, %100 : vector<8x128xf32>
    %107 = arith.addf %102, %106 : vector<8x128xf32>
    %c0_51 = arith.constant 0 : index
    %c0_52 = arith.constant 0 : index
    %c0_53 = arith.constant 0 : index
    %108 = vector.load %arg14[%c0_51, %c0_52, %c0_53] : memref<1x8x128xf32, #tpu.memory_space<vmem>>, vector<1x8x128xf32>
    %109 = vector.shape_cast %108 : vector<1x8x128xf32> to vector<8x128xf32>
    %110 = vector.shape_cast %107 : vector<8x128xf32> to vector<1x8x128xf32>
    tpu.vector_store %arg14[%c0_51, %c0_52, %c0_53], %110 {strides = array<i32>} : memref<1x8x128xf32, #tpu.memory_space<vmem>>, vector<1x8x128xf32>,
    %cst_54 = arith.constant dense<0xFF800000> : vector<8xf32>
    %111 = vector.multi_reduction <maximumf>, %107, %cst_54 [1] : vector<8x128xf32> to vector<8xf32>
    %112 = vector.shape_cast %111 : vector<8xf32> to vector<8x1xf32>
    %113 = tpu.iota {dimensions = array<i32: 1>} : vector<8x128xi32>
    %114 = vector.broadcast %112 : vector<8x1xf32> to vector<8x128xf32>
    %115 = arith.cmpf oeq, %107, %114 : vector<8x128xf32>
    %c128_i32 = arith.constant 128 : i32
    %116 = vector.broadcast %c128_i32 : i32 to vector<8x128xi32>
    %117 = arith.select %115, %113, %116 : vector<8x128xi1>, vector<8x128xi32>
    %cst_55 = arith.constant dense<2147483647> : vector<8xi32>
    %118 = vector.multi_reduction <minsi>, %117, %cst_55 [1] : vector<8x128xi32> to vector<8xi32>
    %119 = vector.shape_cast %118 : vector<8xi32> to vector<8x1xi32>
    %120 = tpu.iota {dimensions = array<i32: 1>} : vector<1x128xi32>
    %121 = vector.broadcast %119 : vector<8x1xi32> to vector<8x128xi32>
    %122 = vector.broadcast %120 : vector<1x128xi32> to vector<8x128xi32>
    %123 = arith.cmpi eq, %121, %122 : vector<8x128xi32>
    %124 = arith.extui %123 : vector<8x128xi1> to vector<8x128xi32>
    %125 = arith.sitofp %124 : vector<8x128xi32> to vector<8x128xf32>
    %126 = arith.truncf %125 : vector<8x128xf32> to vector<8x128xbf16>
    %c0_56 = arith.constant 0 : index
    %c0_57 = arith.constant 0 : index
    %127 = vector.load %arg17[%c0_56, %c0_57] : memref<128x32xbf16, #tpu.memory_space<vmem>>, vector<128x32xbf16>
    %cst_58 = arith.constant dense<0.000000e+00> : vector<8x32xf32>
    %128 = tpu.matmul %126, %127, %cst_58 {dimension_numbers = #tpu.dot_dimension_numbers<[1], [0], [0], [1], [0, 0, 1, 1], [], []>} : vector<8x128xbf16>, vector<128x32xbf16>, vector<8x32xf32> -> vector<8x32xf32>
    %c0_59 = arith.constant 0 : index
    %c0_60 = arith.constant 0 : index
    %129 = vector.load %arg16[%c0_59, %c0_60] : memref<8x32xf32, #tpu.memory_space<vmem>>, vector<8x32xf32>
    tpu.vector_store %arg16[%c0_59, %c0_60], %128 {strides = array<i32>} : memref<8x32xf32, #tpu.memory_space<vmem>>, vector<8x32xf32>,
    return
  }
  func.func @transform_0(%arg0: i32, %arg1: i32, %arg2: i32) -> (i32, i32) {
    %c0_i32 = arith.constant 0 : i32
    %c0_i32_0 = arith.constant 0 : i32
    return %arg0, %c0_i32 : i32, i32
  }
  func.func @transform_1(%arg0: i32, %arg1: i32, %arg2: i32) -> (i32, i32, i32) {
    %c0_i32 = arith.constant 0 : i32
    %c0_i32_0 = arith.constant 0 : i32
    return %arg1, %arg0, %c0_i32 : i32, i32, i32
  }
  func.func @transform_2(%arg0: i32, %arg1: i32, %arg2: i32) -> (i32, i32, i32) {
    %c0_i32 = arith.constant 0 : i32
    %c0_i32_0 = arith.constant 0 : i32
    %c0_i32_1 = arith.constant 0 : i32
    return %arg0, %c0_i32, %c0_i32_0 : i32, i32, i32
  }
  func.func @transform_3(%arg0: i32, %arg1: i32, %arg2: i32) -> (i32, i32) {
    %c0_i32 = arith.constant 0 : i32
    %c0_i32_0 = arith.constant 0 : i32
    return %arg0, %c0_i32 : i32, i32
  }
  func.func @transform_5(%arg0: i32, %arg1: i32, %arg2: i32) -> (i32, i32) {
    %c0_i32 = arith.constant 0 : i32
    %c0_i32_0 = arith.constant 0 : i32
    %c0_i32_1 = arith.constant 0 : i32
    return %c0_i32, %c0_i32_0 : i32, i32
  }
  func.func @transform_6(%arg0: i32, %arg1: i32, %arg2: i32) -> (i32, i32) {
    %c0_i32 = arith.constant 0 : i32
    %c0_i32_0 = arith.constant 0 : i32
    %c0_i32_1 = arith.constant 0 : i32
    return %c0_i32, %c0_i32_0 : i32, i32
  }
  func.func @transform_7(%arg0: i32, %arg1: i32, %arg2: i32) -> (i32, i32) {
    %c0_i32 = arith.constant 0 : i32
    %c0_i32_0 = arith.constant 0 : i32
    %c0_i32_1 = arith.constant 0 : i32
    return %c0_i32, %c0_i32_0 : i32, i32
  }
  func.func @transform_8(%arg0: i32, %arg1: i32, %arg2: i32) -> (i32, i32) {
    %c0_i32 = arith.constant 0 : i32
    %c0_i32_0 = arith.constant 0 : i32
    %c0_i32_1 = arith.constant 0 : i32
    return %c0_i32, %c0_i32_0 : i32, i32
  }
  func.func @transform_9(%arg0: i32, %arg1: i32, %arg2: i32) -> (i32, i32) {
    %c0_i32 = arith.constant 0 : i32
    %c0_i32_0 = arith.constant 0 : i32
    %c0_i32_1 = arith.constant 0 : i32
    return %c0_i32, %c0_i32_0 : i32, i32
  }
  func.func @transform_10(%arg0: i32, %arg1: i32, %arg2: i32) -> (i32, i32) {
    %c0_i32 = arith.constant 0 : i32
    %c0_i32_0 = arith.constant 0 : i32
    %c0_i32_1 = arith.constant 0 : i32
    return %c0_i32, %c0_i32_0 : i32, i32
  }
  func.func @transform_11(%arg0: i32, %arg1: i32, %arg2: i32) -> (i32, i32, i32) {
    %c3_i32 = arith.constant 3 : i32
    %0 = arith.muli %arg1, %c3_i32 : i32
    %1 = arith.addi %0, %arg2 : i32
    %c0_i32 = arith.constant 0 : i32
    %c0_i32_0 = arith.constant 0 : i32
    return %1, %arg0, %c0_i32 : i32, i32, i32
  }
}

</mosaic_0001>

<llo_original>
// kernel: tpu_custom_call.1
$region0: #{tpu_custom_call.1}
  #allocation0 [shape = 'u32[]', space=smem, size = 0x4, offset = 0x4, fixed_abs, tag = 'smem constant byte address 0x4 - core index']
  #allocation1 [shape = 'u32[144,128]{1,0:T(1,128)}', space=vmem, size = 0x12000, scoped, tag = 'internal scratch']
  #allocation2 [shape = 'f32[8,32]{1,0:T(8,128)}', space=vmem, size = 0x1000, scoped, tag = 'scratch operand']
  #allocation3 [shape = 'f32[8,32]{1,0:T(8,128)}', space=vmem, size = 0x1000, scoped, tag = 'scratch operand']
  #allocation4 [shape = 'bf16[128,32]{1,0:T(16,128)(2,1)}', space=vmem, size = 0x8000, scoped, tag = 'scratch operand']
  #allocation5 [shape = 'bf16[8,8,128]{2,1,0:T(8,128)(2,1)}', space=vmem, size = 0x4000, scoped, tag = 'scratch operand']
  #allocation6 [shape = 'f32[8,1,8]{2,1,0:T(1,128)}', space=vmem, size = 0x1000, scoped, tag = 'scratch operand']
  #allocation7 [shape = 'f32[8,1,8]{2,1,0:T(1,128)}', space=vmem, size = 0x1000, scoped, tag = 'scratch operand']
  #allocation8 [shape = 's32[1]{0}', space=sflag, size = 0x4, scoped, tag = 'scratch operand']
  #allocation9 [shape = 'f32[1,1]{1,0:T(1,128)S(1)}', space=vmem, size = 0x200, scoped, tag = 'scoped memory for tpu_custom_call.1']
  #allocation19 [shape = 's32[]', space=sflag, size = 0x4, offset = 0, fixed_abs, tag = 'sflag constant byte address 0x0 - dummy sync flag']
  %s0 = inlined_call_operand.hbm [shape: s32[8,8], index: 0, kind: input, shape index: {}]
  %s1 = inlined_call_operand.hbm [shape: f32[2,8,32], index: 1, kind: input, shape index: {}]
  %s2 = inlined_call_operand.vmem [shape: f32[8,8,32], index: 2, kind: input, shape index: {}]
  %s3 = inlined_call_operand.hbm [shape: f32[8,32], index: 3, kind: input, shape index: {}]
  %s4 = inlined_call_operand.vmem [shape: bf16[128,32], index: 4, kind: input, shape index: {}]
  %s5 = inlined_call_operand.vmem [shape: f32[32,96], index: 5, kind: input, shape index: {}]
  %s6 = inlined_call_operand.hbm [shape: f32[32,96], index: 6, kind: input, shape index: {}]
  %s7 = inlined_call_operand.vmem [shape: f32[1,96], index: 7, kind: input, shape index: {}]
  %s8 = inlined_call_operand.vmem [shape: f32[1,96], index: 8, kind: input, shape index: {}]
  %s9 = inlined_call_operand.vmem [shape: f32[1,96], index: 9, kind: input, shape index: {}]
  %s10 = inlined_call_operand.<no memory space> [shape: f32[1,1], index: 10, kind: input, shape index: {}]
  %s11 = inlined_call_operand.hbm [shape: f32[6,8,128], index: 11, kind: output, shape index: {}]
  %s12 = sld [smem:[#allocation0]]
  $region131: #{tpu_custom_call.1} parent=0
    _
  %s14 = ssub.s32 1, %s12
  %s15 = scalar_select 0, %s14, %s12
  %v16 = vstv %s10
  %17 = vst [vmem:[#allocation9] sm:$0x1] %v16
  $region1: #{tpu_custom_call.1} parent=0
    #allocation10 [shape = 'u8[4096]{0}', space=vmem, size = 0x1000, scoped, tag = 'input window, operand 0, single buffered']
    #allocation11 [shape = 's32[2]{0}', space=sflag, size = 0x8, scoped, tag = 'scoped memory for tpu_custom_call.1']
    #allocation12 [shape = 's32[2]{0}', space=sflag, size = 0x8, scoped, tag = 'scoped memory for tpu_custom_call.1']
    #allocation13 [shape = 'u8[8192]{0}', space=vmem, size = 0x2000, scoped, tag = 'input window, operand 1']
    #allocation14 [shape = 's32[2]{0}', space=sflag, size = 0x8, scoped, tag = 'scoped memory for tpu_custom_call.1']
    #allocation15 [shape = 'u8[4096]{0}', space=vmem, size = 0x1000, scoped, tag = 'input window, operand 3, single buffered']
    #allocation16 [shape = 'u8[16384]{0}', space=vmem, size = 0x4000, scoped, tag = 'input window, operand 6, single buffered']
    #allocation17 [shape = 's32[1]{0}', space=sflag, size = 0x4, scoped, tag = 'scoped memory for tpu_custom_call.1']
    #allocation18 [shape = 'u8[8192]{0}', space=vmem, size = 0x2000, scoped, tag = 'output window, operand 0']
    %18 = vsyncpa [#allocation11], 0
    %19 = vsyncpa [#allocation14], 0
    %s20 = scalar_lea.sflag [#allocation14], 1
    %21 = vsyncpa %s20, 0
    %22 = vsyncpa [#allocation17], 0
    %23 = vsyncpa [#allocation12], 0
    %s24 = scalar_lea.sflag [#allocation12], 1
    %25 = vsyncpa %s24, 0
    loop: start=0, step=1, limit=8
    $region2: #{tpu_custom_call.1} parent=1 // loop_pre_header
      _
    $region3: #{tpu_custom_call.1} parent=1 // loop_header
      %s27 = sphi 0, %s31
      %p28 = scmp.ge.s32.totalorder %s27, 8
      %s34 = sphi 0, %s53
      %s35 = sphi 0, %s49
      %s36 = sphi 0, %s45
      %s37 = sphi 0, %s34
      %s38 = sphi 0, %s35
      %s39 = sphi 0, %s36
      %s40 = sphi 0, %s37
      %s41 = sphi 0, %s38
      %s42 = sphi 0, %s39
      %s56 = sphi 0, %s58
      %s59 = sphi 0, %s56
      %s60 = sphi 0, %s59
      %s76 = sphi 0, %s60
      %s84 = sphi 0, %s86
      %s87 = sphi 0, %s84
      %s88 = sphi 0, %s87
      %s104 = sphi 0, %s88
      %s110 = sphi 0, %s112
      %s113 = sphi 0, %s110
      %s114 = sphi 0, %s113
      %s130 = sphi 0, %s114
      %s136 = sphi 0, %s138
      %s139 = sphi 0, %s136
      %s140 = sphi 0, %s139
      %s156 = sphi 0, %s140
      %s160 = sphi 0, %s160
      %s162 = sphi 0, %s160
      %s163 = sphi 0, %s162
      %s177 = sphi 0, %s163
      %s181 = sphi 0, %s181
      %s183 = sphi 0, %s181
      %s184 = sphi 0, %s183
      %s198 = sphi 0, %s184
      %s202 = sphi 0, %s202
      %s204 = sphi 0, %s202
      %s205 = sphi 0, %s204
      %s219 = sphi 0, %s205
      %s223 = sphi 0, %s223
      %s225 = sphi 0, %s223
      %s226 = sphi 0, %s225
      %s240 = sphi 0, %s226
      %s244 = sphi 0, %s244
      %s246 = sphi 0, %s244
      %s247 = sphi 0, %s246
      %s261 = sphi 0, %s247
      %s265 = sphi 0, %s265
      %s267 = sphi 0, %s265
      %s268 = sphi 0, %s267
      %s282 = sphi 0, %s268
      %s294 = sphi 0, %s296
      %s297 = sphi 0, %s294
      %s298 = sphi 0, %s297
      %s314 = sphi 0, %s298
    $region4: #{tpu_custom_call.1} parent=1 // loop_header_branch
      %30 = sbr.rel (%p28) target = $region8
    $region5: #{tpu_custom_call.1} parent=1 // loop_body
      %s32 = ssub.s32 %s27, 1
      %s33 = ssub.s32 %s27, 2
      %s43 = sadd.s32 1, %s36
      %p44 = scmp.ge.s32.totalorder %s43, 3
      %s45 = scalar_select %p44, 0, %s43
      %s46 = sadd.s32 1, %s35
      %s47 = scalar_select %p44, %s46, %s35
      %p48 = scmp.ge.s32.totalorder %s47, 2
      %s49 = scalar_select %p48, 0, %s47
      %s50 = sadd.s32 1, %s34
      %s51 = scalar_select %p48, %s50, %s34
      %p52 = scmp.ge.s32.totalorder %s51, 1
      %s53 = scalar_select %p52, 0, %s51
      %s54 = ssub.s32 %s34, %s53
      %p55 = scmp.eq.s32.totalorder %s54, 0
      %s57 = sadd.s32 %s56, 1
      %s58 = scalar_select %p55, %s56, %s57
      %p61 = pneg %p55
      %p62 = scmp.eq.s32.totalorder %s27, 5
      %p63 = por %p61, %p62
      %p64 = scmp.ne.s32.totalorder %s56, %s59
      %p65 = scmp.eq.s32.totalorder %s27, 0
      %p66 = por %p64, %p65
      %p67 = scmp.ne.s32.totalorder %s56, %s59
      %p68 = scmp.eq.s32.totalorder %s32, 5
      %p69 = por %p67, %p68
      %p70 = scmp.ne.s32.totalorder %s59, %s60
      %p71 = scmp.eq.s32.totalorder %s32, 0
      %p72 = por %p70, %p71
      %p73 = scmp.ne.s32.totalorder %s59, %s60
      %p74 = scmp.eq.s32.totalorder %s33, 5
      %p75 = por %p73, %p74
      %p77 = scmp.ne.s32.totalorder %s60, %s76
      %p78 = scmp.eq.s32.totalorder %s33, 0
      %p79 = por %p77, %p78
      %s80 = ssub.s32 %s35, %s49
      %s81 = ssub.s32 %s34, %s53
      %s82 = sor.u32 %s80, %s81
      %p83 = scmp.eq.s32.totalorder %s82, 0
      %s85 = sadd.s32 %s84, 1
      %s86 = scalar_select %p83, %s84, %s85
      %p89 = pneg %p83
      %p90 = scmp.eq.s32.totalorder %s27, 5
      %p91 = por %p89, %p90
      %p92 = scmp.ne.s32.totalorder %s84, %s87
      %p93 = scmp.eq.s32.totalorder %s27, 0
      %p94 = por %p92, %p93
      %p95 = scmp.ne.s32.totalorder %s84, %s87
      %p96 = scmp.eq.s32.totalorder %s32, 5
      %p97 = por %p95, %p96
      %p98 = scmp.ne.s32.totalorder %s87, %s88
      %p99 = scmp.eq.s32.totalorder %s32, 0
      %p100 = por %p98, %p99
      %p101 = scmp.ne.s32.totalorder %s87, %s88
      %p102 = scmp.eq.s32.totalorder %s33, 5
      %p103 = por %p101, %p102
      %p105 = scmp.ne.s32.totalorder %s88, %s104
      %p106 = scmp.eq.s32.totalorder %s33, 0
      %p107 = por %p105, %p106
      %s108 = ssub.s32 %s34, %s53
      %p109 = scmp.eq.s32.totalorder %s108, 0
      %s111 = sadd.s32 %s110, 1
      %s112 = scalar_select %p109, %s110, %s111
      %p115 = pneg %p109
      %p116 = scmp.eq.s32.totalorder %s27, 5
      %p117 = por %p115, %p116
      %p118 = scmp.ne.s32.totalorder %s110, %s113
      %p119 = scmp.eq.s32.totalorder %s27, 0
      %p120 = por %p118, %p119
      %p121 = scmp.ne.s32.totalorder %s110, %s113
      %p122 = scmp.eq.s32.totalorder %s32, 5
      %p123 = por %p121, %p122
      %p124 = scmp.ne.s32.totalorder %s113, %s114
      %p125 = scmp.eq.s32.totalorder %s32, 0
      %p126 = por %p124, %p125
      %p127 = scmp.ne.s32.totalorder %s113, %s114
      %p128 = scmp.eq.s32.totalorder %s33, 5
      %p129 = por %p127, %p128
      %p131 = scmp.ne.s32.totalorder %s114, %s130
      %p132 = scmp.eq.s32.totalorder %s33, 0
      %p133 = por %p131, %p132
      %s134 = ssub.s32 %s34, %s53
      %p135 = scmp.eq.s32.totalorder %s134, 0
      %s137 = sadd.s32 %s136, 1
      %s138 = scalar_select %p135, %s136, %s137
      %p141 = pneg %p135
      %p142 = scmp.eq.s32.totalorder %s27, 5
      %p143 = por %p141, %p142
      %p144 = scmp.ne.s32.totalorder %s136, %s139
      %p145 = scmp.eq.s32.totalorder %s27, 0
      %p146 = por %p144, %p145
      %p147 = scmp.ne.s32.totalorder %s136, %s139
      %p148 = scmp.eq.s32.totalorder %s32, 5
      %p149 = por %p147, %p148
      %p150 = scmp.ne.s32.totalorder %s139, %s140
      %p151 = scmp.eq.s32.totalorder %s32, 0
      %p152 = por %p150, %p151
      %p153 = scmp.ne.s32.totalorder %s139, %s140
      %p154 = scmp.eq.s32.totalorder %s33, 5
      %p155 = por %p153, %p154
      %p157 = scmp.ne.s32.totalorder %s140, %s156
      %p158 = scmp.eq.s32.totalorder %s33, 0
      %p159 = por %p157, %p158
      %s161 = sadd.s32 %s160, 1
      %p164 = scmp.eq.s32.totalorder %s27, 5
      %p165 = scmp.ne.s32.totalorder %s160, %s162
      %p166 = scmp.eq.s32.totalorder %s27, 0
      %p167 = por %p165, %p166
      %p168 = scmp.ne.s32.totalorder %s160, %s162
      %p169 = scmp.eq.s32.totalorder %s32, 5
      %p170 = por %p168, %p169
      %p171 = scmp.ne.s32.totalorder %s162, %s163
      %p172 = scmp.eq.s32.totalorder %s32, 0
      %p173 = por %p171, %p172
      %p174 = scmp.ne.s32.totalorder %s162, %s163
      %p175 = scmp.eq.s32.totalorder %s33, 5
      %p176 = por %p174, %p175
      %p178 = scmp.ne.s32.totalorder %s163, %s177
      %p179 = scmp.eq.s32.totalorder %s33, 0
      %p180 = por %p178, %p179
      %s182 = sadd.s32 %s181, 1
      %p185 = scmp.eq.s32.totalorder %s27, 5
      %p186 = scmp.ne.s32.totalorder %s181, %s183
      %p187 = scmp.eq.s32.totalorder %s27, 0
      %p188 = por %p186, %p187
      %p189 = scmp.ne.s32.totalorder %s181, %s183
      %p190 = scmp.eq.s32.totalorder %s32, 5
      %p191 = por %p189, %p190
      %p192 = scmp.ne.s32.totalorder %s183, %s184
      %p193 = scmp.eq.s32.totalorder %s32, 0
      %p194 = por %p192, %p193
      %p195 = scmp.ne.s32.totalorder %s183, %s184
      %p196 = scmp.eq.s32.totalorder %s33, 5
      %p197 = por %p195, %p196
      %p199 = scmp.ne.s32.totalorder %s184, %s198
      %p200 = scmp.eq.s32.totalorder %s33, 0
      %p201 = por %p199, %p200
      %s203 = sadd.s32 %s202, 1
      %p206 = scmp.eq.s32.totalorder %s27, 5
      %p207 = scmp.ne.s32.totalorder %s202, %s204
      %p208 = scmp.eq.s32.totalorder %s27, 0
      %p209 = por %p207, %p208
      %p210 = scmp.ne.s32.totalorder %s202, %s204
      %p211 = scmp.eq.s32.totalorder %s32, 5
      %p212 = por %p210, %p211
      %p213 = scmp.ne.s32.totalorder %s204, %s205
      %p214 = scmp.eq.s32.totalorder %s32, 0
      %p215 = por %p213, %p214
      %p216 = scmp.ne.s32.totalorder %s204, %s205
      %p217 = scmp.eq.s32.totalorder %s33, 5
      %p218 = por %p216, %p217
      %p220 = scmp.ne.s32.totalorder %s205, %s219
      %p221 = scmp.eq.s32.totalorder %s33, 0
      %p222 = por %p220, %p221
      %s224 = sadd.s32 %s223, 1
      %p227 = scmp.eq.s32.totalorder %s27, 5
      %p228 = scmp.ne.s32.totalorder %s223, %s225
      %p229 = scmp.eq.s32.totalorder %s27, 0
      %p230 = por %p228, %p229
      %p231 = scmp.ne.s32.totalorder %s223, %s225
      %p232 = scmp.eq.s32.totalorder %s32, 5
      %p233 = por %p231, %p232
      %p234 = scmp.ne.s32.totalorder %s225, %s226
      %p235 = scmp.eq.s32.totalorder %s32, 0
      %p236 = por %p234, %p235
      %p237 = scmp.ne.s32.totalorder %s225, %s226
      %p238 = scmp.eq.s32.totalorder %s33, 5
      %p239 = por %p237, %p238
      %p241 = scmp.ne.s32.totalorder %s226, %s240
      %p242 = scmp.eq.s32.totalorder %s33, 0
      %p243 = por %p241, %p242
      %s245 = sadd.s32 %s244, 1
      %p248 = scmp.eq.s32.totalorder %s27, 5
      %p249 = scmp.ne.s32.totalorder %s244, %s246
      %p250 = scmp.eq.s32.totalorder %s27, 0
      %p251 = por %p249, %p250
      %p252 = scmp.ne.s32.totalorder %s244, %s246
      %p253 = scmp.eq.s32.totalorder %s32, 5
      %p254 = por %p252, %p253
      %p255 = scmp.ne.s32.totalorder %s246, %s247
      %p256 = scmp.eq.s32.totalorder %s32, 0
      %p257 = por %p255, %p256
      %p258 = scmp.ne.s32.totalorder %s246, %s247
      %p259 = scmp.eq.s32.totalorder %s33, 5
      %p260 = por %p258, %p259
      %p262 = scmp.ne.s32.totalorder %s247, %s261
      %p263 = scmp.eq.s32.totalorder %s33, 0
      %p264 = por %p262, %p263
      %s266 = sadd.s32 %s265, 1
      %p269 = scmp.eq.s32.totalorder %s27, 5
      %p270 = scmp.ne.s32.totalorder %s265, %s267
      %p271 = scmp.eq.s32.totalorder %s27, 0
      %p272 = por %p270, %p271
      %p273 = scmp.ne.s32.totalorder %s265, %s267
      %p274 = scmp.eq.s32.totalorder %s32, 5
      %p275 = por %p273, %p274
      %p276 = scmp.ne.s32.totalorder %s267, %s268
      %p277 = scmp.eq.s32.totalorder %s32, 0
      %p278 = por %p276, %p277
      %p279 = scmp.ne.s32.totalorder %s267, %s268
      %p280 = scmp.eq.s32.totalorder %s33, 5
      %p281 = por %p279, %p280
      %p283 = scmp.ne.s32.totalorder %s268, %s282
      %p284 = scmp.eq.s32.totalorder %s33, 0
      %p285 = por %p283, %p284
      %s286 = smul.u32 %s35, 3
      %s287 = sadd.s32 %s286, %s36
      %s288 = smul.u32 %s49, 3
      %s289 = sadd.s32 %s288, %s45
      %s290 = ssub.s32 %s287, %s289
      %s291 = ssub.s32 %s34, %s53
      %s292 = sor.u32 %s290, %s291
      %p293 = scmp.eq.s32.totalorder %s292, 0
      %s295 = sadd.s32 %s294, 1
      %s296 = scalar_select %p293, %s294, %s295
      %p299 = pneg %p293
      %p300 = scmp.eq.s32.totalorder %s27, 5
      %p301 = por %p299, %p300
      %p302 = scmp.ne.s32.totalorder %s294, %s297
      %p303 = scmp.eq.s32.totalorder %s27, 0
      %p304 = por %p302, %p303
      %p305 = scmp.ne.s32.totalorder %s294, %s297
      %p306 = scmp.eq.s32.totalorder %s32, 5
      %p307 = por %p305, %p306
      %p308 = scmp.ne.s32.totalorder %s297, %s298
      %p309 = scmp.eq.s32.totalorder %s32, 0
      %p310 = por %p308, %p309
      %p311 = scmp.ne.s32.totalorder %s297, %s298
      %p312 = scmp.eq.s32.totalorder %s33, 5
      %p313 = por %p311, %p312
      %p315 = scmp.ne.s32.totalorder %s298, %s314
      %p316 = scmp.eq.s32.totalorder %s33, 0
      %p317 = por %p315, %p316
      %p318 = scmp.le.s32.totalorder 1, %s27
      %p319 = scmp.lt.s32.totalorder %s27, 7
      %p320 = pnand %p318, %p319
      %p321 = pneg %p320
      // Predicated region
      $region9: #{tpu_custom_call.1} parent=5 // pred_check
        _
      $region10: #{tpu_custom_call.1} parent=5 // pred_check_branch
        %323 = sbr.rel (%p320) target = $region12
      $region11: #{tpu_custom_call.1} parent=5 // pred_region
        %s324 = ssub.s32 %s27, 1
        // Predicated region
        $region13: #{tpu_custom_call.1} parent=11 // pred_check
          %p325 = pneg %p72
        $region14: #{tpu_custom_call.1} parent=11 // pred_check_branch
          %327 = sbr.rel (%p325) target = $region16
        $region15: #{tpu_custom_call.1} parent=11 // pred_region
          %s329 = ssub.s32 128, 128
          %330 = vsyncadd [#allocation11], %s329
          %s331 = smul.addr %s37, 128
          %s332 = scalar_lea.hbm %s0, %s331
          %s334 = sshll.u32 [#allocation10], 4
          %s335 = int_to_ptr.vmem [resolvable:$true] %s334
          %337 = dma.hbm_to_vmem [thread:$0]  %s332, 128, %s335, [#allocation11]
        $region16: #{tpu_custom_call.1} parent=11 // pred_fallthru
          _
        // Predicated region
        $region17: #{tpu_custom_call.1} parent=11 // pred_check
          %p338 = pneg %p126
        $region18: #{tpu_custom_call.1} parent=11 // pred_check_branch
          %340 = sbr.rel (%p338) target = $region20
        $region19: #{tpu_custom_call.1} parent=11 // pred_region
          %s341 = smul.u32 8, %s37
          %p342 = scmp.lt.s32.totalorder %s341, 7
          %s343 = scalar_select %p342, %s341, 7
          %s344 = smul.addr %s343, 8
          %s345 = scalar_lea.vmem %s2, %s344
          %s346 = smul.u32 8, %s37
        $region20: #{tpu_custom_call.1} parent=11 // pred_fallthru
          _
        // Predicated region
        $region21: #{tpu_custom_call.1} parent=11 // pred_check
          %p347 = pneg %p152
        $region22: #{tpu_custom_call.1} parent=11 // pred_check_branch
          %349 = sbr.rel (%p347) target = $region24
        $region23: #{tpu_custom_call.1} parent=11 // pred_region
          %s351 = ssub.s32 128, 128
          %352 = vsyncadd [#allocation14], %s351
          %s353 = smul.addr %s37, 128
          %s354 = scalar_lea.hbm %s3, %s353
          %s356 = sshll.u32 [#allocation15], 4
          %s357 = int_to_ptr.vmem [resolvable:$true] %s356
          %359 = dma.hbm_to_vmem [thread:$0]  %s354, 128, %s357, [#allocation14]
        $region24: #{tpu_custom_call.1} parent=11 // pred_fallthru
          _
        // Predicated region
        $region25: #{tpu_custom_call.1} parent=11 // pred_check
          %p360 = pneg %p173
        $region26: #{tpu_custom_call.1} parent=11 // pred_check_branch
          %362 = sbr.rel (%p360) target = $region28
        $region27: #{tpu_custom_call.1} parent=11 // pred_region
          _
        $region28: #{tpu_custom_call.1} parent=11 // pred_fallthru
          _
        // Predicated region
        $region29: #{tpu_custom_call.1} parent=11 // pred_check
          %p363 = pneg %p194
        $region30: #{tpu_custom_call.1} parent=11 // pred_check_branch
          %365 = sbr.rel (%p363) target = $region32
        $region31: #{tpu_custom_call.1} parent=11 // pred_region
          %s367 = ssub.s32 512, 512
          %368 = vsyncadd [#allocation17], %s367
          %s369 = sshll.u32 [#allocation16], 4
          %s370 = int_to_ptr.vmem [resolvable:$true] %s369
          %375 = dma.hbm_to_vmem [thread:$0]  %s6, 512, %s370, [#allocation17], 128, 128, 8
        $region32: #{tpu_custom_call.1} parent=11 // pred_fallthru
          _
        // Predicated region
        $region33: #{tpu_custom_call.1} parent=11 // pred_check
          %p376 = pneg %p215
        $region34: #{tpu_custom_call.1} parent=11 // pred_check_branch
          %378 = sbr.rel (%p376) target = $region36
        $region35: #{tpu_custom_call.1} parent=11 // pred_region
          _
        $region36: #{tpu_custom_call.1} parent=11 // pred_fallthru
          _
        // Predicated region
        $region37: #{tpu_custom_call.1} parent=11 // pred_check
          %p379 = pneg %p236
        $region38: #{tpu_custom_call.1} parent=11 // pred_check_branch
          %381 = sbr.rel (%p379) target = $region40
        $region39: #{tpu_custom_call.1} parent=11 // pred_region
          _
        $region40: #{tpu_custom_call.1} parent=11 // pred_fallthru
          _
        // Predicated region
        $region41: #{tpu_custom_call.1} parent=11 // pred_check
          %p382 = pneg %p257
        $region42: #{tpu_custom_call.1} parent=11 // pred_check_branch
          %384 = sbr.rel (%p382) target = $region44
        $region43: #{tpu_custom_call.1} parent=11 // pred_region
          _
        $region44: #{tpu_custom_call.1} parent=11 // pred_fallthru
          _
        // Predicated region
        $region45: #{tpu_custom_call.1} parent=11 // pred_check
          %p385 = pneg %p278
        $region46: #{tpu_custom_call.1} parent=11 // pred_check_branch
          %387 = sbr.rel (%p385) target = $region48
        $region47: #{tpu_custom_call.1} parent=11 // pred_region
          _
        $region48: #{tpu_custom_call.1} parent=11 // pred_fallthru
          _
      $region12: #{tpu_custom_call.1} parent=5 // pred_fallthru
        _
      %p388 = scmp.lt.s32.totalorder %s27, 6
      // Predicated region
      $region49: #{tpu_custom_call.1} parent=5 // pred_check
        %p389 = pneg %p388
      $region50: #{tpu_custom_call.1} parent=5 // pred_check_branch
        %391 = sbr.rel (%p389) target = $region52
      $region51: #{tpu_custom_call.1} parent=5 // pred_region
        // Predicated region
        $region53: #{tpu_custom_call.1} parent=51 // pred_check
          %p392 = pneg %p94
        $region54: #{tpu_custom_call.1} parent=51 // pred_check_branch
          %394 = sbr.rel (%p392) target = $region56
        $region55: #{tpu_custom_call.1} parent=51 // pred_region
          %s395 = sand.u32 %s27, 1
          %s396 = scalar_lea.sflag [#allocation14], %s395
          %s397 = sand.u32 %s84, 1
          %s398 = smul.addr %s397, 8
          %s399 = scalar_lea.vmem [#allocation13], %s398
          %s401 = ssub.s32 128, 128
          %402 = vsyncadd %s396, %s401
          %s403 = sadd.s32 %s34, %s35
          %s404 = smul.addr %s403, 128
          %s405 = scalar_lea.hbm %s1, %s404
          %s407 = sshll.u32 %s399, 4
          %s408 = int_to_ptr.vmem [resolvable:$true] %s407
          %410 = dma.hbm_to_vmem [thread:$0]  %s405, 128, %s408, %s396
        $region56: #{tpu_custom_call.1} parent=51 // pred_fallthru
          _
      $region52: #{tpu_custom_call.1} parent=5 // pred_fallthru
        _
      %p411 = scmp.le.s32.totalorder 1, %s27
      %p412 = scmp.lt.s32.totalorder %s27, 7
      %p413 = pnand %p411, %p412
      %p414 = pneg %p413
      // Predicated region
      $region57: #{tpu_custom_call.1} parent=5 // pred_check
        _
      $region58: #{tpu_custom_call.1} parent=5 // pred_check_branch
        %416 = sbr.rel (%p413) target = $region60
      $region59: #{tpu_custom_call.1} parent=5 // pred_region
        %s417 = ssub.s32 %s27, 1
        // Predicated region
        $region61: #{tpu_custom_call.1} parent=59 // pred_check
          %p418 = pneg %p72
        $region62: #{tpu_custom_call.1} parent=59 // pred_check_branch
          %420 = sbr.rel (%p418) target = $region64
        $region63: #{tpu_custom_call.1} parent=59 // pred_region
          %421 = dma.done [#allocation11], 128
        $region64: #{tpu_custom_call.1} parent=59 // pred_fallthru
          _
        %s422 = sand.u32 %s32, 1
        %s423 = scalar_lea.sflag [#allocation14], %s422
        %s424 = sand.u32 %s87, 1
        %s425 = smul.addr %s424, 8
        %s426 = scalar_lea.vmem [#allocation13], %s425
        // Predicated region
        $region65: #{tpu_custom_call.1} parent=59 // pred_check
          %p427 = pneg %p100
        $region66: #{tpu_custom_call.1} parent=59 // pred_check_branch
          %429 = sbr.rel (%p427) target = $region68
        $region67: #{tpu_custom_call.1} parent=59 // pred_region
          %430 = dma.done %s423, 128
        $region68: #{tpu_custom_call.1} parent=59 // pred_fallthru
          _
        // Predicated region
        $region69: #{tpu_custom_call.1} parent=59 // pred_check
          %p431 = pneg %p152
        $region70: #{tpu_custom_call.1} parent=59 // pred_check_branch
          %433 = sbr.rel (%p431) target = $region72
        $region71: #{tpu_custom_call.1} parent=59 // pred_region
          %434 = dma.done [#allocation14], 128
        $region72: #{tpu_custom_call.1} parent=59 // pred_fallthru
          _
        // Predicated region
        $region73: #{tpu_custom_call.1} parent=59 // pred_check
          %p435 = pneg %p194
        $region74: #{tpu_custom_call.1} parent=59 // pred_check_branch
          %437 = sbr.rel (%p435) target = $region76
        $region75: #{tpu_custom_call.1} parent=59 // pred_region
          %438 = dma.done [#allocation17], 512
        $region76: #{tpu_custom_call.1} parent=59 // pred_fallthru
          _
        %p439 = pneg %p72
        %p440 = pneg %p69
        %s441 = sand.u32 %s32, 1
        %s442 = scalar_lea.sflag [#allocation14], %s441
        %s443 = sand.u32 %s87, 1
        %s444 = smul.addr %s443, 8
        %s445 = scalar_lea.vmem [#allocation13], %s444
        %p446 = pneg %p100
        %p447 = pneg %p97
        %s448 = smul.u32 8, %s37
        %p449 = scmp.lt.s32.totalorder %s448, 7
        %s450 = scalar_select %p449, %s448, 7
        %s451 = smul.addr %s450, 8
        %s452 = scalar_lea.vmem %s2, %s451
        %p453 = pneg %p126
        %p454 = pneg %p123
        %p455 = pneg %p152
        %p456 = pneg %p149
        %p457 = pneg %p173
        %p458 = pneg %p170
        %p459 = pneg %p194
        %p460 = pneg %p191
        %p461 = pneg %p215
        %p462 = pneg %p212
        %p463 = pneg %p236
        %p464 = pneg %p233
        %p465 = pneg %p257
        %p466 = pneg %p254
        %p467 = pneg %p278
        %p468 = pneg %p275
        %p469 = pneg %p310
        %p470 = pneg %p307
        %s471 = sand.u32 %s297, 1
        %s472 = scalar_lea.sflag [#allocation12], %s471
        %s473 = sand.u32 %s297, 1
        %s474 = smul.addr %s473, 8
        %s475 = scalar_lea.vmem [#allocation18], %s474
        %s476 = smul.u32 8, %s37
        %p477 = scmp.lt.s32.totalorder %s476, 7
        %s478 = scalar_select %p477, %s476, 7
        %s479 = smul.addr %s478, 8
        %s480 = scalar_lea.vmem %s2, %s479
        %s481 = smul.u32 8, %s37
        %s482 = smul.u32 %s38, 3
        %s483 = sadd.s32 %s482, %s39
        %p485 = scmp.eq.s32.totalorder %s38, 0
        %p486 = scmp.eq.s32.totalorder %s39, 0
        %p487 = pnand %p485, %p486
        %p488 = pneg %p487
        // Predicated region
        $region77: #{tpu_custom_call.1} parent=59 // pred_check
          _
        $region78: #{tpu_custom_call.1} parent=59 // pred_check_branch
          %490 = sbr.rel (%p487) target = $region80
        $region79: #{tpu_custom_call.1} parent=59 // pred_region
          %p492 = scmp.lt.u32.totalorder 64, 8
          %p493 = pneg %p492
          // Predicated region
          $region81: #{tpu_custom_call.1} parent=79 // pred_check
            _
          $region82: #{tpu_custom_call.1} parent=79 // pred_check_branch
            %495 = sbr.rel (%p492) target = $region84
          $region83: #{tpu_custom_call.1} parent=79 // pred_region
            %s510 = sand.u32 64, 7
            %p511 = scmp.eq.s32.totalorder %s510, 0
            // Predicated region
            $region96: #{tpu_custom_call.1} parent=83 // pred_check
              %p512 = pneg %p511
            $region97: #{tpu_custom_call.1} parent=83 // pred_check_branch
              %514 = sbr.rel (%p512) target = $region99
            $region98: #{tpu_custom_call.1} parent=83 // pred_region
              loop: start=0, step=1, limit=1
              $region100: #{tpu_custom_call.1} parent=98 // loop_pre_header
                _
              $region101: #{tpu_custom_call.1} parent=98 // loop_header
                %s516 = sphi 0, %s520
                %p517 = scmp.ge.s32.totalorder %s516, 1
                %s521 = sphi %s4, %s4
                %s522 = sphi [#allocation4], [#allocation4]
              $region102: #{tpu_custom_call.1} parent=98 // loop_header_branch
                %519 = sbr.rel (%p517) target = $region106
              $region103: #{tpu_custom_call.1} parent=98 // loop_body
                %v523 = vld [vmem:[%s521] sm:$0xff]
                %524 = vst [vmem:[%s522] sm:$0xff] %v523
                %v525 = vld [vmem:[%s521 + $0x8] sm:$0xff]
                %526 = vst [vmem:[%s522 + $0x8] sm:$0xff] %v525
                %v527 = vld [vmem:[%s521 + $0x10] sm:$0xff]
                %528 = vst [vmem:[%s522 + $0x10] sm:$0xff] %v527
                %v529 = vld [vmem:[%s521 + $0x18] sm:$0xff]
                %530 = vst [vmem:[%s522 + $0x18] sm:$0xff] %v529
                %v531 = vld [vmem:[%s521 + $0x20] sm:$0xff]
                %532 = vst [vmem:[%s522 + $0x20] sm:$0xff] %v531
                %v533 = vld [vmem:[%s521 + $0x28] sm:$0xff]
                %534 = vst [vmem:[%s522 + $0x28] sm:$0xff] %v533
                %v535 = vld [vmem:[%s521 + $0x30] sm:$0xff]
                %536 = vst [vmem:[%s522 + $0x30] sm:$0xff] %v535
                %v537 = vld [vmem:[%s521 + $0x38] sm:$0xff]
                %538 = vst [vmem:[%s522 + $0x38] sm:$0xff] %v537
              $region104: #{tpu_custom_call.1} parent=98 // loop_footer
                %s520 = sadd.s32 1, %s516
              $region105: #{tpu_custom_call.1} parent=98 // loop_footer_branch
                %515 = sbr.rel target = $region101
              $region106: #{tpu_custom_call.1} parent=98 // loop_exit
                _
            $region99: #{tpu_custom_call.1} parent=83 // pred_fallthru
              _
            %p539 = pneg %p511
            // Predicated region
            $region107: #{tpu_custom_call.1} parent=83 // pred_check
              _
            $region108: #{tpu_custom_call.1} parent=83 // pred_check_branch
              %541 = sbr.rel (%p511) target = $region110
            $region109: #{tpu_custom_call.1} parent=83 // pred_region
              %s542 = sand.u32 64, 7
            $region110: #{tpu_custom_call.1} parent=83 // pred_fallthru
              _
          $region84: #{tpu_custom_call.1} parent=79 // pred_fallthru
            _
          // Predicated region
          $region85: #{tpu_custom_call.1} parent=79 // pred_check
            %p496 = pneg %p492
          $region86: #{tpu_custom_call.1} parent=79 // pred_check_branch
            %498 = sbr.rel (%p496) target = $region88
          $region87: #{tpu_custom_call.1} parent=79 // pred_region
            %s499 = sshllo.u32 0, 64
            loop: start=0, step=1, limit=1
            $region89: #{tpu_custom_call.1} parent=87 // loop_pre_header
              _
            $region90: #{tpu_custom_call.1} parent=87 // loop_header
              %s501 = sphi 0, %s505
              %p502 = scmp.ge.s32.totalorder %s501, 1
              %s506 = sphi %s4, %s4
              %s507 = sphi [#allocation4], [#allocation4]
            $region91: #{tpu_custom_call.1} parent=87 // loop_header_branch
              %504 = sbr.rel (%p502) target = $region95
            $region92: #{tpu_custom_call.1} parent=87 // loop_body
              %v508 = vld [vmem:[%s506] sm:%s499]
              %509 = vst [vmem:[%s507] sm:%s499] %v508
            $region93: #{tpu_custom_call.1} parent=87 // loop_footer
              %s505 = sadd.s32 1, %s501
            $region94: #{tpu_custom_call.1} parent=87 // loop_footer_branch
              %500 = sbr.rel target = $region90
            $region95: #{tpu_custom_call.1} parent=87 // loop_exit
              _
          $region88: #{tpu_custom_call.1} parent=79 // pred_fallthru
            _
          // Predicated region
          $region111: #{tpu_custom_call.1} parent=79 // pred_check
            _
          $region112: #{tpu_custom_call.1} parent=79 // pred_check_branch
            %545 = sbr.rel (0) target = $region114
          $region113: #{tpu_custom_call.1} parent=79 // pred_region
            %546 = vsyncadd [#allocation8], 1024
          $region114: #{tpu_custom_call.1} parent=79 // pred_fallthru
            _
          %v547 = vld [vmem:[#allocation10] sm:$0xff]
          %v548 = vlaneseq
          %v549 = vand.u32 %v548, 127
          %v550 = vlaneseq
          %v551 = vshrl.u32 %v550, 7
          %v552 = vsub.s32 0, %v551
          %v553 = vrot.slane %v547, %v552
          %555 = vbcast.lane.b32.xlu0 %v553, 256
          %v556 = vpop.permute.xlu0 %555
          %v557 = vlaneseq
          %v558 = vshrl.u32 %v557, 7
          %v559 = vsub.s32 1, %v558
          %v560 = vrot.slane %v547, %v559
          %562 = vbcast.lane.b32.xlu0 %v560, 256
          %v563 = vpop.permute.xlu0 %562
          %v564 = vlaneseq
          %v565 = vshrl.u32 %v564, 7
          %v566 = vsub.s32 2, %v565
          %v567 = vrot.slane %v547, %v566
          %569 = vbcast.lane.b32.xlu0 %v567, 256
          %v570 = vpop.permute.xlu0 %569
          %v571 = vlaneseq
          %v572 = vshrl.u32 %v571, 7
          %v573 = vsub.s32 3, %v572
          %v574 = vrot.slane %v547, %v573
          %576 = vbcast.lane.b32.xlu0 %v574, 256
          %v577 = vpop.permute.xlu0 %576
          %v578 = vlaneseq
          %v579 = vshrl.u32 %v578, 7
          %v580 = vsub.s32 4, %v579
          %v581 = vrot.slane %v547, %v580
          %583 = vbcast.lane.b32.xlu0 %v581, 256
          %v584 = vpop.permute.xlu0 %583
          %v585 = vlaneseq
          %v586 = vshrl.u32 %v585, 7
          %v587 = vsub.s32 5, %v586
          %v588 = vrot.slane %v547, %v587
          %590 = vbcast.lane.b32.xlu0 %v588, 256
          %v591 = vpop.permute.xlu0 %590
          %v592 = vlaneseq
          %v593 = vshrl.u32 %v592, 7
          %v594 = vsub.s32 6, %v593
          %v595 = vrot.slane %v547, %v594
          %597 = vbcast.lane.b32.xlu0 %v595, 256
          %v598 = vpop.permute.xlu0 %597
          %v599 = vlaneseq
          %v600 = vshrl.u32 %v599, 7
          %v601 = vsub.s32 7, %v600
          %v602 = vrot.slane %v547, %v601
          %604 = vbcast.lane.b32.xlu0 %v602, 256
          %v605 = vpop.permute.xlu0 %604
          %vm606 = vcmp.eq.s32.totalorder %v556, %v549
          %vm607 = vcmp.eq.s32.totalorder %v563, %v549
          %vm608 = vcmp.eq.s32.totalorder %v570, %v549
          %vm609 = vcmp.eq.s32.totalorder %v577, %v549
          %vm610 = vcmp.eq.s32.totalorder %v584, %v549
          %vm611 = vcmp.eq.s32.totalorder %v591, %v549
          %vm612 = vcmp.eq.s32.totalorder %v598, %v549
          %vm613 = vcmp.eq.s32.totalorder %v605, %v549
          %v614 = vsel %vm606, 1, 0
          %v615 = vsel %vm607, 1, 0
          %v616 = vsel %vm608, 1, 0
          %v617 = vsel %vm609, 1, 0
          %v618 = vsel %vm610, 1, 0
          %v619 = vsel %vm611, 1, 0
          %v620 = vsel %vm612, 1, 0
          %v621 = vsel %vm613, 1, 0
          %v622 = vcvt.s32.f32 %v614
          %v623 = vcvt.s32.f32 %v615
          %v624 = vcvt.s32.f32 %v616
          %v625 = vcvt.s32.f32 %v617
          %v626 = vcvt.s32.f32 %v618
          %v627 = vcvt.s32.f32 %v619
          %v628 = vcvt.s32.f32 %v620
          %v629 = vcvt.s32.f32 %v621
          %v630 = vpack.c.bf16 %v622, %v622
          %v631 = vpack.c.bf16 %v623, %v623
          %v632 = vpack.c.bf16 %v624, %v624
          %v633 = vpack.c.bf16 %v625, %v625
          %v634 = vpack.c.bf16 %v626, %v626
          %v635 = vpack.c.bf16 %v627, %v627
          %v636 = vpack.c.bf16 %v628, %v628
          %v637 = vpack.c.bf16 %v629, %v629
          %638 = vst [vmem:[#allocation5] sm:$0xf] %v630
          %639 = vst [vmem:[#allocation5 + $0x4] sm:$0xf] %v631
          %640 = vst [vmem:[#allocation5 + $0x8] sm:$0xf] %v632
          %641 = vst [vmem:[#allocation5 + $0xc] sm:$0xf] %v633
          %642 = vst [vmem:[#allocation5 + $0x10] sm:$0xf] %v634
          %643 = vst [vmem:[#allocation5 + $0x14] sm:$0xf] %v635
          %644 = vst [vmem:[#allocation5 + $0x18] sm:$0xf] %v636
          %645 = vst [vmem:[#allocation5 + $0x1c] sm:$0xf] %v637
          %v646 = vcombine.high %v547, %v547
          %v648 = vunpack.c.l.s4 1966171168
          %v649 = vunpack.c.0.s8 %v648
          %v650 = vlaneseq
          %v651 = vshrl.u32 %v650, 7
          %v652 = vsub.s32 %v649, %v651
          %v653 = vrot.slane %v547, %v652
          %v655 = vunpack.c.l.s4 1966171168
          %v656 = vunpack.c.0.s8 %v655
          %v657 = vlaneseq
          %v658 = vshrl.u32 %v657, 7
          %v659 = vsub.s32 %v656, %v658
          %v660 = vrot.slane %v646, %v659
          %v661 = vcombine.high %v653, %v653
          %v662 = vcombine.high %v660, %v660
          %v664 = vunpack.c.l.s4 1966171168
          %v665 = vunpack.c.0.s8 %v664
          %v666 = vlaneseq
          %v667 = vshrl.u32 %v666, 7
          %v668 = vsub.s32 %v665, %v667
          %v669 = vrot.slane %v653, %v668
          %v671 = vunpack.c.l.s4 1966171168
          %v672 = vunpack.c.0.s8 %v671
          %v673 = vlaneseq
          %v674 = vshrl.u32 %v673, 7
          %v675 = vsub.s32 %v672, %v674
          %v676 = vrot.slane %v660, %v675
          %v678 = vunpack.c.l.s4 1966171168
          %v679 = vunpack.c.0.s8 %v678
          %v680 = vlaneseq
          %v681 = vshrl.u32 %v680, 7
          %v682 = vsub.s32 %v679, %v681
          %v683 = vrot.slane %v661, %v682
          %v685 = vunpack.c.l.s4 1966171168
          %v686 = vunpack.c.0.s8 %v685
          %v687 = vlaneseq
          %v688 = vshrl.u32 %v687, 7
          %v689 = vsub.s32 %v686, %v688
          %v690 = vrot.slane %v662, %v689
          %v691 = vcombine.high %v669, %v669
          %v692 = vcombine.high %v676, %v676
          %v693 = vcombine.high %v683, %v683
          %v694 = vcombine.high %v690, %v690
          %vm695 = vcmp.eq.s32.totalorder %v669, 0
          %vm696 = vcmp.eq.s32.totalorder %v683, 0
          %vm697 = vcmp.eq.s32.totalorder %v691, 0
          %vm698 = vcmp.eq.s32.totalorder %v693, 0
          %vm699 = vcmp.eq.s32.totalorder %v676, 0
          %vm700 = vcmp.eq.s32.totalorder %v690, 0
          %vm701 = vcmp.eq.s32.totalorder %v692, 0
          %vm702 = vcmp.eq.s32.totalorder %v694, 0
          %v703 = vsel %vm695, -10000.0, 0.0
          %v704 = vsel %vm696, -10000.0, 0.0
          %v705 = vsel %vm697, -10000.0, 0.0
          %v706 = vsel %vm698, -10000.0, 0.0
          %v707 = vsel %vm699, -10000.0, 0.0
          %v708 = vsel %vm700, -10000.0, 0.0
          %v709 = vsel %vm701, -10000.0, 0.0
          %v710 = vsel %vm702, -10000.0, 0.0
          %vm711 = vcmask 57344
          %712 = vst.msk [vmem:[#allocation6] sm:$0x1] %vm711, %v703
          %713 = vst.msk [vmem:[#allocation6 + $0x1] sm:$0x1] %vm711, %v704
          %714 = vst.msk [vmem:[#allocation6 + $0x2] sm:$0x1] %vm711, %v705
          %715 = vst.msk [vmem:[#allocation6 + $0x3] sm:$0x1] %vm711, %v706
          %716 = vst.msk [vmem:[#allocation6 + $0x4] sm:$0x1] %vm711, %v707
          %717 = vst.msk [vmem:[#allocation6 + $0x5] sm:$0x1] %vm711, %v708
          %718 = vst.msk [vmem:[#allocation6 + $0x6] sm:$0x1] %vm711, %v709
          %719 = vst.msk [vmem:[#allocation6 + $0x7] sm:$0x1] %vm711, %v710
          %v720 = vld [vmem:[%s9] sm:$0x1]
          %v721 = vld [vmem:[%s480] sm:$0xff]
          %v722 = vld [vmem:[%s480 + $0x8] sm:$0xff]
          %v723 = vld [vmem:[%s480 + $0x10] sm:$0xff]
          %v724 = vld [vmem:[%s480 + $0x18] sm:$0xff]
          %v725 = vld [vmem:[%s480 + $0x20] sm:$0xff]
          %v726 = vld [vmem:[%s480 + $0x28] sm:$0xff]
          %v727 = vld [vmem:[%s480 + $0x30] sm:$0xff]
          %v728 = vld [vmem:[%s480 + $0x38] sm:$0xff]
          %v730 = vlaneseq
          %v731 = vshrl.u32 %v730, 7
          %v732 = vsub.s32 0, %v731
          %v733 = vrot.slane %v720, %v732
          %734 = vrot.lane.b32.xlu0 %v733, 64
          %v735 = vpop.permute.xlu0 %734
          %v737 = vmul.f32 %v721, %v735
          %v738 = vmul.f32 %v722, %v735
          %v739 = vmul.f32 %v723, %v735
          %v740 = vmul.f32 %v724, %v735
          %v741 = vmul.f32 %v725, %v735
          %v742 = vmul.f32 %v726, %v735
          %v743 = vmul.f32 %v727, %v735
          %v744 = vmul.f32 %v728, %v735
          %vm745 = vcmask 261120
          %v746 = vsel %vm745, %v737, 0.0
          %747 = vadd.xlane.f32.xlu0 %v746
          %v748 = vpop.xlane.xlu0 %747
          %v749 = vsel %vm745, %v738, 0.0
          %750 = vadd.xlane.f32.xlu0 %v749
          %v751 = vpop.xlane.xlu0 %750
          %v752 = vsel %vm745, %v739, 0.0
          %753 = vadd.xlane.f32.xlu0 %v752
          %v754 = vpop.xlane.xlu0 %753
          %v755 = vsel %vm745, %v740, 0.0
          %756 = vadd.xlane.f32.xlu0 %v755
          %v757 = vpop.xlane.xlu0 %756
          %v758 = vsel %vm745, %v741, 0.0
          %759 = vadd.xlane.f32.xlu0 %v758
          %v760 = vpop.xlane.xlu0 %759
          %v761 = vsel %vm745, %v742, 0.0
          %762 = vadd.xlane.f32.xlu0 %v761
          %v763 = vpop.xlane.xlu0 %762
          %v764 = vsel %vm745, %v743, 0.0
          %765 = vadd.xlane.f32.xlu0 %v764
          %v766 = vpop.xlane.xlu0 %765
          %v767 = vsel %vm745, %v744, 0.0
          %768 = vadd.xlane.f32.xlu0 %v767
          %v769 = vpop.xlane.xlu0 %768
          %v778 = vlaneseq
          %v779 = vshrl.u32 %v778, 7
          %v780 = vsub.s32 %v549, %v779
          %v781 = vrot.slane %v748, %v780
          %v782 = vlaneseq
          %v783 = vshrl.u32 %v782, 7
          %v784 = vsub.s32 %v549, %v783
          %v785 = vrot.slane %v751, %v784
          %v786 = vlaneseq
          %v787 = vshrl.u32 %v786, 7
          %v788 = vsub.s32 %v549, %v787
          %v789 = vrot.slane %v754, %v788
          %v790 = vlaneseq
          %v791 = vshrl.u32 %v790, 7
          %v792 = vsub.s32 %v549, %v791
          %v793 = vrot.slane %v757, %v792
          %v794 = vlaneseq
          %v795 = vshrl.u32 %v794, 7
          %v796 = vsub.s32 %v549, %v795
          %v797 = vrot.slane %v760, %v796
          %v798 = vlaneseq
          %v799 = vshrl.u32 %v798, 7
          %v800 = vsub.s32 %v549, %v799
          %v801 = vrot.slane %v763, %v800
          %v802 = vlaneseq
          %v803 = vshrl.u32 %v802, 7
          %v804 = vsub.s32 %v549, %v803
          %v805 = vrot.slane %v766, %v804
          %v806 = vlaneseq
          %v807 = vshrl.u32 %v806, 7
          %v808 = vsub.s32 %v549, %v807
          %v809 = vrot.slane %v769, %v808
          %818 = vst.msk [vmem:[#allocation7] sm:$0x1] %vm711, %v781
          %819 = vst.msk [vmem:[#allocation7 + $0x1] sm:$0x1] %vm711, %v785
          %820 = vst.msk [vmem:[#allocation7 + $0x2] sm:$0x1] %vm711, %v789
          %821 = vst.msk [vmem:[#allocation7 + $0x3] sm:$0x1] %vm711, %v793
          %822 = vst.msk [vmem:[#allocation7 + $0x4] sm:$0x1] %vm711, %v797
          %823 = vst.msk [vmem:[#allocation7 + $0x5] sm:$0x1] %vm711, %v801
          %824 = vst.msk [vmem:[#allocation7 + $0x6] sm:$0x1] %vm711, %v805
          %825 = vst.msk [vmem:[#allocation7 + $0x7] sm:$0x1] %vm711, %v809
          %v826 = vld [vmem:[#allocation15] sm:$0xff]
          %827 = vst.msk [vmem:[#allocation2] sm:$0xff] %vm745, %v826
          %s828 = smul.u32 4, 16
          %s829 = smul.u32 %s828, 1
          %s830 = sshll.u32 %s829, 4
          %831 = dma.done [#allocation8], %s830
        $region80: #{tpu_custom_call.1} parent=59 // pred_fallthru
          _
        // Predicated region
        $region115: #{tpu_custom_call.1} parent=59 // pred_check
          %p832 = pneg %p486
        $region116: #{tpu_custom_call.1} parent=59 // pred_check_branch
          %834 = sbr.rel (%p832) target = $region118
        $region117: #{tpu_custom_call.1} parent=59 // pred_region
          %v835 = vld [vmem:[%s426] sm:$0xff]
          %vm836 = vcmask 261120
          %837 = vst.msk [vmem:[#allocation3] sm:$0xff] %vm836, %v835
        $region118: #{tpu_custom_call.1} parent=59 // pred_fallthru
          _
        %v838 = vld [vmem:[#allocation3] sm:$0xff]
        %v839 = vld [vmem:[#allocation2] sm:$0xff]
        %v840 = vld [vmem:[%s5] sm:$0xff]
        %v841 = vld [vmem:[%s5 + $0x8] sm:$0xff]
        %v842 = vld [vmem:[%s5 + $0x10] sm:$0xff]
        %v843 = vld [vmem:[%s5 + $0x18] sm:$0xff]
        %v844 = vld [vmem:[%s7] sm:$0x1]
        %v846 = vlaneseq
        %v847 = vshrl.u32 %v846, 7
        %v848 = vsub.s32 0, %v847
        %v849 = vrot.slane %v844, %v848
        %vm851 = vcmask 261120
        %v853 = vsel %vm851, %v838, 0
        %855 = vmatprep.subr.mxu0 0.0
        %856 = vmatpush1.msra.mxu0 %v840
        %857 = vmatprep.subr.mxu0 0.0
        %858 = vmatpush1.msra.mxu0 %v841
        %859 = vmatprep.subr.mxu0 0.0
        %860 = vmatpush1.msra.mxu0 %v842
        %861 = vmatprep.subr.mxu0 0.0
        %862 = vmatpush1.msra.mxu0 %v843
        %863 = vmatprep.subr.mxu0 0.0
        %864 = vmatpush1.msra.mxu0 0.0
        %865 = vmatprep.subr.mxu0 0.0
        %866 = vmatpush1.msra.mxu0 0.0
        %867 = vmatprep.subr.mxu0 0.0
        %868 = vmatpush1.msra.mxu0 0.0
        %869 = vmatprep.subr.mxu0 0.0
        %870 = vmatpush1.msra.mxu0 0.0
        %871 = vmatprep.subr.mxu0 0.0
        %872 = vmatpush1.msra.mxu0 0.0
        %873 = vmatprep.subr.mxu0 0.0
        %874 = vmatpush1.msra.mxu0 0.0
        %875 = vmatprep.subr.mxu0 0.0
        %876 = vmatpush1.msra.mxu0 0.0
        %877 = vmatprep.subr.mxu0 0.0
        %878 = vmatpush1.msra.mxu0 0.0
        %879 = vmatprep.subr.mxu0 0.0
        %880 = vmatpush1.msra.mxu0 0.0
        %881 = vmatprep.subr.mxu0 0.0
        %882 = vmatpush1.msra.mxu0 0.0
        %883 = vmatprep.subr.mxu0 0.0
        %884 = vmatpush1.msra.mxu0 0.0
        %885 = vmatprep.subr.mxu0 0.0
        %886 = vmatpush1.msra.mxu0 0.0
        %887 = vmatprep.subr.mxu0 0.0
        %888 = vmatpush1.msra.mxu0 0.0
        %889 = vmatprep.subr.mxu0 0.0
        %890 = vmatpush1.msra.mxu0 0.0
        %891 = vmatprep.subr.mxu0 0.0
        %892 = vmatpush1.msra.mxu0 0.0
        %893 = vmatprep.subr.mxu0 0.0
        %894 = vmatpush1.msra.mxu0 0.0
        %895 = vmatprep.subr.mxu0 0.0
        %896 = vmatpush1.msra.mxu0 0.0
        %897 = vmatprep.subr.mxu0 0.0
        %898 = vmatpush1.msra.mxu0 0.0
        %899 = vmatprep.subr.mxu0 0.0
        %900 = vmatpush1.msra.mxu0 0.0
        %901 = vmatprep.subr.mxu0 0.0
        %902 = vmatpush1.msra.mxu0 0.0
        %903 = vmatprep.subr.mxu0 0.0
        %904 = vmatpush1.msra.mxu0 0.0
        %905 = vmatprep.subr.mxu0 0.0
        %906 = vmatpush1.msra.mxu0 0.0
        %907 = vmatprep.subr.mxu0 0.0
        %908 = vmatpush1.msra.mxu0 0.0
        %909 = vmatprep.subr.mxu0 0.0
        %910 = vmatpush1.msra.mxu0 0.0
        %911 = vmatprep.subr.mxu0 0.0
        %912 = vmatpush1.msra.mxu0 0.0
        %913 = vmatprep.subr.mxu0 0.0
        %914 = vmatpush1.msra.mxu0 0.0
        %915 = vmatprep.subr.mxu0 0.0
        %916 = vmatpush1.msra.mxu0 0.0
        %917 = vmatprep.subr.mxu0 0.0
        %918 = vmatpush1.msra.mxu0 0.0
        %919 = vmatprep.mubr.f32.mxu0 0.0
        %920 = vmatmul.mubr.f32.gmra.mrb[0].mxu0 %v853
        %v921 = vpop.f32.mrb[0].mxu0
        %v922 = vadd.f32 %v849, %v921
        %v923 = vpop.f32.mrb[0].mxu0
        %924 = vdwg.mxu0
        %v925 = vld [vmem:[#allocation16] sm:$0xff]
        %v926 = vld [vmem:[#allocation16 + $0x8] sm:$0xff]
        %v927 = vld [vmem:[#allocation16 + $0x10] sm:$0xff]
        %v928 = vld [vmem:[#allocation16 + $0x18] sm:$0xff]
        %v929 = vld [vmem:[%s8] sm:$0x1]
        %v931 = vlaneseq
        %v932 = vshrl.u32 %v931, 7
        %v933 = vsub.s32 0, %v932
        %v934 = vrot.slane %v929, %v933
        %v937 = vsel %vm851, %v839, 0
        %939 = vmatprep.subr.mxu0 0.0
        %940 = vmatpush1.msra.mxu0 %v925
        %941 = vmatprep.subr.mxu0 0.0
        %942 = vmatpush1.msra.mxu0 %v926
        %943 = vmatprep.subr.mxu0 0.0
        %944 = vmatpush1.msra.mxu0 %v927
        %945 = vmatprep.subr.mxu0 0.0
        %946 = vmatpush1.msra.mxu0 %v928
        %947 = vmatprep.subr.mxu0 0.0
        %948 = vmatpush1.msra.mxu0 0.0
        %949 = vmatprep.subr.mxu0 0.0
        %950 = vmatpush1.msra.mxu0 0.0
        %951 = vmatprep.subr.mxu0 0.0
        %952 = vmatpush1.msra.mxu0 0.0
        %953 = vmatprep.subr.mxu0 0.0
        %954 = vmatpush1.msra.mxu0 0.0
        %955 = vmatprep.subr.mxu0 0.0
        %956 = vmatpush1.msra.mxu0 0.0
        %957 = vmatprep.subr.mxu0 0.0
        %958 = vmatpush1.msra.mxu0 0.0
        %959 = vmatprep.subr.mxu0 0.0
        %960 = vmatpush1.msra.mxu0 0.0
        %961 = vmatprep.subr.mxu0 0.0
        %962 = vmatpush1.msra.mxu0 0.0
        %963 = vmatprep.subr.mxu0 0.0
        %964 = vmatpush1.msra.mxu0 0.0
        %965 = vmatprep.subr.mxu0 0.0
        %966 = vmatpush1.msra.mxu0 0.0
        %967 = vmatprep.subr.mxu0 0.0
        %968 = vmatpush1.msra.mxu0 0.0
        %969 = vmatprep.subr.mxu0 0.0
        %970 = vmatpush1.msra.mxu0 0.0
        %971 = vmatprep.subr.mxu0 0.0
        %972 = vmatpush1.msra.mxu0 0.0
        %973 = vmatprep.subr.mxu0 0.0
        %974 = vmatpush1.msra.mxu0 0.0
        %975 = vmatprep.subr.mxu0 0.0
        %976 = vmatpush1.msra.mxu0 0.0
        %977 = vmatprep.subr.mxu0 0.0
        %978 = vmatpush1.msra.mxu0 0.0
        %979 = vmatprep.subr.mxu0 0.0
        %980 = vmatpush1.msra.mxu0 0.0
        %981 = vmatprep.subr.mxu0 0.0
        %982 = vmatpush1.msra.mxu0 0.0
        %983 = vmatprep.subr.mxu0 0.0
        %984 = vmatpush1.msra.mxu0 0.0
        %985 = vmatprep.subr.mxu0 0.0
        %986 = vmatpush1.msra.mxu0 0.0
        %987 = vmatprep.subr.mxu0 0.0
        %988 = vmatpush1.msra.mxu0 0.0
        %989 = vmatprep.subr.mxu0 0.0
        %990 = vmatpush1.msra.mxu0 0.0
        %991 = vmatprep.subr.mxu0 0.0
        %992 = vmatpush1.msra.mxu0 0.0
        %993 = vmatprep.subr.mxu0 0.0
        %994 = vmatpush1.msra.mxu0 0.0
        %995 = vmatprep.subr.mxu0 0.0
        %996 = vmatpush1.msra.mxu0 0.0
        %997 = vmatprep.subr.mxu0 0.0
        %998 = vmatpush1.msra.mxu0 0.0
        %999 = vmatprep.subr.mxu0 0.0
        %1000 = vmatpush1.msra.mxu0 0.0
        %1001 = vmatprep.subr.mxu0 0.0
        %1002 = vmatpush1.msra.mxu0 0.0
        %1003 = vmatprep.mubr.f32.mxu0 0.0
        %1004 = vmatmul.mubr.f32.gmra.mrb[0].mxu0 %v937
        %v1005 = vpop.f32.mrb[0].mxu0
        %v1006 = vadd.f32 %v934, %v1005
        %v1007 = vpop.f32.mrb[0].mxu0
        %1008 = vdwg.mxu0
        %v1009 = vadd.f32 %v922, %v1006
        %v1010 = vxor.u32 %v1009, 2147483648
        %v1011 = vmul.f32 %v1010, 1.442695
        %v1012 = vpow.pop %v1011
        %v1013 = vadd.f32 %v1012, 1.0
        %v1014 = vrcp.pop %v1013
        %v1015 = vmul.f32 1.0, %v1014
        %1017 = vrot.lane.b32.xlu0 %v1006, 64
        %v1018 = vpop.permute.xlu0 %1017
        %v1020 = vmul.f32 %v1015, %v1018
        %1022 = vrot.lane.b32.xlu0 %v1020, 64
        %v1023 = vpop.permute.xlu0 %1022
        %v1025 = vadd.f32 %v922, %v1023
        %v1026 = vtanh.pop %v1025
        %v1027 = vsub.f32 1.0, %v1015
        %1029 = vrot.lane.b32.xlu0 %v1026, 96
        %v1030 = vpop.permute.xlu0 %1029
        %v1032 = vmul.f32 %v1027, %v1030
        %1033 = vrot.lane.b32.xlu0 %v839, 32
        %v1034 = vpop.permute.xlu0 %1033
        %v1036 = vmul.f32 %v1015, %v1034
        %v1037 = vadd.f32 %v1032, %v1036
        %1039 = vrot.lane.b32.xlu0 %v1037, 96
        %v1040 = vpop.permute.xlu0 %1039
        %1042 = vst.msk [vmem:[#allocation2] sm:$0xff] %vm851, %v1040
        %v1043 = vld [vmem:[%s480] sm:$0xff]
        %v1044 = vld [vmem:[%s480 + $0x8] sm:$0xff]
        %v1045 = vld [vmem:[%s480 + $0x10] sm:$0xff]
        %v1046 = vld [vmem:[%s480 + $0x18] sm:$0xff]
        %v1047 = vld [vmem:[%s480 + $0x20] sm:$0xff]
        %v1048 = vld [vmem:[%s480 + $0x28] sm:$0xff]
        %v1049 = vld [vmem:[%s480 + $0x30] sm:$0xff]
        %v1050 = vld [vmem:[%s480 + $0x38] sm:$0xff]
        %v1051 = vcombine.high %v1037, %v1037
        %v1053 = vunpack.c.l.s4 1966171168
        %v1054 = vunpack.c.0.s8 %v1053
        %v1055 = vlaneseq
        %v1056 = vshrl.u32 %v1055, 7
        %v1057 = vsub.s32 %v1054, %v1056
        %v1058 = vrot.slane %v1037, %v1057
        %v1060 = vunpack.c.l.s4 1966171168
        %v1061 = vunpack.c.0.s8 %v1060
        %v1062 = vlaneseq
        %v1063 = vshrl.u32 %v1062, 7
        %v1064 = vsub.s32 %v1061, %v1063
        %v1065 = vrot.slane %v1051, %v1064
        %v1066 = vcombine.high %v1058, %v1058
        %v1067 = vcombine.high %v1065, %v1065
        %v1069 = vunpack.c.l.s4 1966171168
        %v1070 = vunpack.c.0.s8 %v1069
        %v1071 = vlaneseq
        %v1072 = vshrl.u32 %v1071, 7
        %v1073 = vsub.s32 %v1070, %v1072
        %v1074 = vrot.slane %v1058, %v1073
        %v1076 = vunpack.c.l.s4 1966171168
        %v1077 = vunpack.c.0.s8 %v1076
        %v1078 = vlaneseq
        %v1079 = vshrl.u32 %v1078, 7
        %v1080 = vsub.s32 %v1077, %v1079
        %v1081 = vrot.slane %v1065, %v1080
        %v1083 = vunpack.c.l.s4 1966171168
        %v1084 = vunpack.c.0.s8 %v1083
        %v1085 = vlaneseq
        %v1086 = vshrl.u32 %v1085, 7
        %v1087 = vsub.s32 %v1084, %v1086
        %v1088 = vrot.slane %v1066, %v1087
        %v1090 = vunpack.c.l.s4 1966171168
        %v1091 = vunpack.c.0.s8 %v1090
        %v1092 = vlaneseq
        %v1093 = vshrl.u32 %v1092, 7
        %v1094 = vsub.s32 %v1091, %v1093
        %v1095 = vrot.slane %v1067, %v1094
        %v1096 = vcombine.high %v1074, %v1074
        %v1097 = vcombine.high %v1081, %v1081
        %v1098 = vcombine.high %v1088, %v1088
        %v1099 = vcombine.high %v1095, %v1095
        %v1100 = vld [vmem:[#allocation6] sm:$0x1]
        %v1101 = vld [vmem:[#allocation6 + $0x1] sm:$0x1]
        %v1102 = vld [vmem:[#allocation6 + $0x2] sm:$0x1]
        %v1103 = vld [vmem:[#allocation6 + $0x3] sm:$0x1]
        %v1104 = vld [vmem:[#allocation6 + $0x4] sm:$0x1]
        %v1105 = vld [vmem:[#allocation6 + $0x5] sm:$0x1]
        %v1106 = vld [vmem:[#allocation6 + $0x6] sm:$0x1]
        %v1107 = vld [vmem:[#allocation6 + $0x7] sm:$0x1]
        %v1108 = vlaneseq
        %v1109 = vshrl.u32 %v1108, 7
        %v1110 = vsub.s32 0, %v1109
        %v1111 = vrot.slane %v1074, %v1110
        %1112 = vrot.lane.b32.xlu0 %v1111, 96
        %v1113 = vpop.permute.xlu0 %1112
        %v1114 = vsel %vm851, %v1113, 0
        %v1117 = vsel %vm851, %v1043, 0
        %1119 = vmatprep.subr.mxu0 0.0
        %1120 = vmatpush1.xpose.msra.mxu0 %v1117
        %1121 = vmatprep.subr.mxu0 0.0
        %1122 = vmatpush1.xpose.msra.mxu0 0.0
        %1123 = vmatprep.subr.mxu0 0.0
        %1124 = vmatpush1.xpose.msra.mxu0 0.0
        %1125 = vmatprep.subr.mxu0 0.0
        %1126 = vmatpush1.xpose.msra.mxu0 0.0
        %1127 = vmatprep.subr.mxu0 0.0
        %1128 = vmatpush1.xpose.msra.mxu0 0.0
        %1129 = vmatprep.subr.mxu0 0.0
        %1130 = vmatpush1.xpose.msra.mxu0 0.0
        %1131 = vmatprep.subr.mxu0 0.0
        %1132 = vmatpush1.xpose.msra.mxu0 0.0
        %1133 = vmatprep.subr.mxu0 0.0
        %1134 = vmatpush1.xpose.msra.mxu0 0.0
        %1135 = vmatprep.subr.mxu0 0.0
        %1136 = vmatpush1.xpose.msra.mxu0 0.0
        %1137 = vmatprep.subr.mxu0 0.0
        %1138 = vmatpush1.xpose.msra.mxu0 0.0
        %1139 = vmatprep.subr.mxu0 0.0
        %1140 = vmatpush1.xpose.msra.mxu0 0.0
        %1141 = vmatprep.subr.mxu0 0.0
        %1142 = vmatpush1.xpose.msra.mxu0 0.0
        %1143 = vmatprep.subr.mxu0 0.0
        %1144 = vmatpush1.xpose.msra.mxu0 0.0
        %1145 = vmatprep.subr.mxu0 0.0
        %1146 = vmatpush1.xpose.msra.mxu0 0.0
        %1147 = vmatprep.subr.mxu0 0.0
        %1148 = vmatpush1.xpose.msra.mxu0 0.0
        %1149 = vmatprep.subr.mxu0 0.0
        %1150 = vmatpush1.xpose.msra.mxu0 0.0
        %1151 = vmatprep.subr.mxu0 0.0
        %1152 = vmatpush1.xpose.msra.mxu0 0.0
        %1153 = vmatprep.subr.mxu0 0.0
        %1154 = vmatpush1.xpose.msra.mxu0 0.0
        %1155 = vmatprep.subr.mxu0 0.0
        %1156 = vmatpush1.xpose.msra.mxu0 0.0
        %1157 = vmatprep.subr.mxu0 0.0
        %1158 = vmatpush1.xpose.msra.mxu0 0.0
        %1159 = vmatprep.subr.mxu0 0.0
        %1160 = vmatpush1.xpose.msra.mxu0 0.0
        %1161 = vmatprep.subr.mxu0 0.0
        %1162 = vmatpush1.xpose.msra.mxu0 0.0
        %1163 = vmatprep.subr.mxu0 0.0
        %1164 = vmatpush1.xpose.msra.mxu0 0.0
        %1165 = vmatprep.subr.mxu0 0.0
        %1166 = vmatpush1.xpose.msra.mxu0 0.0
        %1167 = vmatprep.subr.mxu0 0.0
        %1168 = vmatpush1.xpose.msra.mxu0 0.0
        %1169 = vmatprep.subr.mxu0 0.0
        %1170 = vmatpush1.xpose.msra.mxu0 0.0
        %1171 = vmatprep.subr.mxu0 0.0
        %1172 = vmatpush1.xpose.msra.mxu0 0.0
        %1173 = vmatprep.subr.mxu0 0.0
        %1174 = vmatpush1.xpose.msra.mxu0 0.0
        %1175 = vmatprep.subr.mxu0 0.0
        %1176 = vmatpush1.xpose.msra.mxu0 0.0
        %1177 = vmatprep.subr.mxu0 0.0
        %1178 = vmatpush1.xpose.msra.mxu0 0.0
        %1179 = vmatprep.subr.mxu0 0.0
        %1180 = vmatpush1.xpose.msra.mxu0 0.0
        %1181 = vmatprep.subr.mxu0 0.0
        %1182 = vmatpush1.xpose.msra.mxu0 0.0
        %1183 = vmatprep.mubr.f32.mxu0 0.0
        %1184 = vmatmul.mubr.f32.gmra.mrb[0].mxu0 %v1114
        %v1185 = vpop.f32.mrb[0].mxu0
        %v1186 = vadd.f32 %v1100, %v1185
        %v1187 = vpop.f32.mrb[0].mxu0
        %1188 = vdwg.mxu0
        %v1189 = vlaneseq
        %v1190 = vshrl.u32 %v1189, 7
        %v1191 = vsub.s32 0, %v1190
        %v1192 = vrot.slane %v1088, %v1191
        %1193 = vrot.lane.b32.xlu0 %v1192, 96
        %v1194 = vpop.permute.xlu0 %1193
        %v1195 = vsel %vm851, %v1194, 0
        %v1198 = vsel %vm851, %v1044, 0
        %1200 = vmatprep.subr.mxu0 0.0
        %1201 = vmatpush1.xpose.msra.mxu0 %v1198
        %1202 = vmatprep.subr.mxu0 0.0
        %1203 = vmatpush1.xpose.msra.mxu0 0.0
        %1204 = vmatprep.subr.mxu0 0.0
        %1205 = vmatpush1.xpose.msra.mxu0 0.0
        %1206 = vmatprep.subr.mxu0 0.0
        %1207 = vmatpush1.xpose.msra.mxu0 0.0
        %1208 = vmatprep.subr.mxu0 0.0
        %1209 = vmatpush1.xpose.msra.mxu0 0.0
        %1210 = vmatprep.subr.mxu0 0.0
        %1211 = vmatpush1.xpose.msra.mxu0 0.0
        %1212 = vmatprep.subr.mxu0 0.0
        %1213 = vmatpush1.xpose.msra.mxu0 0.0
        %1214 = vmatprep.subr.mxu0 0.0
        %1215 = vmatpush1.xpose.msra.mxu0 0.0
        %1216 = vmatprep.subr.mxu0 0.0
        %1217 = vmatpush1.xpose.msra.mxu0 0.0
        %1218 = vmatprep.subr.mxu0 0.0
        %1219 = vmatpush1.xpose.msra.mxu0 0.0
        %1220 = vmatprep.subr.mxu0 0.0
        %1221 = vmatpush1.xpose.msra.mxu0 0.0
        %1222 = vmatprep.subr.mxu0 0.0
        %1223 = vmatpush1.xpose.msra.mxu0 0.0
        %1224 = vmatprep.subr.mxu0 0.0
        %1225 = vmatpush1.xpose.msra.mxu0 0.0
        %1226 = vmatprep.subr.mxu0 0.0
        %1227 = vmatpush1.xpose.msra.mxu0 0.0
        %1228 = vmatprep.subr.mxu0 0.0
        %1229 = vmatpush1.xpose.msra.mxu0 0.0
        %1230 = vmatprep.subr.mxu0 0.0
        %1231 = vmatpush1.xpose.msra.mxu0 0.0
        %1232 = vmatprep.subr.mxu0 0.0
        %1233 = vmatpush1.xpose.msra.mxu0 0.0
        %1234 = vmatprep.subr.mxu0 0.0
        %1235 = vmatpush1.xpose.msra.mxu0 0.0
        %1236 = vmatprep.subr.mxu0 0.0
        %1237 = vmatpush1.xpose.msra.mxu0 0.0
        %1238 = vmatprep.subr.mxu0 0.0
        %1239 = vmatpush1.xpose.msra.mxu0 0.0
        %1240 = vmatprep.subr.mxu0 0.0
        %1241 = vmatpush1.xpose.msra.mxu0 0.0
        %1242 = vmatprep.subr.mxu0 0.0
        %1243 = vmatpush1.xpose.msra.mxu0 0.0
        %1244 = vmatprep.subr.mxu0 0.0
        %1245 = vmatpush1.xpose.msra.mxu0 0.0
        %1246 = vmatprep.subr.mxu0 0.0
        %1247 = vmatpush1.xpose.msra.mxu0 0.0
        %1248 = vmatprep.subr.mxu0 0.0
        %1249 = vmatpush1.xpose.msra.mxu0 0.0
        %1250 = vmatprep.subr.mxu0 0.0
        %1251 = vmatpush1.xpose.msra.mxu0 0.0
        %1252 = vmatprep.subr.mxu0 0.0
        %1253 = vmatpush1.xpose.msra.mxu0 0.0
        %1254 = vmatprep.subr.mxu0 0.0
        %1255 = vmatpush1.xpose.msra.mxu0 0.0
        %1256 = vmatprep.subr.mxu0 0.0
        %1257 = vmatpush1.xpose.msra.mxu0 0.0
        %1258 = vmatprep.subr.mxu0 0.0
        %1259 = vmatpush1.xpose.msra.mxu0 0.0
        %1260 = vmatprep.subr.mxu0 0.0
        %1261 = vmatpush1.xpose.msra.mxu0 0.0
        %1262 = vmatprep.subr.mxu0 0.0
        %1263 = vmatpush1.xpose.msra.mxu0 0.0
        %1264 = vmatprep.mubr.f32.mxu0 0.0
        %1265 = vmatmul.mubr.f32.gmra.mrb[0].mxu0 %v1195
        %v1266 = vpop.f32.mrb[0].mxu0
        %v1267 = vadd.f32 %v1101, %v1266
        %v1268 = vpop.f32.mrb[0].mxu0
        %1269 = vdwg.mxu0
        %v1270 = vlaneseq
        %v1271 = vshrl.u32 %v1270, 7
        %v1272 = vsub.s32 0, %v1271
        %v1273 = vrot.slane %v1096, %v1272
        %1274 = vrot.lane.b32.xlu0 %v1273, 96
        %v1275 = vpop.permute.xlu0 %1274
        %v1276 = vsel %vm851, %v1275, 0
        %v1279 = vsel %vm851, %v1045, 0
        %1281 = vmatprep.subr.mxu0 0.0
        %1282 = vmatpush1.xpose.msra.mxu0 %v1279
        %1283 = vmatprep.subr.mxu0 0.0
        %1284 = vmatpush1.xpose.msra.mxu0 0.0
        %1285 = vmatprep.subr.mxu0 0.0
        %1286 = vmatpush1.xpose.msra.mxu0 0.0
        %1287 = vmatprep.subr.mxu0 0.0
        %1288 = vmatpush1.xpose.msra.mxu0 0.0
        %1289 = vmatprep.subr.mxu0 0.0
        %1290 = vmatpush1.xpose.msra.mxu0 0.0
        %1291 = vmatprep.subr.mxu0 0.0
        %1292 = vmatpush1.xpose.msra.mxu0 0.0
        %1293 = vmatprep.subr.mxu0 0.0
        %1294 = vmatpush1.xpose.msra.mxu0 0.0
        %1295 = vmatprep.subr.mxu0 0.0
        %1296 = vmatpush1.xpose.msra.mxu0 0.0
        %1297 = vmatprep.subr.mxu0 0.0
        %1298 = vmatpush1.xpose.msra.mxu0 0.0
        %1299 = vmatprep.subr.mxu0 0.0
        %1300 = vmatpush1.xpose.msra.mxu0 0.0
        %1301 = vmatprep.subr.mxu0 0.0
        %1302 = vmatpush1.xpose.msra.mxu0 0.0
        %1303 = vmatprep.subr.mxu0 0.0
        %1304 = vmatpush1.xpose.msra.mxu0 0.0
        %1305 = vmatprep.subr.mxu0 0.0
        %1306 = vmatpush1.xpose.msra.mxu0 0.0
        %1307 = vmatprep.subr.mxu0 0.0
        %1308 = vmatpush1.xpose.msra.mxu0 0.0
        %1309 = vmatprep.subr.mxu0 0.0
        %1310 = vmatpush1.xpose.msra.mxu0 0.0
        %1311 = vmatprep.subr.mxu0 0.0
        %1312 = vmatpush1.xpose.msra.mxu0 0.0
        %1313 = vmatprep.subr.mxu0 0.0
        %1314 = vmatpush1.xpose.msra.mxu0 0.0
        %1315 = vmatprep.subr.mxu0 0.0
        %1316 = vmatpush1.xpose.msra.mxu0 0.0
        %1317 = vmatprep.subr.mxu0 0.0
        %1318 = vmatpush1.xpose.msra.mxu0 0.0
        %1319 = vmatprep.subr.mxu0 0.0
        %1320 = vmatpush1.xpose.msra.mxu0 0.0
        %1321 = vmatprep.subr.mxu0 0.0
        %1322 = vmatpush1.xpose.msra.mxu0 0.0
        %1323 = vmatprep.subr.mxu0 0.0
        %1324 = vmatpush1.xpose.msra.mxu0 0.0
        %1325 = vmatprep.subr.mxu0 0.0
        %1326 = vmatpush1.xpose.msra.mxu0 0.0
        %1327 = vmatprep.subr.mxu0 0.0
        %1328 = vmatpush1.xpose.msra.mxu0 0.0
        %1329 = vmatprep.subr.mxu0 0.0
        %1330 = vmatpush1.xpose.msra.mxu0 0.0
        %1331 = vmatprep.subr.mxu0 0.0
        %1332 = vmatpush1.xpose.msra.mxu0 0.0
        %1333 = vmatprep.subr.mxu0 0.0
        %1334 = vmatpush1.xpose.msra.mxu0 0.0
        %1335 = vmatprep.subr.mxu0 0.0
        %1336 = vmatpush1.xpose.msra.mxu0 0.0
        %1337 = vmatprep.subr.mxu0 0.0
        %1338 = vmatpush1.xpose.msra.mxu0 0.0
        %1339 = vmatprep.subr.mxu0 0.0
        %1340 = vmatpush1.xpose.msra.mxu0 0.0
        %1341 = vmatprep.subr.mxu0 0.0
        %1342 = vmatpush1.xpose.msra.mxu0 0.0
        %1343 = vmatprep.subr.mxu0 0.0
        %1344 = vmatpush1.xpose.msra.mxu0 0.0
        %1345 = vmatprep.mubr.f32.mxu0 0.0
        %1346 = vmatmul.mubr.f32.gmra.mrb[0].mxu0 %v1276
        %v1347 = vpop.f32.mrb[0].mxu0
        %v1348 = vadd.f32 %v1102, %v1347
        %v1349 = vpop.f32.mrb[0].mxu0
        %1350 = vdwg.mxu0
        %v1351 = vlaneseq
        %v1352 = vshrl.u32 %v1351, 7
        %v1353 = vsub.s32 0, %v1352
        %v1354 = vrot.slane %v1098, %v1353
        %1355 = vrot.lane.b32.xlu0 %v1354, 96
        %v1356 = vpop.permute.xlu0 %1355
        %v1357 = vsel %vm851, %v1356, 0
        %v1360 = vsel %vm851, %v1046, 0
        %1362 = vmatprep.subr.mxu0 0.0
        %1363 = vmatpush1.xpose.msra.mxu0 %v1360
        %1364 = vmatprep.subr.mxu0 0.0
        %1365 = vmatpush1.xpose.msra.mxu0 0.0
        %1366 = vmatprep.subr.mxu0 0.0
        %1367 = vmatpush1.xpose.msra.mxu0 0.0
        %1368 = vmatprep.subr.mxu0 0.0
        %1369 = vmatpush1.xpose.msra.mxu0 0.0
        %1370 = vmatprep.subr.mxu0 0.0
        %1371 = vmatpush1.xpose.msra.mxu0 0.0
        %1372 = vmatprep.subr.mxu0 0.0
        %1373 = vmatpush1.xpose.msra.mxu0 0.0
        %1374 = vmatprep.subr.mxu0 0.0
        %1375 = vmatpush1.xpose.msra.mxu0 0.0
        %1376 = vmatprep.subr.mxu0 0.0
        %1377 = vmatpush1.xpose.msra.mxu0 0.0
        %1378 = vmatprep.subr.mxu0 0.0
        %1379 = vmatpush1.xpose.msra.mxu0 0.0
        %1380 = vmatprep.subr.mxu0 0.0
        %1381 = vmatpush1.xpose.msra.mxu0 0.0
        %1382 = vmatprep.subr.mxu0 0.0
        %1383 = vmatpush1.xpose.msra.mxu0 0.0
        %1384 = vmatprep.subr.mxu0 0.0
        %1385 = vmatpush1.xpose.msra.mxu0 0.0
        %1386 = vmatprep.subr.mxu0 0.0
        %1387 = vmatpush1.xpose.msra.mxu0 0.0
        %1388 = vmatprep.subr.mxu0 0.0
        %1389 = vmatpush1.xpose.msra.mxu0 0.0
        %1390 = vmatprep.subr.mxu0 0.0
        %1391 = vmatpush1.xpose.msra.mxu0 0.0
        %1392 = vmatprep.subr.mxu0 0.0
        %1393 = vmatpush1.xpose.msra.mxu0 0.0
        %1394 = vmatprep.subr.mxu0 0.0
        %1395 = vmatpush1.xpose.msra.mxu0 0.0
        %1396 = vmatprep.subr.mxu0 0.0
        %1397 = vmatpush1.xpose.msra.mxu0 0.0
        %1398 = vmatprep.subr.mxu0 0.0
        %1399 = vmatpush1.xpose.msra.mxu0 0.0
        %1400 = vmatprep.subr.mxu0 0.0
        %1401 = vmatpush1.xpose.msra.mxu0 0.0
        %1402 = vmatprep.subr.mxu0 0.0
        %1403 = vmatpush1.xpose.msra.mxu0 0.0
        %1404 = vmatprep.subr.mxu0 0.0
        %1405 = vmatpush1.xpose.msra.mxu0 0.0
        %1406 = vmatprep.subr.mxu0 0.0
        %1407 = vmatpush1.xpose.msra.mxu0 0.0
        %1408 = vmatprep.subr.mxu0 0.0
        %1409 = vmatpush1.xpose.msra.mxu0 0.0
        %1410 = vmatprep.subr.mxu0 0.0
        %1411 = vmatpush1.xpose.msra.mxu0 0.0
        %1412 = vmatprep.subr.mxu0 0.0
        %1413 = vmatpush1.xpose.msra.mxu0 0.0
        %1414 = vmatprep.subr.mxu0 0.0
        %1415 = vmatpush1.xpose.msra.mxu0 0.0
        %1416 = vmatprep.subr.mxu0 0.0
        %1417 = vmatpush1.xpose.msra.mxu0 0.0
        %1418 = vmatprep.subr.mxu0 0.0
        %1419 = vmatpush1.xpose.msra.mxu0 0.0
        %1420 = vmatprep.subr.mxu0 0.0
        %1421 = vmatpush1.xpose.msra.mxu0 0.0
        %1422 = vmatprep.subr.mxu0 0.0
        %1423 = vmatpush1.xpose.msra.mxu0 0.0
        %1424 = vmatprep.subr.mxu0 0.0
        %1425 = vmatpush1.xpose.msra.mxu0 0.0
        %1426 = vmatprep.mubr.f32.mxu0 0.0
        %1427 = vmatmul.mubr.f32.gmra.mrb[0].mxu0 %v1357
        %v1428 = vpop.f32.mrb[0].mxu0
        %v1429 = vadd.f32 %v1103, %v1428
        %v1430 = vpop.f32.mrb[0].mxu0
        %1431 = vdwg.mxu0
        %v1432 = vlaneseq
        %v1433 = vshrl.u32 %v1432, 7
        %v1434 = vsub.s32 0, %v1433
        %v1435 = vrot.slane %v1081, %v1434
        %1436 = vrot.lane.b32.xlu0 %v1435, 96
        %v1437 = vpop.permute.xlu0 %1436
        %v1438 = vsel %vm851, %v1437, 0
        %v1441 = vsel %vm851, %v1047, 0
        %1443 = vmatprep.subr.mxu0 0.0
        %1444 = vmatpush1.xpose.msra.mxu0 %v1441
        %1445 = vmatprep.subr.mxu0 0.0
        %1446 = vmatpush1.xpose.msra.mxu0 0.0
        %1447 = vmatprep.subr.mxu0 0.0
        %1448 = vmatpush1.xpose.msra.mxu0 0.0
        %1449 = vmatprep.subr.mxu0 0.0
        %1450 = vmatpush1.xpose.msra.mxu0 0.0
        %1451 = vmatprep.subr.mxu0 0.0
        %1452 = vmatpush1.xpose.msra.mxu0 0.0
        %1453 = vmatprep.subr.mxu0 0.0
        %1454 = vmatpush1.xpose.msra.mxu0 0.0
        %1455 = vmatprep.subr.mxu0 0.0
        %1456 = vmatpush1.xpose.msra.mxu0 0.0
        %1457 = vmatprep.subr.mxu0 0.0
        %1458 = vmatpush1.xpose.msra.mxu0 0.0
        %1459 = vmatprep.subr.mxu0 0.0
        %1460 = vmatpush1.xpose.msra.mxu0 0.0
        %1461 = vmatprep.subr.mxu0 0.0
        %1462 = vmatpush1.xpose.msra.mxu0 0.0
        %1463 = vmatprep.subr.mxu0 0.0
        %1464 = vmatpush1.xpose.msra.mxu0 0.0
        %1465 = vmatprep.subr.mxu0 0.0
        %1466 = vmatpush1.xpose.msra.mxu0 0.0
        %1467 = vmatprep.subr.mxu0 0.0
        %1468 = vmatpush1.xpose.msra.mxu0 0.0
        %1469 = vmatprep.subr.mxu0 0.0
        %1470 = vmatpush1.xpose.msra.mxu0 0.0
        %1471 = vmatprep.subr.mxu0 0.0
        %1472 = vmatpush1.xpose.msra.mxu0 0.0
        %1473 = vmatprep.subr.mxu0 0.0
        %1474 = vmatpush1.xpose.msra.mxu0 0.0
        %1475 = vmatprep.subr.mxu0 0.0
        %1476 = vmatpush1.xpose.msra.mxu0 0.0
        %1477 = vmatprep.subr.mxu0 0.0
        %1478 = vmatpush1.xpose.msra.mxu0 0.0
        %1479 = vmatprep.subr.mxu0 0.0
        %1480 = vmatpush1.xpose.msra.mxu0 0.0
        %1481 = vmatprep.subr.mxu0 0.0
        %1482 = vmatpush1.xpose.msra.mxu0 0.0
        %1483 = vmatprep.subr.mxu0 0.0
        %1484 = vmatpush1.xpose.msra.mxu0 0.0
        %1485 = vmatprep.subr.mxu0 0.0
        %1486 = vmatpush1.xpose.msra.mxu0 0.0
        %1487 = vmatprep.subr.mxu0 0.0
        %1488 = vmatpush1.xpose.msra.mxu0 0.0
        %1489 = vmatprep.subr.mxu0 0.0
        %1490 = vmatpush1.xpose.msra.mxu0 0.0
        %1491 = vmatprep.subr.mxu0 0.0
        %1492 = vmatpush1.xpose.msra.mxu0 0.0
        %1493 = vmatprep.subr.mxu0 0.0
        %1494 = vmatpush1.xpose.msra.mxu0 0.0
        %1495 = vmatprep.subr.mxu0 0.0
        %1496 = vmatpush1.xpose.msra.mxu0 0.0
        %1497 = vmatprep.subr.mxu0 0.0
        %1498 = vmatpush1.xpose.msra.mxu0 0.0
        %1499 = vmatprep.subr.mxu0 0.0
        %1500 = vmatpush1.xpose.msra.mxu0 0.0
        %1501 = vmatprep.subr.mxu0 0.0
        %1502 = vmatpush1.xpose.msra.mxu0 0.0
        %1503 = vmatprep.subr.mxu0 0.0
        %1504 = vmatpush1.xpose.msra.mxu0 0.0
        %1505 = vmatprep.subr.mxu0 0.0
        %1506 = vmatpush1.xpose.msra.mxu0 0.0
        %1507 = vmatprep.mubr.f32.mxu0 0.0
        %1508 = vmatmul.mubr.f32.gmra.mrb[0].mxu0 %v1438
        %v1509 = vpop.f32.mrb[0].mxu0
        %v1510 = vadd.f32 %v1104, %v1509
        %v1511 = vpop.f32.mrb[0].mxu0
        %1512 = vdwg.mxu0
        %v1513 = vlaneseq
        %v1514 = vshrl.u32 %v1513, 7
        %v1515 = vsub.s32 0, %v1514
        %v1516 = vrot.slane %v1095, %v1515
        %1517 = vrot.lane.b32.xlu0 %v1516, 96
        %v1518 = vpop.permute.xlu0 %1517
        %v1519 = vsel %vm851, %v1518, 0
        %v1522 = vsel %vm851, %v1048, 0
        %1524 = vmatprep.subr.mxu0 0.0
        %1525 = vmatpush1.xpose.msra.mxu0 %v1522
        %1526 = vmatprep.subr.mxu0 0.0
        %1527 = vmatpush1.xpose.msra.mxu0 0.0
        %1528 = vmatprep.subr.mxu0 0.0
        %1529 = vmatpush1.xpose.msra.mxu0 0.0
        %1530 = vmatprep.subr.mxu0 0.0
        %1531 = vmatpush1.xpose.msra.mxu0 0.0
        %1532 = vmatprep.subr.mxu0 0.0
        %1533 = vmatpush1.xpose.msra.mxu0 0.0
        %1534 = vmatprep.subr.mxu0 0.0
        %1535 = vmatpush1.xpose.msra.mxu0 0.0
        %1536 = vmatprep.subr.mxu0 0.0
        %1537 = vmatpush1.xpose.msra.mxu0 0.0
        %1538 = vmatprep.subr.mxu0 0.0
        %1539 = vmatpush1.xpose.msra.mxu0 0.0
        %1540 = vmatprep.subr.mxu0 0.0
        %1541 = vmatpush1.xpose.msra.mxu0 0.0
        %1542 = vmatprep.subr.mxu0 0.0
        %1543 = vmatpush1.xpose.msra.mxu0 0.0
        %1544 = vmatprep.subr.mxu0 0.0
        %1545 = vmatpush1.xpose.msra.mxu0 0.0
        %1546 = vmatprep.subr.mxu0 0.0
        %1547 = vmatpush1.xpose.msra.mxu0 0.0
        %1548 = vmatprep.subr.mxu0 0.0
        %1549 = vmatpush1.xpose.msra.mxu0 0.0
        %1550 = vmatprep.subr.mxu0 0.0
        %1551 = vmatpush1.xpose.msra.mxu0 0.0
        %1552 = vmatprep.subr.mxu0 0.0
        %1553 = vmatpush1.xpose.msra.mxu0 0.0
        %1554 = vmatprep.subr.mxu0 0.0
        %1555 = vmatpush1.xpose.msra.mxu0 0.0
        %1556 = vmatprep.subr.mxu0 0.0
        %1557 = vmatpush1.xpose.msra.mxu0 0.0
        %1558 = vmatprep.subr.mxu0 0.0
        %1559 = vmatpush1.xpose.msra.mxu0 0.0
        %1560 = vmatprep.subr.mxu0 0.0
        %1561 = vmatpush1.xpose.msra.mxu0 0.0
        %1562 = vmatprep.subr.mxu0 0.0
        %1563 = vmatpush1.xpose.msra.mxu0 0.0
        %1564 = vmatprep.subr.mxu0 0.0
        %1565 = vmatpush1.xpose.msra.mxu0 0.0
        %1566 = vmatprep.subr.mxu0 0.0
        %1567 = vmatpush1.xpose.msra.mxu0 0.0
        %1568 = vmatprep.subr.mxu0 0.0
        %1569 = vmatpush1.xpose.msra.mxu0 0.0
        %1570 = vmatprep.subr.mxu0 0.0
        %1571 = vmatpush1.xpose.msra.mxu0 0.0
        %1572 = vmatprep.subr.mxu0 0.0
        %1573 = vmatpush1.xpose.msra.mxu0 0.0
        %1574 = vmatprep.subr.mxu0 0.0
        %1575 = vmatpush1.xpose.msra.mxu0 0.0
        %1576 = vmatprep.subr.mxu0 0.0
        %1577 = vmatpush1.xpose.msra.mxu0 0.0
        %1578 = vmatprep.subr.mxu0 0.0
        %1579 = vmatpush1.xpose.msra.mxu0 0.0
        %1580 = vmatprep.subr.mxu0 0.0
        %1581 = vmatpush1.xpose.msra.mxu0 0.0
        %1582 = vmatprep.subr.mxu0 0.0
        %1583 = vmatpush1.xpose.msra.mxu0 0.0
        %1584 = vmatprep.subr.mxu0 0.0
        %1585 = vmatpush1.xpose.msra.mxu0 0.0
        %1586 = vmatprep.subr.mxu0 0.0
        %1587 = vmatpush1.xpose.msra.mxu0 0.0
        %1588 = vmatprep.mubr.f32.mxu0 0.0
        %1589 = vmatmul.mubr.f32.gmra.mrb[0].mxu0 %v1519
        %v1590 = vpop.f32.mrb[0].mxu0
        %v1591 = vadd.f32 %v1105, %v1590
        %v1592 = vpop.f32.mrb[0].mxu0
        %1593 = vdwg.mxu0
        %v1594 = vlaneseq
        %v1595 = vshrl.u32 %v1594, 7
        %v1596 = vsub.s32 0, %v1595
        %v1597 = vrot.slane %v1097, %v1596
        %1598 = vrot.lane.b32.xlu0 %v1597, 96
        %v1599 = vpop.permute.xlu0 %1598
        %v1600 = vsel %vm851, %v1599, 0
        %v1603 = vsel %vm851, %v1049, 0
        %1605 = vmatprep.subr.mxu0 0.0
        %1606 = vmatpush1.xpose.msra.mxu0 %v1603
        %1607 = vmatprep.subr.mxu0 0.0
        %1608 = vmatpush1.xpose.msra.mxu0 0.0
        %1609 = vmatprep.subr.mxu0 0.0
        %1610 = vmatpush1.xpose.msra.mxu0 0.0
        %1611 = vmatprep.subr.mxu0 0.0
        %1612 = vmatpush1.xpose.msra.mxu0 0.0
        %1613 = vmatprep.subr.mxu0 0.0
        %1614 = vmatpush1.xpose.msra.mxu0 0.0
        %1615 = vmatprep.subr.mxu0 0.0
        %1616 = vmatpush1.xpose.msra.mxu0 0.0
        %1617 = vmatprep.subr.mxu0 0.0
        %1618 = vmatpush1.xpose.msra.mxu0 0.0
        %1619 = vmatprep.subr.mxu0 0.0
        %1620 = vmatpush1.xpose.msra.mxu0 0.0
        %1621 = vmatprep.subr.mxu0 0.0
        %1622 = vmatpush1.xpose.msra.mxu0 0.0
        %1623 = vmatprep.subr.mxu0 0.0
        %1624 = vmatpush1.xpose.msra.mxu0 0.0
        %1625 = vmatprep.subr.mxu0 0.0
        %1626 = vmatpush1.xpose.msra.mxu0 0.0
        %1627 = vmatprep.subr.mxu0 0.0
        %1628 = vmatpush1.xpose.msra.mxu0 0.0
        %1629 = vmatprep.subr.mxu0 0.0
        %1630 = vmatpush1.xpose.msra.mxu0 0.0
        %1631 = vmatprep.subr.mxu0 0.0
        %1632 = vmatpush1.xpose.msra.mxu0 0.0
        %1633 = vmatprep.subr.mxu0 0.0
        %1634 = vmatpush1.xpose.msra.mxu0 0.0
        %1635 = vmatprep.subr.mxu0 0.0
        %1636 = vmatpush1.xpose.msra.mxu0 0.0
        %1637 = vmatprep.subr.mxu0 0.0
        %1638 = vmatpush1.xpose.msra.mxu0 0.0
        %1639 = vmatprep.subr.mxu0 0.0
        %1640 = vmatpush1.xpose.msra.mxu0 0.0
        %1641 = vmatprep.subr.mxu0 0.0
        %1642 = vmatpush1.xpose.msra.mxu0 0.0
        %1643 = vmatprep.subr.mxu0 0.0
        %1644 = vmatpush1.xpose.msra.mxu0 0.0
        %1645 = vmatprep.subr.mxu0 0.0
        %1646 = vmatpush1.xpose.msra.mxu0 0.0
        %1647 = vmatprep.subr.mxu0 0.0
        %1648 = vmatpush1.xpose.msra.mxu0 0.0
        %1649 = vmatprep.subr.mxu0 0.0
        %1650 = vmatpush1.xpose.msra.mxu0 0.0
        %1651 = vmatprep.subr.mxu0 0.0
        %1652 = vmatpush1.xpose.msra.mxu0 0.0
        %1653 = vmatprep.subr.mxu0 0.0
        %1654 = vmatpush1.xpose.msra.mxu0 0.0
        %1655 = vmatprep.subr.mxu0 0.0
        %1656 = vmatpush1.xpose.msra.mxu0 0.0
        %1657 = vmatprep.subr.mxu0 0.0
        %1658 = vmatpush1.xpose.msra.mxu0 0.0
        %1659 = vmatprep.subr.mxu0 0.0
        %1660 = vmatpush1.xpose.msra.mxu0 0.0
        %1661 = vmatprep.subr.mxu0 0.0
        %1662 = vmatpush1.xpose.msra.mxu0 0.0
        %1663 = vmatprep.subr.mxu0 0.0
        %1664 = vmatpush1.xpose.msra.mxu0 0.0
        %1665 = vmatprep.subr.mxu0 0.0
        %1666 = vmatpush1.xpose.msra.mxu0 0.0
        %1667 = vmatprep.subr.mxu0 0.0
        %1668 = vmatpush1.xpose.msra.mxu0 0.0
        %1669 = vmatprep.mubr.f32.mxu0 0.0
        %1670 = vmatmul.mubr.f32.gmra.mrb[0].mxu0 %v1600
        %v1671 = vpop.f32.mrb[0].mxu0
        %v1672 = vadd.f32 %v1106, %v1671
        %v1673 = vpop.f32.mrb[0].mxu0
        %1674 = vdwg.mxu0
        %v1675 = vlaneseq
        %v1676 = vshrl.u32 %v1675, 7
        %v1677 = vsub.s32 0, %v1676
        %v1678 = vrot.slane %v1099, %v1677
        %1679 = vrot.lane.b32.xlu0 %v1678, 96
        %v1680 = vpop.permute.xlu0 %1679
        %v1681 = vsel %vm851, %v1680, 0
        %v1684 = vsel %vm851, %v1050, 0
        %1686 = vmatprep.subr.mxu0 0.0
        %1687 = vmatpush1.xpose.msra.mxu0 %v1684
        %1688 = vmatprep.subr.mxu0 0.0
        %1689 = vmatpush1.xpose.msra.mxu0 0.0
        %1690 = vmatprep.subr.mxu0 0.0
        %1691 = vmatpush1.xpose.msra.mxu0 0.0
        %1692 = vmatprep.subr.mxu0 0.0
        %1693 = vmatpush1.xpose.msra.mxu0 0.0
        %1694 = vmatprep.subr.mxu0 0.0
        %1695 = vmatpush1.xpose.msra.mxu0 0.0
        %1696 = vmatprep.subr.mxu0 0.0
        %1697 = vmatpush1.xpose.msra.mxu0 0.0
        %1698 = vmatprep.subr.mxu0 0.0
        %1699 = vmatpush1.xpose.msra.mxu0 0.0
        %1700 = vmatprep.subr.mxu0 0.0
        %1701 = vmatpush1.xpose.msra.mxu0 0.0
        %1702 = vmatprep.subr.mxu0 0.0
        %1703 = vmatpush1.xpose.msra.mxu0 0.0
        %1704 = vmatprep.subr.mxu0 0.0
        %1705 = vmatpush1.xpose.msra.mxu0 0.0
        %1706 = vmatprep.subr.mxu0 0.0
        %1707 = vmatpush1.xpose.msra.mxu0 0.0
        %1708 = vmatprep.subr.mxu0 0.0
        %1709 = vmatpush1.xpose.msra.mxu0 0.0
        %1710 = vmatprep.subr.mxu0 0.0
        %1711 = vmatpush1.xpose.msra.mxu0 0.0
        %1712 = vmatprep.subr.mxu0 0.0
        %1713 = vmatpush1.xpose.msra.mxu0 0.0
        %1714 = vmatprep.subr.mxu0 0.0
        %1715 = vmatpush1.xpose.msra.mxu0 0.0
        %1716 = vmatprep.subr.mxu0 0.0
        %1717 = vmatpush1.xpose.msra.mxu0 0.0
        %1718 = vmatprep.subr.mxu0 0.0
        %1719 = vmatpush1.xpose.msra.mxu0 0.0
        %1720 = vmatprep.subr.mxu0 0.0
        %1721 = vmatpush1.xpose.msra.mxu0 0.0
        %1722 = vmatprep.subr.mxu0 0.0
        %1723 = vmatpush1.xpose.msra.mxu0 0.0
        %1724 = vmatprep.subr.mxu0 0.0
        %1725 = vmatpush1.xpose.msra.mxu0 0.0
        %1726 = vmatprep.subr.mxu0 0.0
        %1727 = vmatpush1.xpose.msra.mxu0 0.0
        %1728 = vmatprep.subr.mxu0 0.0
        %1729 = vmatpush1.xpose.msra.mxu0 0.0
        %1730 = vmatprep.subr.mxu0 0.0
        %1731 = vmatpush1.xpose.msra.mxu0 0.0
        %1732 = vmatprep.subr.mxu0 0.0
        %1733 = vmatpush1.xpose.msra.mxu0 0.0
        %1734 = vmatprep.subr.mxu0 0.0
        %1735 = vmatpush1.xpose.msra.mxu0 0.0
        %1736 = vmatprep.subr.mxu0 0.0
        %1737 = vmatpush1.xpose.msra.mxu0 0.0
        %1738 = vmatprep.subr.mxu0 0.0
        %1739 = vmatpush1.xpose.msra.mxu0 0.0
        %1740 = vmatprep.subr.mxu0 0.0
        %1741 = vmatpush1.xpose.msra.mxu0 0.0
        %1742 = vmatprep.subr.mxu0 0.0
        %1743 = vmatpush1.xpose.msra.mxu0 0.0
        %1744 = vmatprep.subr.mxu0 0.0
        %1745 = vmatpush1.xpose.msra.mxu0 0.0
        %1746 = vmatprep.subr.mxu0 0.0
        %1747 = vmatpush1.xpose.msra.mxu0 0.0
        %1748 = vmatprep.subr.mxu0 0.0
        %1749 = vmatpush1.xpose.msra.mxu0 0.0
        %1750 = vmatprep.mubr.f32.mxu0 0.0
        %1751 = vmatmul.mubr.f32.gmra.mrb[0].mxu0 %v1681
        %v1752 = vpop.f32.mrb[0].mxu0
        %v1753 = vadd.f32 %v1107, %v1752
        %v1754 = vpop.f32.mrb[0].mxu0
        %1755 = vdwg.mxu0
        %vm1756 = vcmask 57344
        %v1757 = vsel %vm1756, %v1186, -inf
        %1758 = vmax.xlane.f32.xlu0 %v1757
        %v1759 = vpop.xlane.xlu0 %1758
        %v1760 = vsel %vm1756, %v1267, -inf
        %1761 = vmax.xlane.f32.xlu0 %v1760
        %v1762 = vpop.xlane.xlu0 %1761
        %v1763 = vsel %vm1756, %v1348, -inf
        %1764 = vmax.xlane.f32.xlu0 %v1763
        %v1765 = vpop.xlane.xlu0 %1764
        %v1766 = vsel %vm1756, %v1429, -inf
        %1767 = vmax.xlane.f32.xlu0 %v1766
        %v1768 = vpop.xlane.xlu0 %1767
        %v1769 = vsel %vm1756, %v1510, -inf
        %1770 = vmax.xlane.f32.xlu0 %v1769
        %v1771 = vpop.xlane.xlu0 %1770
        %v1772 = vsel %vm1756, %v1591, -inf
        %1773 = vmax.xlane.f32.xlu0 %v1772
        %v1774 = vpop.xlane.xlu0 %1773
        %v1775 = vsel %vm1756, %v1672, -inf
        %1776 = vmax.xlane.f32.xlu0 %v1775
        %v1777 = vpop.xlane.xlu0 %1776
        %v1778 = vsel %vm1756, %v1753, -inf
        %1779 = vmax.xlane.f32.xlu0 %v1778
        %v1780 = vpop.xlane.xlu0 %1779
        %v1781 = vsub.f32 %v1186, %v1759
        %v1782 = vsub.f32 %v1267, %v1762
        %v1783 = vsub.f32 %v1348, %v1765
        %v1784 = vsub.f32 %v1429, %v1768
        %v1785 = vsub.f32 %v1510, %v1771
        %v1786 = vsub.f32 %v1591, %v1774
        %v1787 = vsub.f32 %v1672, %v1777
        %v1788 = vsub.f32 %v1753, %v1780
        %v1789 = vmul.f32 %v1781, 1.442695
        %v1790 = vpow.pop %v1789
        %v1791 = vmul.f32 %v1782, 1.442695
        %v1792 = vpow.pop %v1791
        %v1793 = vmul.f32 %v1783, 1.442695
        %v1794 = vpow.pop %v1793
        %v1795 = vmul.f32 %v1784, 1.442695
        %v1796 = vpow.pop %v1795
        %v1797 = vmul.f32 %v1785, 1.442695
        %v1798 = vpow.pop %v1797
        %v1799 = vmul.f32 %v1786, 1.442695
        %v1800 = vpow.pop %v1799
        %v1801 = vmul.f32 %v1787, 1.442695
        %v1802 = vpow.pop %v1801
        %v1803 = vmul.f32 %v1788, 1.442695
        %v1804 = vpow.pop %v1803
        %v1805 = vsel %vm1756, %v1790, 0.0
        %1806 = vadd.xlane.f32.xlu0 %v1805
        %v1807 = vpop.xlane.xlu0 %1806
        %v1808 = vsel %vm1756, %v1792, 0.0
        %1809 = vadd.xlane.f32.xlu0 %v1808
        %v1810 = vpop.xlane.xlu0 %1809
        %v1811 = vsel %vm1756, %v1794, 0.0
        %1812 = vadd.xlane.f32.xlu0 %v1811
        %v1813 = vpop.xlane.xlu0 %1812
        %v1814 = vsel %vm1756, %v1796, 0.0
        %1815 = vadd.xlane.f32.xlu0 %v1814
        %v1816 = vpop.xlane.xlu0 %1815
        %v1817 = vsel %vm1756, %v1798, 0.0
        %1818 = vadd.xlane.f32.xlu0 %v1817
        %v1819 = vpop.xlane.xlu0 %1818
        %v1820 = vsel %vm1756, %v1800, 0.0
        %1821 = vadd.xlane.f32.xlu0 %v1820
        %v1822 = vpop.xlane.xlu0 %1821
        %v1823 = vsel %vm1756, %v1802, 0.0
        %1824 = vadd.xlane.f32.xlu0 %v1823
        %v1825 = vpop.xlane.xlu0 %1824
        %v1826 = vsel %vm1756, %v1804, 0.0
        %1827 = vadd.xlane.f32.xlu0 %v1826
        %v1828 = vpop.xlane.xlu0 %1827
        %v1829 = vrcp.pop %v1807
        %v1830 = vrcp.pop %v1810
        %v1831 = vrcp.pop %v1813
        %v1832 = vrcp.pop %v1816
        %v1833 = vrcp.pop %v1819
        %v1834 = vrcp.pop %v1822
        %v1835 = vrcp.pop %v1825
        %v1836 = vrcp.pop %v1828
        %v1837 = vmul.f32 %v1790, %v1829
        %v1838 = vmul.f32 %v1792, %v1830
        %v1839 = vmul.f32 %v1794, %v1831
        %v1840 = vmul.f32 %v1796, %v1832
        %v1841 = vmul.f32 %v1798, %v1833
        %v1842 = vmul.f32 %v1800, %v1834
        %v1843 = vmul.f32 %v1802, %v1835
        %v1844 = vmul.f32 %v1804, %v1836
        %v1845 = vpack.c.bf16 %v1037, %v1037
        %v1846 = vld [vmem:[#allocation4] sm:$0xff]
        %v1847 = vld [vmem:[#allocation4 + $0x8] sm:$0xff]
        %v1848 = vld [vmem:[#allocation4 + $0x10] sm:$0xff]
        %v1849 = vld [vmem:[#allocation4 + $0x18] sm:$0xff]
        %v1850 = vld [vmem:[#allocation4 + $0x20] sm:$0xff]
        %v1851 = vld [vmem:[#allocation4 + $0x28] sm:$0xff]
        %v1852 = vld [vmem:[#allocation4 + $0x30] sm:$0xff]
        %v1853 = vld [vmem:[#allocation4 + $0x38] sm:$0xff]
        %1855 = vrot.lane.b32.xlu0 %v1845, 96
        %v1856 = vpop.permute.xlu0 %1855
        %v1858 = vsel %vm851, %v1856, 0
        %v1861 = vsel %vm851, %v1846, 0
        %v1864 = vsel %vm851, %v1847, 0
        %v1867 = vsel %vm851, %v1848, 0
        %v1870 = vsel %vm851, %v1849, 0
        %v1873 = vsel %vm851, %v1850, 0
        %v1876 = vsel %vm851, %v1851, 0
        %v1879 = vsel %vm851, %v1852, 0
        %v1882 = vsel %vm851, %v1853, 0
        %1884 = vmatprep.subr.bf16.mxu0 0
        %1885 = vmatpush1.bf16.xpose.msra.mxu0 %v1861
        %1886 = vmatprep.subr.bf16.mxu0 0
        %1887 = vmatpush1.bf16.xpose.msra.mxu0 %v1864
        %1888 = vmatprep.subr.bf16.mxu0 0
        %1889 = vmatpush1.bf16.xpose.msra.mxu0 %v1867
        %1890 = vmatprep.subr.bf16.mxu0 0
        %1891 = vmatpush1.bf16.xpose.msra.mxu0 %v1870
        %1892 = vmatprep.subr.bf16.mxu0 0
        %1893 = vmatpush1.bf16.xpose.msra.mxu0 %v1873
        %1894 = vmatprep.subr.bf16.mxu0 0
        %1895 = vmatpush1.bf16.xpose.msra.mxu0 %v1876
        %1896 = vmatprep.subr.bf16.mxu0 0
        %1897 = vmatpush1.bf16.xpose.msra.mxu0 %v1879
        %1898 = vmatprep.subr.bf16.mxu0 0
        %1899 = vmatpush1.bf16.xpose.msra.mxu0 %v1882
        %1900 = vmatprep.subr.bf16.mxu0 0
        %1901 = vmatpush1.bf16.xpose.msra.mxu0 0
        %1902 = vmatprep.subr.bf16.mxu0 0
        %1903 = vmatpush1.bf16.xpose.msra.mxu0 0
        %1904 = vmatprep.subr.bf16.mxu0 0
        %1905 = vmatpush1.bf16.xpose.msra.mxu0 0
        %1906 = vmatprep.subr.bf16.mxu0 0
        %1907 = vmatpush1.bf16.xpose.msra.mxu0 0
        %1908 = vmatprep.subr.bf16.mxu0 0
        %1909 = vmatpush1.bf16.xpose.msra.mxu0 0
        %1910 = vmatprep.subr.bf16.mxu0 0
        %1911 = vmatpush1.bf16.xpose.msra.mxu0 0
        %1912 = vmatprep.subr.bf16.mxu0 0
        %1913 = vmatpush1.bf16.xpose.msra.mxu0 0
        %1914 = vmatprep.subr.bf16.mxu0 0
        %1915 = vmatpush1.bf16.xpose.msra.mxu0 0
        %1916 = vmatprep.mubr.bf16.mxu0 0
        %1917 = vmatmul.mubr.bf16.gmra.mrb[0].mxu0 %v1858
        %v1918 = vpop.f32.mrb[0].mxu0
        %v1919 = vadd.f32 0.0, %v1918
        %v1920 = vpop.f32.mrb[0].mxu0
        %v1921 = vpop.f32.mrb[0].mxu0
        %v1922 = vpop.f32.mrb[0].mxu0
        %1923 = vdwg.mxu0
        %1924 = vmax.xlane.f32.xlu0 %v1919
        %v1925 = vpop.xlane.xlu0 %1924
        %v1926 = vsub.f32 %v1919, %v1925
        %v1927 = vmul.f32 %v1926, 1.442695
        %v1928 = vpow.pop %v1927
        %1929 = vadd.xlane.f32.xlu0 %v1928
        %v1930 = vpop.xlane.xlu0 %1929
        %v1931 = vrcp.pop %v1930
        %v1932 = vmul.f32 %v1928, %v1931
        %v1933 = vld [vmem:[%s9] sm:$0x1]
        %v1935 = vlaneseq
        %v1936 = vshrl.u32 %v1935, 7
        %v1937 = vsub.s32 0, %v1936
        %v1938 = vrot.slane %v1933, %v1937
        %v1940 = vmul.f32 %v838, %v1938
        %v1941 = vmul.f32 %v1037, %v1938
        %1943 = vrot.lane.b32.xlu0 %v1941, 96
        %v1944 = vpop.permute.xlu0 %1943
        %v1946 = vadd.f32 %v1940, %v1944
        %v1947 = vsel %vm851, %v1946, 0.0
        %1948 = vadd.xlane.f32.xlu0 %v1947
        %v1949 = vpop.xlane.xlu0 %1948
        %v1950 = vld [vmem:[#allocation7] sm:$0x1]
        %v1951 = vld [vmem:[#allocation7 + $0x1] sm:$0x1]
        %v1952 = vld [vmem:[#allocation7 + $0x2] sm:$0x1]
        %v1953 = vld [vmem:[#allocation7 + $0x3] sm:$0x1]
        %v1954 = vld [vmem:[#allocation7 + $0x4] sm:$0x1]
        %v1955 = vld [vmem:[#allocation7 + $0x5] sm:$0x1]
        %v1956 = vld [vmem:[#allocation7 + $0x6] sm:$0x1]
        %v1957 = vld [vmem:[#allocation7 + $0x7] sm:$0x1]
        %v1958 = vmul.f32 %v1837, %v1950
        %v1959 = vmul.f32 %v1838, %v1951
        %v1960 = vmul.f32 %v1839, %v1952
        %v1961 = vmul.f32 %v1840, %v1953
        %v1962 = vmul.f32 %v1841, %v1954
        %v1963 = vmul.f32 %v1842, %v1955
        %v1964 = vmul.f32 %v1843, %v1956
        %v1965 = vmul.f32 %v1844, %v1957
        %v1966 = vsel %vm1756, %v1958, 0.0
        %1967 = vadd.xlane.f32.xlu0 %v1966
        %v1968 = vpop.xlane.xlu0 %1967
        %v1969 = vsel %vm1756, %v1959, 0.0
        %1970 = vadd.xlane.f32.xlu0 %v1969
        %v1971 = vpop.xlane.xlu0 %1970
        %v1972 = vsel %vm1756, %v1960, 0.0
        %1973 = vadd.xlane.f32.xlu0 %v1972
        %v1974 = vpop.xlane.xlu0 %1973
        %v1975 = vsel %vm1756, %v1961, 0.0
        %1976 = vadd.xlane.f32.xlu0 %v1975
        %v1977 = vpop.xlane.xlu0 %1976
        %v1978 = vsel %vm1756, %v1962, 0.0
        %1979 = vadd.xlane.f32.xlu0 %v1978
        %v1980 = vpop.xlane.xlu0 %1979
        %v1981 = vsel %vm1756, %v1963, 0.0
        %1982 = vadd.xlane.f32.xlu0 %v1981
        %v1983 = vpop.xlane.xlu0 %1982
        %v1984 = vsel %vm1756, %v1964, 0.0
        %1985 = vadd.xlane.f32.xlu0 %v1984
        %v1986 = vpop.xlane.xlu0 %1985
        %v1987 = vsel %vm1756, %v1965, 0.0
        %1988 = vadd.xlane.f32.xlu0 %v1987
        %v1989 = vpop.xlane.xlu0 %1988
        %v1998 = vrot.slane %v1971, 7
        %vm1999 = vcmask 1041409
        %v2000 = vsel %vm1999, %v1998, %v1968
        %v2001 = vrot.slane %v1974, 6
        %vm2002 = vcmask 1042434
        %v2003 = vsel %vm2002, %v2001, %v2000
        %v2004 = vrot.slane %v1977, 5
        %vm2005 = vcmask 1043459
        %v2006 = vsel %vm2005, %v2004, %v2003
        %v2007 = vrot.slane %v1980, 4
        %vm2008 = vcmask 1044484
        %v2009 = vsel %vm2008, %v2007, %v2006
        %v2010 = vrot.slane %v1983, 3
        %vm2011 = vcmask 1045509
        %v2012 = vsel %vm2011, %v2010, %v2009
        %v2013 = vrot.slane %v1986, 2
        %vm2014 = vcmask 1046534
        %v2015 = vsel %vm2014, %v2013, %v2012
        %v2016 = vrot.slane %v1989, 1
        %vm2017 = vcmask 1047559
        %v2018 = vsel %vm2017, %v2016, %v2015
        %v2020 = vadd.f32 %v1949, %v2018
        %v2021 = vld [vmem:[#allocation9] sm:$0x1]
        %v2023 = vlaneseq
        %v2024 = vshrl.u32 %v2023, 7
        %v2025 = vsub.s32 0, %v2024
        %v2026 = vrot.slane %v2021, %v2025
        %v2028 = vadd.f32 %v2020, %v2026
        %v2029 = vxor.u32 %v2028, 2147483648
        %v2030 = vmul.f32 %v2029, 1.442695
        %v2031 = vpow.pop %v2030
        %v2032 = vadd.f32 %v2031, 1.0
        %v2033 = vrcp.pop %v2032
        %v2034 = vmul.f32 1.0, %v2033
        %v2035 = vpack.c.bf16 %v1837, %v1837
        %v2036 = vpack.c.bf16 %v1838, %v1838
        %v2037 = vpack.c.bf16 %v1839, %v1839
        %v2038 = vpack.c.bf16 %v1840, %v1840
        %v2039 = vpack.c.bf16 %v1841, %v1841
        %v2040 = vpack.c.bf16 %v1842, %v1842
        %v2041 = vpack.c.bf16 %v1843, %v1843
        %v2042 = vpack.c.bf16 %v1844, %v1844
        %v2043 = vld [vmem:[#allocation5] sm:$0xf]
        %v2044 = vld [vmem:[#allocation5 + $0x4] sm:$0xf]
        %v2045 = vld [vmem:[#allocation5 + $0x8] sm:$0xf]
        %v2046 = vld [vmem:[#allocation5 + $0xc] sm:$0xf]
        %v2047 = vld [vmem:[#allocation5 + $0x10] sm:$0xf]
        %v2048 = vld [vmem:[#allocation5 + $0x14] sm:$0xf]
        %v2049 = vld [vmem:[#allocation5 + $0x18] sm:$0xf]
        %v2050 = vld [vmem:[#allocation5 + $0x1c] sm:$0xf]
        %vm2051 = vcmask 64512
        %v2053 = vsel %vm2051, %v2035, 0
        %vm2055 = vcmask 1043456
        %v2057 = vsel %vm2055, %v2043, 0
        %2059 = vmatprep.subr.bf16.mxu0 0
        %2060 = vmatpush1.bf16.msra.mxu0 %v2057
        %2061 = vmatprep.subr.bf16.mxu0 0
        %2062 = vmatpush1.bf16.msra.mxu0 0
        %2063 = vmatprep.subr.bf16.mxu0 0
        %2064 = vmatpush1.bf16.msra.mxu0 0
        %2065 = vmatprep.subr.bf16.mxu0 0
        %2066 = vmatpush1.bf16.msra.mxu0 0
        %2067 = vmatprep.subr.bf16.mxu0 0
        %2068 = vmatpush1.bf16.msra.mxu0 0
        %2069 = vmatprep.subr.bf16.mxu0 0
        %2070 = vmatpush1.bf16.msra.mxu0 0
        %2071 = vmatprep.subr.bf16.mxu0 0
        %2072 = vmatpush1.bf16.msra.mxu0 0
        %2073 = vmatprep.subr.bf16.mxu0 0
        %2074 = vmatpush1.bf16.msra.mxu0 0
        %2075 = vmatprep.subr.bf16.mxu0 0
        %2076 = vmatpush1.bf16.msra.mxu0 0
        %2077 = vmatprep.subr.bf16.mxu0 0
        %2078 = vmatpush1.bf16.msra.mxu0 0
        %2079 = vmatprep.subr.bf16.mxu0 0
        %2080 = vmatpush1.bf16.msra.mxu0 0
        %2081 = vmatprep.subr.bf16.mxu0 0
        %2082 = vmatpush1.bf16.msra.mxu0 0
        %2083 = vmatprep.subr.bf16.mxu0 0
        %2084 = vmatpush1.bf16.msra.mxu0 0
        %2085 = vmatprep.subr.bf16.mxu0 0
        %2086 = vmatpush1.bf16.msra.mxu0 0
        %2087 = vmatprep.subr.bf16.mxu0 0
        %2088 = vmatpush1.bf16.msra.mxu0 0
        %2089 = vmatprep.subr.bf16.mxu0 0
        %2090 = vmatpush1.bf16.msra.mxu0 0
        %2091 = vmatprep.mubr.bf16.mxu0 0
        %2092 = vmatmul.mubr.bf16.gmra.mrb[0].mxu0 %v2053
        %v2093 = vpop.f32.mrb[0].mxu0
        %v2094 = vadd.f32 0.0, %v2093
        %v2095 = vpop.f32.mrb[0].mxu0
        %v2096 = vpop.f32.mrb[0].mxu0
        %v2097 = vpop.f32.mrb[0].mxu0
        %2098 = vdwg.mxu0
        %v2100 = vsel %vm2051, %v2036, 0
        %v2103 = vsel %vm2055, %v2044, 0
        %2105 = vmatprep.subr.bf16.mxu0 0
        %2106 = vmatpush1.bf16.msra.mxu0 %v2103
        %2107 = vmatprep.subr.bf16.mxu0 0
        %2108 = vmatpush1.bf16.msra.mxu0 0
        %2109 = vmatprep.subr.bf16.mxu0 0
        %2110 = vmatpush1.bf16.msra.mxu0 0
        %2111 = vmatprep.subr.bf16.mxu0 0
        %2112 = vmatpush1.bf16.msra.mxu0 0
        %2113 = vmatprep.subr.bf16.mxu0 0
        %2114 = vmatpush1.bf16.msra.mxu0 0
        %2115 = vmatprep.subr.bf16.mxu0 0
        %2116 = vmatpush1.bf16.msra.mxu0 0
        %2117 = vmatprep.subr.bf16.mxu0 0
        %2118 = vmatpush1.bf16.msra.mxu0 0
        %2119 = vmatprep.subr.bf16.mxu0 0
        %2120 = vmatpush1.bf16.msra.mxu0 0
        %2121 = vmatprep.subr.bf16.mxu0 0
        %2122 = vmatpush1.bf16.msra.mxu0 0
        %2123 = vmatprep.subr.bf16.mxu0 0
        %2124 = vmatpush1.bf16.msra.mxu0 0
        %2125 = vmatprep.subr.bf16.mxu0 0
        %2126 = vmatpush1.bf16.msra.mxu0 0
        %2127 = vmatprep.subr.bf16.mxu0 0
        %2128 = vmatpush1.bf16.msra.mxu0 0
        %2129 = vmatprep.subr.bf16.mxu0 0
        %2130 = vmatpush1.bf16.msra.mxu0 0
        %2131 = vmatprep.subr.bf16.mxu0 0
        %2132 = vmatpush1.bf16.msra.mxu0 0
        %2133 = vmatprep.subr.bf16.mxu0 0
        %2134 = vmatpush1.bf16.msra.mxu0 0
        %2135 = vmatprep.subr.bf16.mxu0 0
        %2136 = vmatpush1.bf16.msra.mxu0 0
        %2137 = vmatprep.mubr.bf16.mxu0 0
        %2138 = vmatmul.mubr.bf16.gmra.mrb[0].mxu0 %v2100
        %v2139 = vpop.f32.mrb[0].mxu0
        %v2140 = vadd.f32 0.0, %v2139
        %v2141 = vpop.f32.mrb[0].mxu0
        %v2142 = vpop.f32.mrb[0].mxu0
        %v2143 = vpop.f32.mrb[0].mxu0
        %2144 = vdwg.mxu0
        %v2146 = vsel %vm2051, %v2037, 0
        %v2149 = vsel %vm2055, %v2045, 0
        %2151 = vmatprep.subr.bf16.mxu0 0
        %2152 = vmatpush1.bf16.msra.mxu0 %v2149
        %2153 = vmatprep.subr.bf16.mxu0 0
        %2154 = vmatpush1.bf16.msra.mxu0 0
        %2155 = vmatprep.subr.bf16.mxu0 0
        %2156 = vmatpush1.bf16.msra.mxu0 0
        %2157 = vmatprep.subr.bf16.mxu0 0
        %2158 = vmatpush1.bf16.msra.mxu0 0
        %2159 = vmatprep.subr.bf16.mxu0 0
        %2160 = vmatpush1.bf16.msra.mxu0 0
        %2161 = vmatprep.subr.bf16.mxu0 0
        %2162 = vmatpush1.bf16.msra.mxu0 0
        %2163 = vmatprep.subr.bf16.mxu0 0
        %2164 = vmatpush1.bf16.msra.mxu0 0
        %2165 = vmatprep.subr.bf16.mxu0 0
        %2166 = vmatpush1.bf16.msra.mxu0 0
        %2167 = vmatprep.subr.bf16.mxu0 0
        %2168 = vmatpush1.bf16.msra.mxu0 0
        %2169 = vmatprep.subr.bf16.mxu0 0
        %2170 = vmatpush1.bf16.msra.mxu0 0
        %2171 = vmatprep.subr.bf16.mxu0 0
        %2172 = vmatpush1.bf16.msra.mxu0 0
        %2173 = vmatprep.subr.bf16.mxu0 0
        %2174 = vmatpush1.bf16.msra.mxu0 0
        %2175 = vmatprep.subr.bf16.mxu0 0
        %2176 = vmatpush1.bf16.msra.mxu0 0
        %2177 = vmatprep.subr.bf16.mxu0 0
        %2178 = vmatpush1.bf16.msra.mxu0 0
        %2179 = vmatprep.subr.bf16.mxu0 0
        %2180 = vmatpush1.bf16.msra.mxu0 0
        %2181 = vmatprep.subr.bf16.mxu0 0
        %2182 = vmatpush1.bf16.msra.mxu0 0
        %2183 = vmatprep.mubr.bf16.mxu0 0
        %2184 = vmatmul.mubr.bf16.gmra.mrb[0].mxu0 %v2146
        %v2185 = vpop.f32.mrb[0].mxu0
        %v2186 = vadd.f32 0.0, %v2185
        %v2187 = vpop.f32.mrb[0].mxu0
        %v2188 = vpop.f32.mrb[0].mxu0
        %v2189 = vpop.f32.mrb[0].mxu0
        %2190 = vdwg.mxu0
        %v2192 = vsel %vm2051, %v2038, 0
        %v2195 = vsel %vm2055, %v2046, 0
        %2197 = vmatprep.subr.bf16.mxu0 0
        %2198 = vmatpush1.bf16.msra.mxu0 %v2195
        %2199 = vmatprep.subr.bf16.mxu0 0
        %2200 = vmatpush1.bf16.msra.mxu0 0
        %2201 = vmatprep.subr.bf16.mxu0 0
        %2202 = vmatpush1.bf16.msra.mxu0 0
        %2203 = vmatprep.subr.bf16.mxu0 0
        %2204 = vmatpush1.bf16.msra.mxu0 0
        %2205 = vmatprep.subr.bf16.mxu0 0
        %2206 = vmatpush1.bf16.msra.mxu0 0
        %2207 = vmatprep.subr.bf16.mxu0 0
        %2208 = vmatpush1.bf16.msra.mxu0 0
        %2209 = vmatprep.subr.bf16.mxu0 0
        %2210 = vmatpush1.bf16.msra.mxu0 0
        %2211 = vmatprep.subr.bf16.mxu0 0
        %2212 = vmatpush1.bf16.msra.mxu0 0
        %2213 = vmatprep.subr.bf16.mxu0 0
        %2214 = vmatpush1.bf16.msra.mxu0 0
        %2215 = vmatprep.subr.bf16.mxu0 0
        %2216 = vmatpush1.bf16.msra.mxu0 0
        %2217 = vmatprep.subr.bf16.mxu0 0
        %2218 = vmatpush1.bf16.msra.mxu0 0
        %2219 = vmatprep.subr.bf16.mxu0 0
        %2220 = vmatpush1.bf16.msra.mxu0 0
        %2221 = vmatprep.subr.bf16.mxu0 0
        %2222 = vmatpush1.bf16.msra.mxu0 0
        %2223 = vmatprep.subr.bf16.mxu0 0
        %2224 = vmatpush1.bf16.msra.mxu0 0
        %2225 = vmatprep.subr.bf16.mxu0 0
        %2226 = vmatpush1.bf16.msra.mxu0 0
        %2227 = vmatprep.subr.bf16.mxu0 0
        %2228 = vmatpush1.bf16.msra.mxu0 0
        %2229 = vmatprep.mubr.bf16.mxu0 0
        %2230 = vmatmul.mubr.bf16.gmra.mrb[0].mxu0 %v2192
        %v2231 = vpop.f32.mrb[0].mxu0
        %v2232 = vadd.f32 0.0, %v2231
        %v2233 = vpop.f32.mrb[0].mxu0
        %v2234 = vpop.f32.mrb[0].mxu0
        %v2235 = vpop.f32.mrb[0].mxu0
        %2236 = vdwg.mxu0
        %v2238 = vsel %vm2051, %v2039, 0
        %v2241 = vsel %vm2055, %v2047, 0
        %2243 = vmatprep.subr.bf16.mxu0 0
        %2244 = vmatpush1.bf16.msra.mxu0 %v2241
        %2245 = vmatprep.subr.bf16.mxu0 0
        %2246 = vmatpush1.bf16.msra.mxu0 0
        %2247 = vmatprep.subr.bf16.mxu0 0
        %2248 = vmatpush1.bf16.msra.mxu0 0
        %2249 = vmatprep.subr.bf16.mxu0 0
        %2250 = vmatpush1.bf16.msra.mxu0 0
        %2251 = vmatprep.subr.bf16.mxu0 0
        %2252 = vmatpush1.bf16.msra.mxu0 0
        %2253 = vmatprep.subr.bf16.mxu0 0
        %2254 = vmatpush1.bf16.msra.mxu0 0
        %2255 = vmatprep.subr.bf16.mxu0 0
        %2256 = vmatpush1.bf16.msra.mxu0 0
        %2257 = vmatprep.subr.bf16.mxu0 0
        %2258 = vmatpush1.bf16.msra.mxu0 0
        %2259 = vmatprep.subr.bf16.mxu0 0
        %2260 = vmatpush1.bf16.msra.mxu0 0
        %2261 = vmatprep.subr.bf16.mxu0 0
        %2262 = vmatpush1.bf16.msra.mxu0 0
        %2263 = vmatprep.subr.bf16.mxu0 0
        %2264 = vmatpush1.bf16.msra.mxu0 0
        %2265 = vmatprep.subr.bf16.mxu0 0
        %2266 = vmatpush1.bf16.msra.mxu0 0
        %2267 = vmatprep.subr.bf16.mxu0 0
        %2268 = vmatpush1.bf16.msra.mxu0 0
        %2269 = vmatprep.subr.bf16.mxu0 0
        %2270 = vmatpush1.bf16.msra.mxu0 0
        %2271 = vmatprep.subr.bf16.mxu0 0
        %2272 = vmatpush1.bf16.msra.mxu0 0
        %2273 = vmatprep.subr.bf16.mxu0 0
        %2274 = vmatpush1.bf16.msra.mxu0 0
        %2275 = vmatprep.mubr.bf16.mxu0 0
        %2276 = vmatmul.mubr.bf16.gmra.mrb[0].mxu0 %v2238
        %v2277 = vpop.f32.mrb[0].mxu0
        %v2278 = vadd.f32 0.0, %v2277
        %v2279 = vpop.f32.mrb[0].mxu0
        %v2280 = vpop.f32.mrb[0].mxu0
        %v2281 = vpop.f32.mrb[0].mxu0
        %2282 = vdwg.mxu0
        %v2284 = vsel %vm2051, %v2040, 0
        %v2287 = vsel %vm2055, %v2048, 0
        %2289 = vmatprep.subr.bf16.mxu0 0
        %2290 = vmatpush1.bf16.msra.mxu0 %v2287
        %2291 = vmatprep.subr.bf16.mxu0 0
        %2292 = vmatpush1.bf16.msra.mxu0 0
        %2293 = vmatprep.subr.bf16.mxu0 0
        %2294 = vmatpush1.bf16.msra.mxu0 0
        %2295 = vmatprep.subr.bf16.mxu0 0
        %2296 = vmatpush1.bf16.msra.mxu0 0
        %2297 = vmatprep.subr.bf16.mxu0 0
        %2298 = vmatpush1.bf16.msra.mxu0 0
        %2299 = vmatprep.subr.bf16.mxu0 0
        %2300 = vmatpush1.bf16.msra.mxu0 0
        %2301 = vmatprep.subr.bf16.mxu0 0
        %2302 = vmatpush1.bf16.msra.mxu0 0
        %2303 = vmatprep.subr.bf16.mxu0 0
        %2304 = vmatpush1.bf16.msra.mxu0 0
        %2305 = vmatprep.subr.bf16.mxu0 0
        %2306 = vmatpush1.bf16.msra.mxu0 0
        %2307 = vmatprep.subr.bf16.mxu0 0
        %2308 = vmatpush1.bf16.msra.mxu0 0
        %2309 = vmatprep.subr.bf16.mxu0 0
        %2310 = vmatpush1.bf16.msra.mxu0 0
        %2311 = vmatprep.subr.bf16.mxu0 0
        %2312 = vmatpush1.bf16.msra.mxu0 0
        %2313 = vmatprep.subr.bf16.mxu0 0
        %2314 = vmatpush1.bf16.msra.mxu0 0
        %2315 = vmatprep.subr.bf16.mxu0 0
        %2316 = vmatpush1.bf16.msra.mxu0 0
        %2317 = vmatprep.subr.bf16.mxu0 0
        %2318 = vmatpush1.bf16.msra.mxu0 0
        %2319 = vmatprep.subr.bf16.mxu0 0
        %2320 = vmatpush1.bf16.msra.mxu0 0
        %2321 = vmatprep.mubr.bf16.mxu0 0
        %2322 = vmatmul.mubr.bf16.gmra.mrb[0].mxu0 %v2284
        %v2323 = vpop.f32.mrb[0].mxu0
        %v2324 = vadd.f32 0.0, %v2323
        %v2325 = vpop.f32.mrb[0].mxu0
        %v2326 = vpop.f32.mrb[0].mxu0
        %v2327 = vpop.f32.mrb[0].mxu0
        %2328 = vdwg.mxu0
        %v2330 = vsel %vm2051, %v2041, 0
        %v2333 = vsel %vm2055, %v2049, 0
        %2335 = vmatprep.subr.bf16.mxu0 0
        %2336 = vmatpush1.bf16.msra.mxu0 %v2333
        %2337 = vmatprep.subr.bf16.mxu0 0
        %2338 = vmatpush1.bf16.msra.mxu0 0
        %2339 = vmatprep.subr.bf16.mxu0 0
        %2340 = vmatpush1.bf16.msra.mxu0 0
        %2341 = vmatprep.subr.bf16.mxu0 0
        %2342 = vmatpush1.bf16.msra.mxu0 0
        %2343 = vmatprep.subr.bf16.mxu0 0
        %2344 = vmatpush1.bf16.msra.mxu0 0
        %2345 = vmatprep.subr.bf16.mxu0 0
        %2346 = vmatpush1.bf16.msra.mxu0 0
        %2347 = vmatprep.subr.bf16.mxu0 0
        %2348 = vmatpush1.bf16.msra.mxu0 0
        %2349 = vmatprep.subr.bf16.mxu0 0
        %2350 = vmatpush1.bf16.msra.mxu0 0
        %2351 = vmatprep.subr.bf16.mxu0 0
        %2352 = vmatpush1.bf16.msra.mxu0 0
        %2353 = vmatprep.subr.bf16.mxu0 0
        %2354 = vmatpush1.bf16.msra.mxu0 0
        %2355 = vmatprep.subr.bf16.mxu0 0
        %2356 = vmatpush1.bf16.msra.mxu0 0
        %2357 = vmatprep.subr.bf16.mxu0 0
        %2358 = vmatpush1.bf16.msra.mxu0 0
        %2359 = vmatprep.subr.bf16.mxu0 0
        %2360 = vmatpush1.bf16.msra.mxu0 0
        %2361 = vmatprep.subr.bf16.mxu0 0
        %2362 = vmatpush1.bf16.msra.mxu0 0
        %2363 = vmatprep.subr.bf16.mxu0 0
        %2364 = vmatpush1.bf16.msra.mxu0 0
        %2365 = vmatprep.subr.bf16.mxu0 0
        %2366 = vmatpush1.bf16.msra.mxu0 0
        %2367 = vmatprep.mubr.bf16.mxu0 0
        %2368 = vmatmul.mubr.bf16.gmra.mrb[0].mxu0 %v2330
        %v2369 = vpop.f32.mrb[0].mxu0
        %v2370 = vadd.f32 0.0, %v2369
        %v2371 = vpop.f32.mrb[0].mxu0
        %v2372 = vpop.f32.mrb[0].mxu0
        %v2373 = vpop.f32.mrb[0].mxu0
        %2374 = vdwg.mxu0
        %v2376 = vsel %vm2051, %v2042, 0
        %v2379 = vsel %vm2055, %v2050, 0
        %2381 = vmatprep.subr.bf16.mxu0 0
        %2382 = vmatpush1.bf16.msra.mxu0 %v2379
        %2383 = vmatprep.subr.bf16.mxu0 0
        %2384 = vmatpush1.bf16.msra.mxu0 0
        %2385 = vmatprep.subr.bf16.mxu0 0
        %2386 = vmatpush1.bf16.msra.mxu0 0
        %2387 = vmatprep.subr.bf16.mxu0 0
        %2388 = vmatpush1.bf16.msra.mxu0 0
        %2389 = vmatprep.subr.bf16.mxu0 0
        %2390 = vmatpush1.bf16.msra.mxu0 0
        %2391 = vmatprep.subr.bf16.mxu0 0
        %2392 = vmatpush1.bf16.msra.mxu0 0
        %2393 = vmatprep.subr.bf16.mxu0 0
        %2394 = vmatpush1.bf16.msra.mxu0 0
        %2395 = vmatprep.subr.bf16.mxu0 0
        %2396 = vmatpush1.bf16.msra.mxu0 0
        %2397 = vmatprep.subr.bf16.mxu0 0
        %2398 = vmatpush1.bf16.msra.mxu0 0
        %2399 = vmatprep.subr.bf16.mxu0 0
        %2400 = vmatpush1.bf16.msra.mxu0 0
        %2401 = vmatprep.subr.bf16.mxu0 0
        %2402 = vmatpush1.bf16.msra.mxu0 0
        %2403 = vmatprep.subr.bf16.mxu0 0
        %2404 = vmatpush1.bf16.msra.mxu0 0
        %2405 = vmatprep.subr.bf16.mxu0 0
        %2406 = vmatpush1.bf16.msra.mxu0 0
        %2407 = vmatprep.subr.bf16.mxu0 0
        %2408 = vmatpush1.bf16.msra.mxu0 0
        %2409 = vmatprep.subr.bf16.mxu0 0
        %2410 = vmatpush1.bf16.msra.mxu0 0
        %2411 = vmatprep.subr.bf16.mxu0 0
        %2412 = vmatpush1.bf16.msra.mxu0 0
        %2413 = vmatprep.mubr.bf16.mxu0 0
        %2414 = vmatmul.mubr.bf16.gmra.mrb[0].mxu0 %v2376
        %v2415 = vpop.f32.mrb[0].mxu0
        %v2416 = vadd.f32 0.0, %v2415
        %v2417 = vpop.f32.mrb[0].mxu0
        %v2418 = vpop.f32.mrb[0].mxu0
        %v2419 = vpop.f32.mrb[0].mxu0
        %2420 = vdwg.mxu0
        %v2421 = vadd.f32 %v2094, 0.0
        %v2422 = vadd.f32 %v2140, 0.0
        %v2423 = vadd.f32 %v2186, 0.0
        %v2424 = vadd.f32 %v2232, 0.0
        %v2425 = vadd.f32 %v2278, 0.0
        %v2426 = vadd.f32 %v2324, 0.0
        %v2427 = vadd.f32 %v2370, 0.0
        %v2428 = vadd.f32 %v2416, 0.0
        %2430 = vset.pattern.permute.xlu0 0
        %2431 = vperm.xlu0 %2430, %v2034
        %v2432 = vpop.permute.xlu0 %2431
        %v2434 = vmul.f32 %v2432, %v1932
        %v2435 = vsub.f32 1.0, %v2034
        %2437 = vset.pattern.permute.xlu0 0
        %2438 = vperm.xlu0 %2437, %v2435
        %v2439 = vpop.permute.xlu0 %2438
        %v2449 = vrot.slane %v2422, 7
        %v2450 = vsel %vm1999, %v2449, %v2421
        %v2451 = vrot.slane %v2423, 6
        %v2452 = vsel %vm2002, %v2451, %v2450
        %v2453 = vrot.slane %v2424, 5
        %v2454 = vsel %vm2005, %v2453, %v2452
        %v2455 = vrot.slane %v2425, 4
        %v2456 = vsel %vm2008, %v2455, %v2454
        %v2457 = vrot.slane %v2426, 3
        %v2458 = vsel %vm2011, %v2457, %v2456
        %v2459 = vrot.slane %v2427, 2
        %v2460 = vsel %vm2014, %v2459, %v2458
        %v2461 = vrot.slane %v2428, 1
        %v2462 = vsel %vm2017, %v2461, %v2460
        %v2464 = vmul.f32 %v2439, %v2462
        %v2465 = vadd.f32 %v2434, %v2464
        %2466 = vst [vmem:[%s475] sm:$0xff] %v2465
        %2467 = vmax.xlane.f32.xlu0 %v2465
        %v2468 = vpop.xlane.xlu0 %2467
        %v2469 = vlaneseq
        %v2470 = vand.u32 %v2469, 127
        %vm2471 = vcmp.eq.f32.partialorder %v2465, %v2468
        %v2472 = vsel %vm2471, %v2470, 128
        %v2473 = vand.u32 %v2472, 65535
        %v2474 = vshra.s32 %v2472, 16
        %v2475 = vcvt.s32.f32 %v2473
        %v2476 = vcvt.s32.f32 %v2474
        %2477 = vmin.xlane.f32.xlu0 %v2476
        %v2478 = vpop.xlane.xlu0 %2477
        %vm2479 = vcmp.eq.f32.partialorder %v2476, %v2478
        %v2480 = vsel %vm2479, %v2475, inf
        %2481 = vmin.xlane.f32.xlu0 %v2480
        %v2482 = vpop.xlane.xlu0 %2481
        %v2483 = vcvt.f32.s32 %v2482
        %v2484 = vcvt.f32.s32 %v2478
        %v2485 = vshll.u32 %v2484, 16
        %v2486 = vadd.s32 %v2485, %v2483
        %vm2487 = vcmp.eq.s32.totalorder %v2486, %v2470
        %v2488 = vsel %vm2487, 1, 0
        %v2489 = vcvt.s32.f32 %v2488
        %v2490 = vpack.c.bf16 %v2489, %v2489
        %v2491 = vld [vmem:[#allocation4] sm:$0xff]
        %v2492 = vld [vmem:[#allocation4 + $0x8] sm:$0xff]
        %v2493 = vld [vmem:[#allocation4 + $0x10] sm:$0xff]
        %v2494 = vld [vmem:[#allocation4 + $0x18] sm:$0xff]
        %v2495 = vld [vmem:[#allocation4 + $0x20] sm:$0xff]
        %v2496 = vld [vmem:[#allocation4 + $0x28] sm:$0xff]
        %v2497 = vld [vmem:[#allocation4 + $0x30] sm:$0xff]
        %v2498 = vld [vmem:[#allocation4 + $0x38] sm:$0xff]
        %2499 = vmatprep.subr.bf16.mxu0 0
        %2500 = vmatpush1.bf16.msra.mxu0 %v2491
        %2501 = vmatprep.subr.bf16.mxu0 0
        %2502 = vmatpush1.bf16.msra.mxu0 %v2492
        %2503 = vmatprep.subr.bf16.mxu0 0
        %2504 = vmatpush1.bf16.msra.mxu0 %v2493
        %2505 = vmatprep.subr.bf16.mxu0 0
        %2506 = vmatpush1.bf16.msra.mxu0 %v2494
        %2507 = vmatprep.subr.bf16.mxu0 0
        %2508 = vmatpush1.bf16.msra.mxu0 %v2495
        %2509 = vmatprep.subr.bf16.mxu0 0
        %2510 = vmatpush1.bf16.msra.mxu0 %v2496
        %2511 = vmatprep.subr.bf16.mxu0 0
        %2512 = vmatpush1.bf16.msra.mxu0 %v2497
        %2513 = vmatprep.subr.bf16.mxu0 0
        %2514 = vmatpush1.bf16.msra.mxu0 %v2498
        %2515 = vmatprep.subr.bf16.mxu0 0
        %2516 = vmatpush1.bf16.msra.mxu0 0
        %2517 = vmatprep.subr.bf16.mxu0 0
        %2518 = vmatpush1.bf16.msra.mxu0 0
        %2519 = vmatprep.subr.bf16.mxu0 0
        %2520 = vmatpush1.bf16.msra.mxu0 0
        %2521 = vmatprep.subr.bf16.mxu0 0
        %2522 = vmatpush1.bf16.msra.mxu0 0
        %2523 = vmatprep.subr.bf16.mxu0 0
        %2524 = vmatpush1.bf16.msra.mxu0 0
        %2525 = vmatprep.subr.bf16.mxu0 0
        %2526 = vmatpush1.bf16.msra.mxu0 0
        %2527 = vmatprep.subr.bf16.mxu0 0
        %2528 = vmatpush1.bf16.msra.mxu0 0
        %2529 = vmatprep.subr.bf16.mxu0 0
        %2530 = vmatpush1.bf16.msra.mxu0 0
        %2531 = vmatprep.mubr.bf16.mxu0 0
        %2532 = vmatmul.mubr.bf16.gmra.mrb[0].mxu0 %v2490
        %v2533 = vpop.f32.mrb[0].mxu0
        %v2534 = vadd.f32 0.0, %v2533
        %v2535 = vpop.f32.mrb[0].mxu0
        %v2536 = vpop.f32.mrb[0].mxu0
        %v2537 = vpop.f32.mrb[0].mxu0
        %2538 = vdwg.mxu0
        %2539 = vst.msk [vmem:[#allocation3] sm:$0xff] %vm851, %v2534
        %s2540 = sand.u32 %s297, 1
        %s2541 = scalar_lea.sflag [#allocation12], %s2540
        %s2542 = sand.u32 %s297, 1
        %s2543 = smul.addr %s2542, 8
        %s2544 = scalar_lea.vmem [#allocation18], %s2543
        // Predicated region
        $region119: #{tpu_custom_call.1} parent=59 // pred_check
          %p2545 = pneg %p307
        $region120: #{tpu_custom_call.1} parent=59 // pred_check_branch
          %2547 = sbr.rel (%p2545) target = $region122
        $region121: #{tpu_custom_call.1} parent=59 // pred_region
          %s2548 = smul.u32 %s38, 3
          %s2549 = sadd.s32 %s2548, %s39
          %s2551 = ssub.s32 128, 128
          %2552 = vsyncadd %s2541, %s2551
          %s2553 = sadd.s32 %s37, %s2549
          %s2554 = smul.addr %s2553, 128
          %s2555 = scalar_lea.hbm %s11, %s2554
          %s2557 = sshll.u32 %s2544, 4
          %s2558 = int_to_ptr.vmem [resolvable:$true] %s2557
          %2560 = dma.vmem_to_hbm [thread:$0]  %s2558, 128, %s2555, %s2541
        $region122: #{tpu_custom_call.1} parent=59 // pred_fallthru
          _
      $region60: #{tpu_custom_call.1} parent=5 // pred_fallthru
        _
      %p2561 = scmp.le.s32.totalorder 2, %s27
      // Predicated region
      $region123: #{tpu_custom_call.1} parent=5 // pred_check
        %p2562 = pneg %p2561
      $region124: #{tpu_custom_call.1} parent=5 // pred_check_branch
        %2564 = sbr.rel (%p2562) target = $region126
      $region125: #{tpu_custom_call.1} parent=5 // pred_region
        %s2565 = ssub.s32 %s27, 2
        // Predicated region
        $region127: #{tpu_custom_call.1} parent=125 // pred_check
          %p2566 = pneg %p313
        $region128: #{tpu_custom_call.1} parent=125 // pred_check_branch
          %2568 = sbr.rel (%p2566) target = $region130
        $region129: #{tpu_custom_call.1} parent=125 // pred_region
          %s2569 = sand.u32 %s298, 1
          %s2570 = scalar_lea.sflag [#allocation12], %s2569
          %s2571 = sand.u32 %s298, 1
          %s2572 = smul.addr %s2571, 8
          %s2573 = scalar_lea.vmem [#allocation18], %s2572
          %2574 = dma.done %s2570, 128
        $region130: #{tpu_custom_call.1} parent=125 // pred_fallthru
          _
      $region126: #{tpu_custom_call.1} parent=5 // pred_fallthru
        _
    $region6: #{tpu_custom_call.1} parent=1 // loop_footer
      %s31 = sadd.s32 1, %s27
    $region7: #{tpu_custom_call.1} parent=1 // loop_footer_branch
      %26 = sbr.rel target = $region3
    $region8: #{tpu_custom_call.1} parent=1 // loop_exit
      _
    %2575 = vsyncpa [#allocation11], 1
    %s2576 = scalar_lea.sflag [#allocation11], 1
    %2577 = vsyncpa %s2576, 1
    %2578 = vsyncpa [#allocation14], 1
    %s2579 = scalar_lea.sflag [#allocation14], 1
    %2580 = vsyncpa %s2579, 1
    %2581 = vsyncpa [#allocation17], 1
    %2582 = vsyncpa [#allocation12], 1
    %s2583 = scalar_lea.sflag [#allocation12], 1
    %2584 = vsyncpa %s2583, 1
  %2585 = vsyncmov [#allocation8]
  %s2586 = vpop.sfrf %2585
  %p2587 = scmp.eq.s32.totalorder %s2586, 0
  %p2588 = pneg %p2587
  %2590 = shalt.err (%p2588)

</llo_original>
